<compile_context>
chip_gen: v7x
topology: tpu7x:2x2x1
jax: 0.10.0
libtpu: 0.0.40
codegen_flags: <defaults>
</compile_context>

<pallas_src>
import functools

import jax
import jax.numpy as jnp
import numpy as np
from jax.experimental import pallas as pl
from jax.experimental.pallas import tpu as pltpu

EPS = 1e-5          # torch.nn.BatchNorm2d default eps
LANE = 128          # lane width: channel dims padded to a multiple of this


def _round_up(x, m):
    return ((x + m - 1) // m) * m


def _cparams():
    return pltpu.CompilerParams(
        dimension_semantics=("parallel",),
        vmem_limit_bytes=64 * 1024 * 1024,
    )


# --------------------------------------------------------------------------
# Kernel A: bn1 (precomputed affine) -> relu -> 1x1 conv (MXU, bf16 operands)
#           + per-tile (sum, sumsq) partials of the conv output for bn2 stats.
# --------------------------------------------------------------------------
def _bn_relu_mm_stats_kernel(x_ref, s_ref, t_ref, w_ref, b_ref,
                             h_ref, st_ref, *, m_total, need_mask):
    x = x_ref[...]                                            # (TM, Cin_p) f32
    a = jnp.maximum(x * s_ref[...] + t_ref[...], 0.0)
    h = jnp.dot(a.astype(jnp.bfloat16), w_ref[...],
                preferred_element_type=jnp.float32) + b_ref[...]
    if need_mask:                                             # zero padded M rows
        tm = x_ref.shape[0]
        row0 = pl.program_id(0) * tm
        rid = row0 + jax.lax.broadcasted_iota(jnp.int32, (tm, 1), 0)
        h = jnp.where(rid < m_total, h, 0.0)
    h_ref[...] = h
    s = jnp.sum(h, axis=0, keepdims=True)
    ss = jnp.sum(h * h, axis=0, keepdims=True)
    st_ref[0] = jnp.concatenate([s, ss], axis=0)              # (2, Cmid_p)


# --------------------------------------------------------------------------
# Kernel B: 3x3 / pad=1 / stride=1 conv as 9 row-shifted matmuls on the
#           flattened padded image (no im2col), + (sum, sumsq) for bn3 stats.
# --------------------------------------------------------------------------
def _conv3x3_stats_kernel(ap_ref, w2_ref, c2b_ref, mask_ref,
                          h2_ref, st_ref, *, wp, l0):
    c = w2_ref.shape[-1]
    acc = jnp.zeros((l0, c), jnp.float32)
    for dy in range(3):
        for dx in range(3):
            k = dy * wp + dx
            tap = ap_ref[0, k:k + l0, :].astype(jnp.bfloat16)  # (L0, C)
            acc = acc + jnp.dot(tap, w2_ref[dy, dx],
                                preferred_element_type=jnp.float32)
    h2 = (acc + c2b_ref[...]) * mask_ref[...]     # zero the conv-pad ring rows
    h2_ref[0] = h2
    s = jnp.sum(h2, axis=0, keepdims=True)
    ss = jnp.sum(h2 * h2, axis=0, keepdims=True)
    st_ref[0] = jnp.concatenate([s, ss], axis=0)


# --------------------------------------------------------------------------
# Kernel C: bn3 (precomputed affine) -> relu -> 1x1 conv + residual add.
# --------------------------------------------------------------------------
def _bn_relu_mm_residual_kernel(h_ref, s_ref, t_ref, w_ref, b_ref, r_ref, o_ref):
    a = jnp.maximum(h_ref[...] * s_ref[...] + t_ref[...], 0.0)
    o = jnp.dot(a.astype(jnp.bfloat16), w_ref[...],
                preferred_element_type=jnp.float32) + b_ref[...]
    o_ref[...] = o + r_ref[...]


# --------------------------------------------------------------------------
# Parameters (same layout as before: 1x1 convs as (Cin, Cout), 3x3 as (3,3,Cin,Cout))
# --------------------------------------------------------------------------
def init_params(key, in_ch, out_ch):
    assert out_ch % 4 == 0
    cmid = out_ch // 4
    ks = jax.random.split(key, 12)

    def u(k, shape, lo, hi):
        return jax.random.uniform(k, shape, jnp.float32, lo, hi)

    return dict(
        g1=u(ks[0], (1, in_ch), 0.5, 1.5), b1=u(ks[1], (1, in_ch), -0.1, 0.1),
        w1=u(ks[2], (in_ch, cmid), -1.0, 1.0) / np.sqrt(in_ch),
        c1b=u(ks[3], (1, cmid), -0.1, 0.1),
        g2=u(ks[4], (1, cmid), 0.5, 1.5), b2=u(ks[5], (1, cmid), -0.1, 0.1),
        w2=u(ks[6], (3, 3, cmid, cmid), -1.0, 1.0) / np.sqrt(9 * cmid),
        c2b=u(ks[7], (1, cmid), -0.1, 0.1),
        g3=u(ks[8], (1, cmid), 0.5, 1.5), b3=u(ks[9], (1, cmid), -0.1, 0.1),
        w3=u(ks[10], (cmid, out_ch), -1.0, 1.0) / np.sqrt(cmid),
        c3b=u(ks[11], (1, out_ch), -0.1, 0.1),
    )


# --------------------------------------------------------------------------
# Forward pass
# --------------------------------------------------------------------------
def bottleneck_forward(x_nchw, p, *, tile_m=512):
    N, Cin, H, W = x_nchw.shape
    Cmid = p['w1'].shape[1]
    Cout = p['w3'].shape[1]
    # Residual path of the original module assumes in_ch == out_ch, stride 1
    # (no downsample branch exists in the spec) -- fail loudly otherwise.
    assert Cin == Cout, "Bottleneck residual requires in_ch == out_ch"
    M = N * H * W

    cin_p = _round_up(Cin, LANE)
    cmid_p = _round_up(Cmid, LANE)
    cout_p = _round_up(Cout, LANE)

    tm = min(tile_m, _round_up(M, 8))
    m_pad = _round_up(M, tm)
    mt = m_pad // tm

    f32, bf16 = jnp.float32, jnp.bfloat16

    # NCHW -> lane-dense channels-last slab (M_pad, Cin_p).
    x_nhwc = jnp.transpose(x_nchw, (0, 2, 3, 1)).astype(f32)
    x2 = x_nhwc.reshape(M, Cin)
    x2p = jnp.pad(x2, ((0, m_pad - M), (0, cin_p - Cin)))

    # bn1: global batch statistics of the module input (training mode).
    mean1 = jnp.mean(x2, axis=0, keepdims=True)
    var1 = jnp.mean(jnp.square(x2 - mean1), axis=0, keepdims=True)
    s1 = p['g1'] * jax.lax.rsqrt(var1 + EPS)
    t1 = p['b1'] - mean1 * s1
    s1p = jnp.pad(s1, ((0, 0), (0, cin_p - Cin)))
    t1p = jnp.pad(t1, ((0, 0), (0, cin_p - Cin)))

    w1p = jnp.pad(p['w1'], ((0, cin_p - Cin), (0, cmid_p - Cmid))).astype(bf16)
    c1bp = jnp.pad(p['c1b'], ((0, 0), (0, cmid_p - Cmid)))

    # ---- stage 1: bn1 -> relu -> 1x1 conv (+ partial stats for bn2) ----------
    kern_a = functools.partial(_bn_relu_mm_stats_kernel,
                               m_total=M, need_mask=(m_pad != M))
    h1, st_a = pl.pallas_call(
        kern_a,
        grid=(mt,),
        in_specs=[
            pl.BlockSpec((tm, cin_p), lambda i: (i, 0)),
            pl.BlockSpec((1, cin_p), lambda i: (0, 0)),
            pl.BlockSpec((1, cin_p), lambda i: (0, 0)),
            pl.BlockSpec((cin_p, cmid_p), lambda i: (0, 0)),
            pl.BlockSpec((1, cmid_p), lambda i: (0, 0)),
        ],
        out_specs=[
            pl.BlockSpec((tm, cmid_p), lambda i: (i, 0)),
            pl.BlockSpec((1, 2, cmid_p), lambda i: (i, 0, 0)),
        ],
        out_shape=[
            jax.ShapeDtypeStruct((m_pad, cmid_p), f32),
            jax.ShapeDtypeStruct((mt, 2, cmid_p), f32),
        ],
        compiler_params=_cparams(),
    )(x2p, s1p, t1p, w1p, c1bp)

    # bn2: finalize global stats from the per-tile (sum, sumsq) partials.
    g2p = jnp.pad(p['g2'], ((0, 0), (0, cmid_p - Cmid)))
    b2p = jnp.pad(p['b2'], ((0, 0), (0, cmid_p - Cmid)))
    tot2 = jnp.sum(st_a, axis=0)
    mean2 = tot2[0:1] / M
    var2 = jnp.maximum(tot2[1:2] / M - mean2 * mean2, 0.0)
    s2 = g2p * jax.lax.rsqrt(var2 + EPS)
    t2 = b2p - mean2 * s2

    # bn2 -> relu -> spatial zero-pad, flattened per image to (L1, C) rows so
    # the 3x3 conv is 9 shifted 2-D matmuls in-kernel (no 9x im2col blow-up).
    hp, wp = H + 2, W + 2
    l0 = hp * wp
    l1 = l0 + 2 * wp + 2
    a2 = jnp.maximum(h1[:M] * s2 + t2, 0.0).reshape(N, H, W, cmid_p)
    a2 = jnp.pad(a2, ((0, 0), (1, 1), (1, 1), (0, 0)))
    a2 = jnp.pad(a2.reshape(N, l0, cmid_p), ((0, 0), (0, l1 - l0), (0, 0)))

    w2p = jnp.pad(p['w2'], ((0, 0), (0, 0),
                            (0, cmid_p - Cmid), (0, cmid_p - Cmid))).astype(bf16)
    c2bp = jnp.pad(p['c2b'], ((0, 0), (0, cmid_p - Cmid)))

    # Static validity mask over flattened conv-output rows (drops the pad ring).
    ridx = np.arange(l0) // wp
    cidx = np.arange(l0) % wp
    mask = jnp.asarray(((ridx < H) & (cidx < W)).astype(np.float32)).reshape(l0, 1)

    # ---- stage 2: 3x3 conv (+ partial stats for bn3) -------------------------
    kern_b = functools.partial(_conv3x3_stats_kernel, wp=wp, l0=l0)
    h2, st_b = pl.pallas_call(
        kern_b,
        grid=(N,),
        in_specs=[
            pl.BlockSpec((1, l1, cmid_p), lambda n: (n, 0, 0)),
            pl.BlockSpec((3, 3, cmid_p, cmid_p), lambda n: (0, 0, 0, 0)),
            pl.BlockSpec((1, cmid_p), lambda n: (0, 0)),
            pl.BlockSpec((l0, 1), lambda n: (0, 0)),
        ],
        out_specs=[
            pl.BlockSpec((1, l0, cmid_p), lambda n: (n, 0, 0)),
            pl.BlockSpec((1, 2, cmid_p), lambda n: (n, 0, 0)),
        ],
        out_shape=[
            jax.ShapeDtypeStruct((N, l0, cmid_p), f32),
            jax.ShapeDtypeStruct((N, 2, cmid_p), f32),
        ],
        compiler_params=_cparams(),
    )(a2, w2p, c2bp, mask)

    # bn3: finalize global stats.
    g3p = jnp.pad(p['g3'], ((0, 0), (0, cmid_p - Cmid)))
    b3p = jnp.pad(p['b3'], ((0, 0), (0, cmid_p - Cmid)))
    tot3 = jnp.sum(st_b, axis=0)
    mean3 = tot3[0:1] / M
    var3 = jnp.maximum(tot3[1:2] / M - mean3 * mean3, 0.0)
    s3 = g3p * jax.lax.rsqrt(var3 + EPS)
    t3 = b3p - mean3 * s3

    # Drop the conv-pad ring rows, back to an (M_pad, Cmid_p) slab.
    h2v = h2[:, :H * wp].reshape(N, H, wp, cmid_p)[:, :, :W, :].reshape(M, cmid_p)
    h2v = jnp.pad(h2v, ((0, m_pad - M), (0, 0)))

    w3p = jnp.pad(p['w3'], ((0, cmid_p - Cmid), (0, cout_p - Cout))).astype(bf16)
    c3bp = jnp.pad(p['c3b'], ((0, 0), (0, cout_p - Cout)))

    # ---- stage 3: bn3 -> relu -> 1x1 conv + residual (identity slab == x2p) --
    out = pl.pallas_call(
        _bn_relu_mm_residual_kernel,
        grid=(mt,),
        in_specs=[
            pl.BlockSpec((tm, cmid_p), lambda i: (i, 0)),
            pl.BlockSpec((1, cmid_p), lambda i: (0, 0)),
            pl.BlockSpec((1, cmid_p), lambda i: (0, 0)),
            pl.BlockSpec((cmid_p, cout_p), lambda i: (0, 0)),
            pl.BlockSpec((1, cout_p), lambda i: (0, 0)),
            pl.BlockSpec((tm, cout_p), lambda i: (i, 0)),
        ],
        out_specs=pl.BlockSpec((tm, cout_p), lambda i: (i, 0)),
        out_shape=jax.ShapeDtypeStruct((m_pad, cout_p), f32),
        compiler_params=_cparams(),
    )(h2v, s3, t3, w3p, c3bp, x2p)

    out = out[:M, :Cout].reshape(N, H, W, Cout)
    return jnp.transpose(out, (0, 3, 1, 2))


# ---------------- pure-JAX f32 reference (correctness sanity check) ----------
def _resblock_ref(x, gamma, beta, w_oihw, bias, padding):
    mean = jnp.mean(x, axis=(0, 2, 3), keepdims=True)
    var = jnp.mean((x - mean) ** 2, axis=(0, 2, 3), keepdims=True)
    xn = (x - mean) * jax.lax.rsqrt(var + EPS)
    a = jnp.maximum(xn * gamma.reshape(1, -1, 1, 1) + beta.reshape(1, -1, 1, 1), 0.0)
    y = jax.lax.conv_general_dilated(
        a, w_oihw, window_strides=(1, 1),
        padding=[(padding, padding), (padding, padding)],
        dimension_numbers=('NCHW', 'OIHW', 'NCHW'))
    return y + bias.reshape(1, -1, 1, 1)


def bottleneck_ref(x, p):
    w1 = jnp.transpose(p['w1'], (1, 0))[:, :, None, None]
    w2 = jnp.transpose(p['w2'], (3, 2, 0, 1))
    w3 = jnp.transpose(p['w3'], (1, 0))[:, :, None, None]
    out = _resblock_ref(x, p['g1'][0], p['b1'][0], w1, p['c1b'][0], 0)
    out = _resblock_ref(out, p['g2'][0], p['b2'][0], w2, p['c2b'][0], 1)
    out = _resblock_ref(out, p['g3'][0], p['b3'][0], w3, p['c3b'][0], 0)
    return out + x


if __name__ == "__main__":
    # Small shapes: in_ch == out_ch == 32 (Cmid = 8), 2 x 14 x 14 spatial.
    # M = 392 is deliberately not a multiple of the 128-row tile so the
    # multi-tile + masked-stats path is exercised.
    N, C, H, W = 2, 32, 14, 14
    key = jax.random.PRNGKey(0)
    kx, kp = jax.random.split(key)
    x = jax.random.normal(kx, (N, C, H, W), jnp.float32)
    params = init_params(kp, in_ch=C, out_ch=C)

    fwd = jax.jit(functools.partial(bottleneck_forward, tile_m=128))
    out = jax.block_until_ready(fwd(x, params))

    ref = jax.block_until_ready(bottleneck_ref(x, params))
    assert out.shape == (N, C, H, W)
    # bf16 MXU operands -> modest tolerance vs. the pure-f32 reference.
    np.testing.assert_allclose(np.asarray(out), np.asarray(ref), rtol=2e-2, atol=2e-2)

    print("KERNEL_OK")
</pallas_src>

<mosaic_0001>
module attributes {stable_mosaic.version = 11 : i64} {
  func.func @_bn_relu_mm_stats_kernel(%arg0: i32, %arg1: memref<128x128xf32, #tpu.memory_space<vmem>>, %arg2: memref<1x128xf32, #tpu.memory_space<vmem>>, %arg3: memref<1x128xf32, #tpu.memory_space<vmem>>, %arg4: memref<128x128xbf16, #tpu.memory_space<vmem>>, %arg5: memref<1x128xf32, #tpu.memory_space<vmem>>, %arg6: memref<128x128xf32, #tpu.memory_space<vmem>>, %arg7: memref<1x2x128xf32, #tpu.memory_space<vmem>>) attributes {dimension_semantics = [#tpu.dimension_semantics<parallel>], iteration_bounds = array<i64: 4>, scalar_prefetch = 0 : i64, scratch_operands = 0 : i64, tpu.core_type = #tpu.core_type<tc>, window_params = [{transform_indices = @transform_0, window_bounds = array<i64: 128, 128>}, {pipeline_mode = #tpu.pipeline_mode<synchronous>, transform_indices = @transform_1, window_bounds = array<i64: 1, 128>}, {pipeline_mode = #tpu.pipeline_mode<synchronous>, transform_indices = @transform_2, window_bounds = array<i64: 1, 128>}, {pipeline_mode = #tpu.pipeline_mode<synchronous>, transform_indices = @transform_3, window_bounds = array<i64: 128, 128>}, {pipeline_mode = #tpu.pipeline_mode<synchronous>, transform_indices = @transform_4, window_bounds = array<i64: 1, 128>}, {transform_indices = @transform_5, window_bounds = array<i64: 128, 128>}, {transform_indices = @transform_6, window_bounds = array<i64: 1, 2, 128>}]} {
    %c0 = arith.constant 0 : index
    %c0_0 = arith.constant 0 : index
    %0 = vector.load %arg1[%c0, %c0_0] : memref<128x128xf32, #tpu.memory_space<vmem>>, vector<128x128xf32>
    %c0_1 = arith.constant 0 : index
    %c0_2 = arith.constant 0 : index
    %1 = vector.load %arg2[%c0_1, %c0_2] : memref<1x128xf32, #tpu.memory_space<vmem>>, vector<1x128xf32>
    %2 = vector.broadcast %1 : vector<1x128xf32> to vector<128x128xf32>
    %3 = arith.mulf %0, %2 : vector<128x128xf32>
    %c0_3 = arith.constant 0 : index
    %c0_4 = arith.constant 0 : index
    %4 = vector.load %arg3[%c0_3, %c0_4] : memref<1x128xf32, #tpu.memory_space<vmem>>, vector<1x128xf32>
    %5 = vector.broadcast %4 : vector<1x128xf32> to vector<128x128xf32>
    %6 = arith.addf %3, %5 : vector<128x128xf32>
    %cst = arith.constant 0.000000e+00 : f32
    %7 = vector.broadcast %cst : f32 to vector<128x128xf32>
    %8 = arith.maximumf %6, %7 : vector<128x128xf32>
    %9 = arith.truncf %8 : vector<128x128xf32> to vector<128x128xbf16>
    %c0_5 = arith.constant 0 : index
    %c0_6 = arith.constant 0 : index
    %10 = vector.load %arg4[%c0_5, %c0_6] : memref<128x128xbf16, #tpu.memory_space<vmem>>, vector<128x128xbf16>
    %cst_7 = arith.constant dense<0.000000e+00> : vector<128x128xf32>
    %11 = tpu.matmul %9, %10, %cst_7 {dimension_numbers = #tpu.dot_dimension_numbers<[1], [0], [0], [1], [0, 0, 1, 1], [], []>} : vector<128x128xbf16>, vector<128x128xbf16>, vector<128x128xf32> -> vector<128x128xf32>
    %c0_8 = arith.constant 0 : index
    %c0_9 = arith.constant 0 : index
    %12 = vector.load %arg5[%c0_8, %c0_9] : memref<1x128xf32, #tpu.memory_space<vmem>>, vector<1x128xf32>
    %13 = vector.broadcast %12 : vector<1x128xf32> to vector<128x128xf32>
    %14 = arith.addf %11, %13 : vector<128x128xf32>
    %c128_i32 = arith.constant 128 : i32
    %15 = arith.muli %arg0, %c128_i32 : i32
    %16 = tpu.iota {dimensions = array<i32: 0>} : vector<128x1xi32>
    %17 = vector.broadcast %15 : i32 to vector<128x1xi32>
    %18 = arith.addi %17, %16 : vector<128x1xi32>
    %c392_i32 = arith.constant 392 : i32
    %19 = vector.broadcast %c392_i32 : i32 to vector<128x1xi32>
    %20 = arith.cmpi slt, %18, %19 : vector<128x1xi32>
    %cst_10 = arith.constant 0.000000e+00 : f32
    %21 = vector.shape_cast %20 : vector<128x1xi1> to vector<128x1xi1>
    %22 = vector.broadcast %21 : vector<128x1xi1> to vector<128x128xi1>
    %23 = vector.broadcast %cst_10 : f32 to vector<128x128xf32>
    %24 = arith.select %22, %14, %23 : vector<128x128xi1>, vector<128x128xf32>
    %c0_11 = arith.constant 0 : index
    %c0_12 = arith.constant 0 : index
    %25 = vector.load %arg6[%c0_11, %c0_12] : memref<128x128xf32, #tpu.memory_space<vmem>>, vector<128x128xf32>
    tpu.vector_store %arg6[%c0_11, %c0_12], %24 {strides = array<i32>} : memref<128x128xf32, #tpu.memory_space<vmem>>, vector<128x128xf32>,
    %cst_13 = arith.constant dense<0.000000e+00> : vector<128xf32>
    %26 = vector.multi_reduction <add>, %24, %cst_13 [0] : vector<128x128xf32> to vector<128xf32>
    %27 = vector.shape_cast %26 : vector<128xf32> to vector<1x128xf32>
    %28 = arith.mulf %24, %24 : vector<128x128xf32>
    %cst_14 = arith.constant dense<0.000000e+00> : vector<128xf32>
    %29 = vector.multi_reduction <add>, %28, %cst_14 [0] : vector<128x128xf32> to vector<128xf32>
    %30 = vector.shape_cast %29 : vector<128xf32> to vector<1x128xf32>
    %31 = tpu.concatenate %27, %30 in 0 : vector<1x128xf32>, vector<1x128xf32> -> vector<2x128xf32>
    %c0_15 = arith.constant 0 : index
    %c0_16 = arith.constant 0 : index
    %c0_17 = arith.constant 0 : index
    %32 = vector.load %arg7[%c0_15, %c0_16, %c0_17] : memref<1x2x128xf32, #tpu.memory_space<vmem>>, vector<1x2x128xf32>
    %33 = vector.shape_cast %32 : vector<1x2x128xf32> to vector<2x128xf32>
    %34 = vector.shape_cast %31 : vector<2x128xf32> to vector<1x2x128xf32>
    tpu.vector_store %arg7[%c0_15, %c0_16, %c0_17], %34 {strides = array<i32>} : memref<1x2x128xf32, #tpu.memory_space<vmem>>, vector<1x2x128xf32>,
    return
  }
  func.func @transform_0(%arg0: i32) -> (i32, i32) {
    %c0_i32 = arith.constant 0 : i32
    %c0_i32_0 = arith.constant 0 : i32
    return %arg0, %c0_i32 : i32, i32
  }
  func.func @transform_1(%arg0: i32) -> (i32, i32) {
    %c0_i32 = arith.constant 0 : i32
    %c0_i32_0 = arith.constant 0 : i32
    %c0_i32_1 = arith.constant 0 : i32
    return %c0_i32, %c0_i32_0 : i32, i32
  }
  func.func @transform_2(%arg0: i32) -> (i32, i32) {
    %c0_i32 = arith.constant 0 : i32
    %c0_i32_0 = arith.constant 0 : i32
    %c0_i32_1 = arith.constant 0 : i32
    return %c0_i32, %c0_i32_0 : i32, i32
  }
  func.func @transform_3(%arg0: i32) -> (i32, i32) {
    %c0_i32 = arith.constant 0 : i32
    %c0_i32_0 = arith.constant 0 : i32
    %c0_i32_1 = arith.constant 0 : i32
    return %c0_i32, %c0_i32_0 : i32, i32
  }
  func.func @transform_4(%arg0: i32) -> (i32, i32) {
    %c0_i32 = arith.constant 0 : i32
    %c0_i32_0 = arith.constant 0 : i32
    %c0_i32_1 = arith.constant 0 : i32
    return %c0_i32, %c0_i32_0 : i32, i32
  }
  func.func @transform_5(%arg0: i32) -> (i32, i32) {
    %c0_i32 = arith.constant 0 : i32
    %c0_i32_0 = arith.constant 0 : i32
    return %arg0, %c0_i32 : i32, i32
  }
  func.func @transform_6(%arg0: i32) -> (i32, i32, i32) {
    %c0_i32 = arith.constant 0 : i32
    %c0_i32_0 = arith.constant 0 : i32
    %c0_i32_1 = arith.constant 0 : i32
    return %arg0, %c0_i32, %c0_i32_0 : i32, i32, i32
  }
}

module attributes {stable_mosaic.version = 11 : i64} {
  func.func @_bn_relu_mm_residual_kernel(%arg0: i32, %arg1: memref<128x128xf32, #tpu.memory_space<vmem>>, %arg2: memref<1x128xf32, #tpu.memory_space<vmem>>, %arg3: memref<1x128xf32, #tpu.memory_space<vmem>>, %arg4: memref<128x128xbf16, #tpu.memory_space<vmem>>, %arg5: memref<1x128xf32, #tpu.memory_space<vmem>>, %arg6: memref<128x128xf32, #tpu.memory_space<vmem>>, %arg7: memref<128x128xf32, #tpu.memory_space<vmem>>) attributes {dimension_semantics = [#tpu.dimension_semantics<parallel>], iteration_bounds = array<i64: 4>, scalar_prefetch = 0 : i64, scratch_operands = 0 : i64, tpu.core_type = #tpu.core_type<tc>, window_params = [{transform_indices = @transform_0, window_bounds = array<i64: 128, 128>}, {pipeline_mode = #tpu.pipeline_mode<synchronous>, transform_indices = @transform_1, window_bounds = array<i64: 1, 128>}, {pipeline_mode = #tpu.pipeline_mode<synchronous>, transform_indices = @transform_2, window_bounds = array<i64: 1, 128>}, {pipeline_mode = #tpu.pipeline_mode<synchronous>, transform_indices = @transform_3, window_bounds = array<i64: 128, 128>}, {pipeline_mode = #tpu.pipeline_mode<synchronous>, transform_indices = @transform_4, window_bounds = array<i64: 1, 128>}, {transform_indices = @transform_5, window_bounds = array<i64: 128, 128>}, {transform_indices = @transform_6, window_bounds = array<i64: 128, 128>}]} {
    %c0 = arith.constant 0 : index
    %c0_0 = arith.constant 0 : index
    %0 = vector.load %arg1[%c0, %c0_0] : memref<128x128xf32, #tpu.memory_space<vmem>>, vector<128x128xf32>
    %c0_1 = arith.constant 0 : index
    %c0_2 = arith.constant 0 : index
    %1 = vector.load %arg2[%c0_1, %c0_2] : memref<1x128xf32, #tpu.memory_space<vmem>>, vector<1x128xf32>
    %2 = vector.broadcast %1 : vector<1x128xf32> to vector<128x128xf32>
    %3 = arith.mulf %0, %2 : vector<128x128xf32>
    %c0_3 = arith.constant 0 : index
    %c0_4 = arith.constant 0 : index
    %4 = vector.load %arg3[%c0_3, %c0_4] : memref<1x128xf32, #tpu.memory_space<vmem>>, vector<1x128xf32>
    %5 = vector.broadcast %4 : vector<1x128xf32> to vector<128x128xf32>
    %6 = arith.addf %3, %5 : vector<128x128xf32>
    %cst = arith.constant 0.000000e+00 : f32
    %7 = vector.broadcast %cst : f32 to vector<128x128xf32>
    %8 = arith.maximumf %6, %7 : vector<128x128xf32>
    %9 = arith.truncf %8 : vector<128x128xf32> to vector<128x128xbf16>
    %c0_5 = arith.constant 0 : index
    %c0_6 = arith.constant 0 : index
    %10 = vector.load %arg4[%c0_5, %c0_6] : memref<128x128xbf16, #tpu.memory_space<vmem>>, vector<128x128xbf16>
    %cst_7 = arith.constant dense<0.000000e+00> : vector<128x128xf32>
    %11 = tpu.matmul %9, %10, %cst_7 {dimension_numbers = #tpu.dot_dimension_numbers<[1], [0], [0], [1], [0, 0, 1, 1], [], []>} : vector<128x128xbf16>, vector<128x128xbf16>, vector<128x128xf32> -> vector<128x128xf32>
    %c0_8 = arith.constant 0 : index
    %c0_9 = arith.constant 0 : index
    %12 = vector.load %arg5[%c0_8, %c0_9] : memref<1x128xf32, #tpu.memory_space<vmem>>, vector<1x128xf32>
    %13 = vector.broadcast %12 : vector<1x128xf32> to vector<128x128xf32>
    %14 = arith.addf %11, %13 : vector<128x128xf32>
    %c0_10 = arith.constant 0 : index
    %c0_11 = arith.constant 0 : index
    %15 = vector.load %arg6[%c0_10, %c0_11] : memref<128x128xf32, #tpu.memory_space<vmem>>, vector<128x128xf32>
    %16 = arith.addf %14, %15 : vector<128x128xf32>
    %c0_12 = arith.constant 0 : index
    %c0_13 = arith.constant 0 : index
    %17 = vector.load %arg7[%c0_12, %c0_13] : memref<128x128xf32, #tpu.memory_space<vmem>>, vector<128x128xf32>
    tpu.vector_store %arg7[%c0_12, %c0_13], %16 {strides = array<i32>} : memref<128x128xf32, #tpu.memory_space<vmem>>, vector<128x128xf32>,
    return
  }
  func.func @transform_0(%arg0: i32) -> (i32, i32) {
    %c0_i32 = arith.constant 0 : i32
    %c0_i32_0 = arith.constant 0 : i32
    return %arg0, %c0_i32 : i32, i32
  }
  func.func @transform_1(%arg0: i32) -> (i32, i32) {
    %c0_i32 = arith.constant 0 : i32
    %c0_i32_0 = arith.constant 0 : i32
    %c0_i32_1 = arith.constant 0 : i32
    return %c0_i32, %c0_i32_0 : i32, i32
  }
  func.func @transform_2(%arg0: i32) -> (i32, i32) {
    %c0_i32 = arith.constant 0 : i32
    %c0_i32_0 = arith.constant 0 : i32
    %c0_i32_1 = arith.constant 0 : i32
    return %c0_i32, %c0_i32_0 : i32, i32
  }
  func.func @transform_3(%arg0: i32) -> (i32, i32) {
    %c0_i32 = arith.constant 0 : i32
    %c0_i32_0 = arith.constant 0 : i32
    %c0_i32_1 = arith.constant 0 : i32
    return %c0_i32, %c0_i32_0 : i32, i32
  }
  func.func @transform_4(%arg0: i32) -> (i32, i32) {
    %c0_i32 = arith.constant 0 : i32
    %c0_i32_0 = arith.constant 0 : i32
    %c0_i32_1 = arith.constant 0 : i32
    return %c0_i32, %c0_i32_0 : i32, i32
  }
  func.func @transform_5(%arg0: i32) -> (i32, i32) {
    %c0_i32 = arith.constant 0 : i32
    %c0_i32_0 = arith.constant 0 : i32
    return %arg0, %c0_i32 : i32, i32
  }
  func.func @transform_6(%arg0: i32) -> (i32, i32) {
    %c0_i32 = arith.constant 0 : i32
    %c0_i32_0 = arith.constant 0 : i32
    return %arg0, %c0_i32 : i32, i32
  }
}

module attributes {stable_mosaic.version = 11 : i64} {
  func.func @_conv3x3_stats_kernel(%arg0: i32, %arg1: memref<1x290x128xf32, #tpu.memory_space<vmem>>, %arg2: memref<3x3x128x128xbf16, #tpu.memory_space<vmem>>, %arg3: memref<1x128xf32, #tpu.memory_space<vmem>>, %arg4: memref<256x1xf32, #tpu.memory_space<vmem>>, %arg5: memref<1x256x128xf32, #tpu.memory_space<vmem>>, %arg6: memref<1x2x128xf32, #tpu.memory_space<vmem>>) attributes {dimension_semantics = [#tpu.dimension_semantics<parallel>], iteration_bounds = array<i64: 2>, scalar_prefetch = 0 : i64, scratch_operands = 0 : i64, tpu.core_type = #tpu.core_type<tc>, window_params = [{transform_indices = @transform_0, window_bounds = array<i64: 1, 290, 128>}, {pipeline_mode = #tpu.pipeline_mode<synchronous>, transform_indices = @transform_1, window_bounds = array<i64: 3, 3, 128, 128>}, {pipeline_mode = #tpu.pipeline_mode<synchronous>, transform_indices = @transform_2, window_bounds = array<i64: 1, 128>}, {pipeline_mode = #tpu.pipeline_mode<synchronous>, transform_indices = @transform_3, window_bounds = array<i64: 256, 1>}, {transform_indices = @transform_4, window_bounds = array<i64: 1, 256, 128>}, {transform_indices = @transform_5, window_bounds = array<i64: 1, 2, 128>}]} {
    %cst = arith.constant 0.000000e+00 : f32
    %0 = vector.broadcast %cst : f32 to vector<256x128xf32>
    %c0 = arith.constant 0 : index
    %c0_0 = arith.constant 0 : index
    %c0_1 = arith.constant 0 : index
    %1 = vector.load %arg1[%c0, %c0_0, %c0_1] : memref<1x290x128xf32, #tpu.memory_space<vmem>>, vector<1x256x128xf32>
    %2 = vector.shape_cast %1 : vector<1x256x128xf32> to vector<256x128xf32>
    %3 = arith.truncf %2 : vector<256x128xf32> to vector<256x128xbf16>
    %c0_2 = arith.constant 0 : index
    %c0_3 = arith.constant 0 : index
    %c0_4 = arith.constant 0 : index
    %c0_5 = arith.constant 0 : index
    %4 = vector.load %arg2[%c0_2, %c0_3, %c0_4, %c0_5] : memref<3x3x128x128xbf16, #tpu.memory_space<vmem>>, vector<1x1x128x128xbf16>
    %5 = vector.shape_cast %4 : vector<1x1x128x128xbf16> to vector<128x128xbf16>
    %cst_6 = arith.constant dense<0.000000e+00> : vector<256x128xf32>
    %6 = tpu.matmul %3, %5, %cst_6 {dimension_numbers = #tpu.dot_dimension_numbers<[1], [0], [0], [1], [0, 0, 1, 1], [], []>} : vector<256x128xbf16>, vector<128x128xbf16>, vector<256x128xf32> -> vector<256x128xf32>
    %7 = arith.addf %0, %6 : vector<256x128xf32>
    %c0_7 = arith.constant 0 : index
    %c1 = arith.constant 1 : index
    %c0_8 = arith.constant 0 : index
    %8 = vector.load %arg1[%c0_7, %c1, %c0_8] : memref<1x290x128xf32, #tpu.memory_space<vmem>>, vector<1x256x128xf32>
    %9 = vector.shape_cast %8 : vector<1x256x128xf32> to vector<256x128xf32>
    %10 = arith.truncf %9 : vector<256x128xf32> to vector<256x128xbf16>
    %c0_9 = arith.constant 0 : index
    %c1_10 = arith.constant 1 : index
    %c0_11 = arith.constant 0 : index
    %c0_12 = arith.constant 0 : index
    %11 = vector.load %arg2[%c0_9, %c1_10, %c0_11, %c0_12] : memref<3x3x128x128xbf16, #tpu.memory_space<vmem>>, vector<1x1x128x128xbf16>
    %12 = vector.shape_cast %11 : vector<1x1x128x128xbf16> to vector<128x128xbf16>
    %cst_13 = arith.constant dense<0.000000e+00> : vector<256x128xf32>
    %13 = tpu.matmul %10, %12, %cst_13 {dimension_numbers = #tpu.dot_dimension_numbers<[1], [0], [0], [1], [0, 0, 1, 1], [], []>} : vector<256x128xbf16>, vector<128x128xbf16>, vector<256x128xf32> -> vector<256x128xf32>
    %14 = arith.addf %7, %13 : vector<256x128xf32>
    %c0_14 = arith.constant 0 : index
    %c2 = arith.constant 2 : index
    %c0_15 = arith.constant 0 : index
    %15 = vector.load %arg1[%c0_14, %c2, %c0_15] : memref<1x290x128xf32, #tpu.memory_space<vmem>>, vector<1x256x128xf32>
    %16 = vector.shape_cast %15 : vector<1x256x128xf32> to vector<256x128xf32>
    %17 = arith.truncf %16 : vector<256x128xf32> to vector<256x128xbf16>
    %c0_16 = arith.constant 0 : index
    %c2_17 = arith.constant 2 : index
    %c0_18 = arith.constant 0 : index
    %c0_19 = arith.constant 0 : index
    %18 = vector.load %arg2[%c0_16, %c2_17, %c0_18, %c0_19] : memref<3x3x128x128xbf16, #tpu.memory_space<vmem>>, vector<1x1x128x128xbf16>
    %19 = vector.shape_cast %18 : vector<1x1x128x128xbf16> to vector<128x128xbf16>
    %cst_20 = arith.constant dense<0.000000e+00> : vector<256x128xf32>
    %20 = tpu.matmul %17, %19, %cst_20 {dimension_numbers = #tpu.dot_dimension_numbers<[1], [0], [0], [1], [0, 0, 1, 1], [], []>} : vector<256x128xbf16>, vector<128x128xbf16>, vector<256x128xf32> -> vector<256x128xf32>
    %21 = arith.addf %14, %20 : vector<256x128xf32>
    %c0_21 = arith.constant 0 : index
    %c16 = arith.constant 16 : index
    %c0_22 = arith.constant 0 : index
    %22 = vector.load %arg1[%c0_21, %c16, %c0_22] : memref<1x290x128xf32, #tpu.memory_space<vmem>>, vector<1x256x128xf32>
    %23 = vector.shape_cast %22 : vector<1x256x128xf32> to vector<256x128xf32>
    %24 = arith.truncf %23 : vector<256x128xf32> to vector<256x128xbf16>
    %c1_23 = arith.constant 1 : index
    %c0_24 = arith.constant 0 : index
    %c0_25 = arith.constant 0 : index
    %c0_26 = arith.constant 0 : index
    %25 = vector.load %arg2[%c1_23, %c0_24, %c0_25, %c0_26] : memref<3x3x128x128xbf16, #tpu.memory_space<vmem>>, vector<1x1x128x128xbf16>
    %26 = vector.shape_cast %25 : vector<1x1x128x128xbf16> to vector<128x128xbf16>
    %cst_27 = arith.constant dense<0.000000e+00> : vector<256x128xf32>
    %27 = tpu.matmul %24, %26, %cst_27 {dimension_numbers = #tpu.dot_dimension_numbers<[1], [0], [0], [1], [0, 0, 1, 1], [], []>} : vector<256x128xbf16>, vector<128x128xbf16>, vector<256x128xf32> -> vector<256x128xf32>
    %28 = arith.addf %21, %27 : vector<256x128xf32>
    %c0_28 = arith.constant 0 : index
    %c17 = arith.constant 17 : index
    %c0_29 = arith.constant 0 : index
    %29 = vector.load %arg1[%c0_28, %c17, %c0_29] : memref<1x290x128xf32, #tpu.memory_space<vmem>>, vector<1x256x128xf32>
    %30 = vector.shape_cast %29 : vector<1x256x128xf32> to vector<256x128xf32>
    %31 = arith.truncf %30 : vector<256x128xf32> to vector<256x128xbf16>
    %c1_30 = arith.constant 1 : index
    %c1_31 = arith.constant 1 : index
    %c0_32 = arith.constant 0 : index
    %c0_33 = arith.constant 0 : index
    %32 = vector.load %arg2[%c1_30, %c1_31, %c0_32, %c0_33] : memref<3x3x128x128xbf16, #tpu.memory_space<vmem>>, vector<1x1x128x128xbf16>
    %33 = vector.shape_cast %32 : vector<1x1x128x128xbf16> to vector<128x128xbf16>
    %cst_34 = arith.constant dense<0.000000e+00> : vector<256x128xf32>
    %34 = tpu.matmul %31, %33, %cst_34 {dimension_numbers = #tpu.dot_dimension_numbers<[1], [0], [0], [1], [0, 0, 1, 1], [], []>} : vector<256x128xbf16>, vector<128x128xbf16>, vector<256x128xf32> -> vector<256x128xf32>
    %35 = arith.addf %28, %34 : vector<256x128xf32>
    %c0_35 = arith.constant 0 : index
    %c18 = arith.constant 18 : index
    %c0_36 = arith.constant 0 : index
    %36 = vector.load %arg1[%c0_35, %c18, %c0_36] : memref<1x290x128xf32, #tpu.memory_space<vmem>>, vector<1x256x128xf32>
    %37 = vector.shape_cast %36 : vector<1x256x128xf32> to vector<256x128xf32>
    %38 = arith.truncf %37 : vector<256x128xf32> to vector<256x128xbf16>
    %c1_37 = arith.constant 1 : index
    %c2_38 = arith.constant 2 : index
    %c0_39 = arith.constant 0 : index
    %c0_40 = arith.constant 0 : index
    %39 = vector.load %arg2[%c1_37, %c2_38, %c0_39, %c0_40] : memref<3x3x128x128xbf16, #tpu.memory_space<vmem>>, vector<1x1x128x128xbf16>
    %40 = vector.shape_cast %39 : vector<1x1x128x128xbf16> to vector<128x128xbf16>
    %cst_41 = arith.constant dense<0.000000e+00> : vector<256x128xf32>
    %41 = tpu.matmul %38, %40, %cst_41 {dimension_numbers = #tpu.dot_dimension_numbers<[1], [0], [0], [1], [0, 0, 1, 1], [], []>} : vector<256x128xbf16>, vector<128x128xbf16>, vector<256x128xf32> -> vector<256x128xf32>
    %42 = arith.addf %35, %41 : vector<256x128xf32>
    %c0_42 = arith.constant 0 : index
    %c32 = arith.constant 32 : index
    %c0_43 = arith.constant 0 : index
    %43 = vector.load %arg1[%c0_42, %c32, %c0_43] : memref<1x290x128xf32, #tpu.memory_space<vmem>>, vector<1x256x128xf32>
    %44 = vector.shape_cast %43 : vector<1x256x128xf32> to vector<256x128xf32>
    %45 = arith.truncf %44 : vector<256x128xf32> to vector<256x128xbf16>
    %c2_44 = arith.constant 2 : index
    %c0_45 = arith.constant 0 : index
    %c0_46 = arith.constant 0 : index
    %c0_47 = arith.constant 0 : index
    %46 = vector.load %arg2[%c2_44, %c0_45, %c0_46, %c0_47] : memref<3x3x128x128xbf16, #tpu.memory_space<vmem>>, vector<1x1x128x128xbf16>
    %47 = vector.shape_cast %46 : vector<1x1x128x128xbf16> to vector<128x128xbf16>
    %cst_48 = arith.constant dense<0.000000e+00> : vector<256x128xf32>
    %48 = tpu.matmul %45, %47, %cst_48 {dimension_numbers = #tpu.dot_dimension_numbers<[1], [0], [0], [1], [0, 0, 1, 1], [], []>} : vector<256x128xbf16>, vector<128x128xbf16>, vector<256x128xf32> -> vector<256x128xf32>
    %49 = arith.addf %42, %48 : vector<256x128xf32>
    %c0_49 = arith.constant 0 : index
    %c33 = arith.constant 33 : index
    %c0_50 = arith.constant 0 : index
    %50 = vector.load %arg1[%c0_49, %c33, %c0_50] : memref<1x290x128xf32, #tpu.memory_space<vmem>>, vector<1x256x128xf32>
    %51 = vector.shape_cast %50 : vector<1x256x128xf32> to vector<256x128xf32>
    %52 = arith.truncf %51 : vector<256x128xf32> to vector<256x128xbf16>
    %c2_51 = arith.constant 2 : index
    %c1_52 = arith.constant 1 : index
    %c0_53 = arith.constant 0 : index
    %c0_54 = arith.constant 0 : index
    %53 = vector.load %arg2[%c2_51, %c1_52, %c0_53, %c0_54] : memref<3x3x128x128xbf16, #tpu.memory_space<vmem>>, vector<1x1x128x128xbf16>
    %54 = vector.shape_cast %53 : vector<1x1x128x128xbf16> to vector<128x128xbf16>
    %cst_55 = arith.constant dense<0.000000e+00> : vector<256x128xf32>
    %55 = tpu.matmul %52, %54, %cst_55 {dimension_numbers = #tpu.dot_dimension_numbers<[1], [0], [0], [1], [0, 0, 1, 1], [], []>} : vector<256x128xbf16>, vector<128x128xbf16>, vector<256x128xf32> -> vector<256x128xf32>
    %56 = arith.addf %49, %55 : vector<256x128xf32>
    %c0_56 = arith.constant 0 : index
    %c34 = arith.constant 34 : index
    %c0_57 = arith.constant 0 : index
    %57 = vector.load %arg1[%c0_56, %c34, %c0_57] : memref<1x290x128xf32, #tpu.memory_space<vmem>>, vector<1x256x128xf32>
    %58 = vector.shape_cast %57 : vector<1x256x128xf32> to vector<256x128xf32>
    %59 = arith.truncf %58 : vector<256x128xf32> to vector<256x128xbf16>
    %c2_58 = arith.constant 2 : index
    %c2_59 = arith.constant 2 : index
    %c0_60 = arith.constant 0 : index
    %c0_61 = arith.constant 0 : index
    %60 = vector.load %arg2[%c2_58, %c2_59, %c0_60, %c0_61] : memref<3x3x128x128xbf16, #tpu.memory_space<vmem>>, vector<1x1x128x128xbf16>
    %61 = vector.shape_cast %60 : vector<1x1x128x128xbf16> to vector<128x128xbf16>
    %cst_62 = arith.constant dense<0.000000e+00> : vector<256x128xf32>
    %62 = tpu.matmul %59, %61, %cst_62 {dimension_numbers = #tpu.dot_dimension_numbers<[1], [0], [0], [1], [0, 0, 1, 1], [], []>} : vector<256x128xbf16>, vector<128x128xbf16>, vector<256x128xf32> -> vector<256x128xf32>
    %63 = arith.addf %56, %62 : vector<256x128xf32>
    %c0_63 = arith.constant 0 : index
    %c0_64 = arith.constant 0 : index
    %64 = vector.load %arg3[%c0_63, %c0_64] : memref<1x128xf32, #tpu.memory_space<vmem>>, vector<1x128xf32>
    %65 = vector.broadcast %64 : vector<1x128xf32> to vector<256x128xf32>
    %66 = arith.addf %63, %65 : vector<256x128xf32>
    %c0_65 = arith.constant 0 : index
    %c0_66 = arith.constant 0 : index
    %67 = vector.load %arg4[%c0_65, %c0_66] : memref<256x1xf32, #tpu.memory_space<vmem>>, vector<256x1xf32>
    %68 = vector.broadcast %67 : vector<256x1xf32> to vector<256x128xf32>
    %69 = arith.mulf %66, %68 : vector<256x128xf32>
    %c0_67 = arith.constant 0 : index
    %c0_68 = arith.constant 0 : index
    %c0_69 = arith.constant 0 : index
    %70 = vector.load %arg5[%c0_67, %c0_68, %c0_69] : memref<1x256x128xf32, #tpu.memory_space<vmem>>, vector<1x256x128xf32>
    %71 = vector.shape_cast %70 : vector<1x256x128xf32> to vector<256x128xf32>
    %72 = vector.shape_cast %69 : vector<256x128xf32> to vector<1x256x128xf32>
    tpu.vector_store %arg5[%c0_67, %c0_68, %c0_69], %72 {strides = array<i32>} : memref<1x256x128xf32, #tpu.memory_space<vmem>>, vector<1x256x128xf32>,
    %cst_70 = arith.constant dense<0.000000e+00> : vector<128xf32>
    %73 = vector.multi_reduction <add>, %69, %cst_70 [0] : vector<256x128xf32> to vector<128xf32>
    %74 = vector.shape_cast %73 : vector<128xf32> to vector<1x128xf32>
    %75 = arith.mulf %69, %69 : vector<256x128xf32>
    %cst_71 = arith.constant dense<0.000000e+00> : vector<128xf32>
    %76 = vector.multi_reduction <add>, %75, %cst_71 [0] : vector<256x128xf32> to vector<128xf32>
    %77 = vector.shape_cast %76 : vector<128xf32> to vector<1x128xf32>
    %78 = tpu.concatenate %74, %77 in 0 : vector<1x128xf32>, vector<1x128xf32> -> vector<2x128xf32>
    %c0_72 = arith.constant 0 : index
    %c0_73 = arith.constant 0 : index
    %c0_74 = arith.constant 0 : index
    %79 = vector.load %arg6[%c0_72, %c0_73, %c0_74] : memref<1x2x128xf32, #tpu.memory_space<vmem>>, vector<1x2x128xf32>
    %80 = vector.shape_cast %79 : vector<1x2x128xf32> to vector<2x128xf32>
    %81 = vector.shape_cast %78 : vector<2x128xf32> to vector<1x2x128xf32>
    tpu.vector_store %arg6[%c0_72, %c0_73, %c0_74], %81 {strides = array<i32>} : memref<1x2x128xf32, #tpu.memory_space<vmem>>, vector<1x2x128xf32>,
    return
  }
  func.func @transform_0(%arg0: i32) -> (i32, i32, i32) {
    %c0_i32 = arith.constant 0 : i32
    %c0_i32_0 = arith.constant 0 : i32
    %c0_i32_1 = arith.constant 0 : i32
    return %arg0, %c0_i32, %c0_i32_0 : i32, i32, i32
  }
  func.func @transform_1(%arg0: i32) -> (i32, i32, i32, i32) {
    %c0_i32 = arith.constant 0 : i32
    %c0_i32_0 = arith.constant 0 : i32
    %c0_i32_1 = arith.constant 0 : i32
    %c0_i32_2 = arith.constant 0 : i32
    %c0_i32_3 = arith.constant 0 : i32
    return %c0_i32, %c0_i32_0, %c0_i32_1, %c0_i32_2 : i32, i32, i32, i32
  }
  func.func @transform_2(%arg0: i32) -> (i32, i32) {
    %c0_i32 = arith.constant 0 : i32
    %c0_i32_0 = arith.constant 0 : i32
    %c0_i32_1 = arith.constant 0 : i32
    return %c0_i32, %c0_i32_0 : i32, i32
  }
  func.func @transform_3(%arg0: i32) -> (i32, i32) {
    %c0_i32 = arith.constant 0 : i32
    %c0_i32_0 = arith.constant 0 : i32
    %c0_i32_1 = arith.constant 0 : i32
    return %c0_i32, %c0_i32_0 : i32, i32
  }
  func.func @transform_4(%arg0: i32) -> (i32, i32, i32) {
    %c0_i32 = arith.constant 0 : i32
    %c0_i32_0 = arith.constant 0 : i32
    %c0_i32_1 = arith.constant 0 : i32
    return %arg0, %c0_i32, %c0_i32_0 : i32, i32, i32
  }
  func.func @transform_5(%arg0: i32) -> (i32, i32, i32) {
    %c0_i32 = arith.constant 0 : i32
    %c0_i32_0 = arith.constant 0 : i32
    %c0_i32_1 = arith.constant 0 : i32
    return %arg0, %c0_i32, %c0_i32_0 : i32, i32, i32
  }
}

</mosaic_0001>

<llo_original>
// kernel: bottleneck_forward.5
$region0: #{bottleneck_forward.5}
  #allocation0 [shape = 'u32[]', space=smem, size = 0x4, offset = 0x4, fixed_abs, tag = 'smem constant byte address 0x4 - core index']
  #allocation1 [shape = 'u32[144,128]{1,0:T(1,128)}', space=vmem, size = 0x12000, scoped, tag = 'internal scratch']
  %s0 = inlined_call_operand.hbm [shape: f32[512,128], index: 0, kind: input, shape index: {}]
  %s1 = inlined_call_operand.hbm [shape: f32[1,128], index: 1, kind: input, shape index: {}]
  %s2 = inlined_call_operand.hbm [shape: f32[1,128], index: 2, kind: input, shape index: {}]
  %s3 = inlined_call_operand.hbm [shape: bf16[128,128], index: 3, kind: input, shape index: {}]
  %s4 = inlined_call_operand.hbm [shape: f32[1,128], index: 4, kind: input, shape index: {}]
  %s5 = inlined_call_operand.hbm [shape: f32[512,128], index: 5, kind: input, shape index: {}]
  %s6 = inlined_call_operand.hbm [shape: f32[512,128], index: 6, kind: output, shape index: {}]
  %s7 = sld [smem:[#allocation0]]
  $region81: #{bottleneck_forward.5} parent=0
    _
  %s9 = ssub.s32 1, %s7
  %s10 = scalar_select 0, %s9, %s7
  $region1: #{bottleneck_forward.5} parent=0
    #allocation2 [shape = 'u8[131072]{0}', space=vmem, size = 0x20000, scoped, tag = 'input window, operand 0']
    #allocation3 [shape = 's32[2]{0}', space=sflag, size = 0x8, scoped, tag = 'scoped memory for bottleneck_forward.5']
    #allocation4 [shape = 's32[2]{0}', space=sflag, size = 0x8, scoped, tag = 'scoped memory for bottleneck_forward.5']
    #allocation5 [shape = 'u8[512]{0}', space=vmem, size = 0x400, scoped, tag = 'input window, operand 1, single buffered']
    #allocation6 [shape = 's32[1]{0}', space=sflag, size = 0x4, scoped, tag = 'scoped memory for bottleneck_forward.5']
    #allocation7 [shape = 'u8[512]{0}', space=vmem, size = 0x400, scoped, tag = 'input window, operand 2, single buffered']
    #allocation8 [shape = 'u8[32768]{0}', space=vmem, size = 0x8000, scoped, tag = 'input window, operand 3, single buffered']
    #allocation9 [shape = 's32[1]{0}', space=sflag, size = 0x4, scoped, tag = 'scoped memory for bottleneck_forward.5']
    #allocation10 [shape = 'u8[512]{0}', space=vmem, size = 0x400, scoped, tag = 'input window, operand 4, single buffered']
    #allocation11 [shape = 'u8[131072]{0}', space=vmem, size = 0x20000, scoped, tag = 'input window, operand 5']
    #allocation12 [shape = 's32[2]{0}', space=sflag, size = 0x8, scoped, tag = 'scoped memory for bottleneck_forward.5']
    #allocation13 [shape = 'u8[131072]{0}', space=vmem, size = 0x20000, scoped, tag = 'output window, operand 0']
    %11 = vsyncpa [#allocation3], 0
    %s12 = scalar_lea.sflag [#allocation3], 1
    %13 = vsyncpa %s12, 0
    %14 = vsyncpa [#allocation6], 0
    %15 = vsyncpa [#allocation9], 0
    %16 = vsyncpa [#allocation12], 0
    %s17 = scalar_lea.sflag [#allocation12], 1
    %18 = vsyncpa %s17, 0
    %19 = vsyncpa [#allocation4], 0
    %s20 = scalar_lea.sflag [#allocation4], 1
    %21 = vsyncpa %s20, 0
    loop: start=0, step=1, limit=6
    $region2: #{bottleneck_forward.5} parent=1 // loop_pre_header
      _
    $region3: #{bottleneck_forward.5} parent=1 // loop_header
      %s23 = sphi 0, %s27
      %p24 = scmp.ge.s32.totalorder %s23, 6
      %s33 = sphi 0, %s35
      %s36 = sphi 0, %s33
      %s37 = sphi 0, %s36
      %s53 = sphi 0, %s37
      %s57 = sphi 0, %s57
      %s59 = sphi 0, %s57
      %s60 = sphi 0, %s59
      %s74 = sphi 0, %s60
      %s78 = sphi 0, %s78
      %s80 = sphi 0, %s78
      %s81 = sphi 0, %s80
      %s95 = sphi 0, %s81
      %s99 = sphi 0, %s99
      %s101 = sphi 0, %s99
      %s102 = sphi 0, %s101
      %s116 = sphi 0, %s102
      %s120 = sphi 0, %s120
      %s122 = sphi 0, %s120
      %s123 = sphi 0, %s122
      %s137 = sphi 0, %s123
      %s143 = sphi 0, %s145
      %s146 = sphi 0, %s143
      %s147 = sphi 0, %s146
      %s163 = sphi 0, %s147
      %s169 = sphi 0, %s171
      %s172 = sphi 0, %s169
      %s173 = sphi 0, %s172
      %s189 = sphi 0, %s173
    $region4: #{bottleneck_forward.5} parent=1 // loop_header_branch
      %26 = sbr.rel (%p24) target = $region8
    $region5: #{bottleneck_forward.5} parent=1 // loop_body
      %s28 = ssub.s32 %s23, 1
      %s29 = ssub.s32 %s23, 2
      %s30 = sadd.s32 %s23, 1
      %s31 = ssub.s32 %s23, %s30
      %p32 = scmp.eq.s32.totalorder %s31, 0
      %s34 = sadd.s32 %s33, 1
      %s35 = scalar_select %p32, %s33, %s34
      %p38 = pneg %p32
      %p39 = scmp.eq.s32.totalorder %s23, 3
      %p40 = por %p38, %p39
      %p41 = scmp.ne.s32.totalorder %s33, %s36
      %p42 = scmp.eq.s32.totalorder %s23, 0
      %p43 = por %p41, %p42
      %p44 = scmp.ne.s32.totalorder %s33, %s36
      %p45 = scmp.eq.s32.totalorder %s28, 3
      %p46 = por %p44, %p45
      %p47 = scmp.ne.s32.totalorder %s36, %s37
      %p48 = scmp.eq.s32.totalorder %s28, 0
      %p49 = por %p47, %p48
      %p50 = scmp.ne.s32.totalorder %s36, %s37
      %p51 = scmp.eq.s32.totalorder %s29, 3
      %p52 = por %p50, %p51
      %p54 = scmp.ne.s32.totalorder %s37, %s53
      %p55 = scmp.eq.s32.totalorder %s29, 0
      %p56 = por %p54, %p55
      %s58 = sadd.s32 %s57, 1
      %p61 = scmp.eq.s32.totalorder %s23, 3
      %p62 = scmp.ne.s32.totalorder %s57, %s59
      %p63 = scmp.eq.s32.totalorder %s23, 0
      %p64 = por %p62, %p63
      %p65 = scmp.ne.s32.totalorder %s57, %s59
      %p66 = scmp.eq.s32.totalorder %s28, 3
      %p67 = por %p65, %p66
      %p68 = scmp.ne.s32.totalorder %s59, %s60
      %p69 = scmp.eq.s32.totalorder %s28, 0
      %p70 = por %p68, %p69
      %p71 = scmp.ne.s32.totalorder %s59, %s60
      %p72 = scmp.eq.s32.totalorder %s29, 3
      %p73 = por %p71, %p72
      %p75 = scmp.ne.s32.totalorder %s60, %s74
      %p76 = scmp.eq.s32.totalorder %s29, 0
      %p77 = por %p75, %p76
      %s79 = sadd.s32 %s78, 1
      %p82 = scmp.eq.s32.totalorder %s23, 3
      %p83 = scmp.ne.s32.totalorder %s78, %s80
      %p84 = scmp.eq.s32.totalorder %s23, 0
      %p85 = por %p83, %p84
      %p86 = scmp.ne.s32.totalorder %s78, %s80
      %p87 = scmp.eq.s32.totalorder %s28, 3
      %p88 = por %p86, %p87
      %p89 = scmp.ne.s32.totalorder %s80, %s81
      %p90 = scmp.eq.s32.totalorder %s28, 0
      %p91 = por %p89, %p90
      %p92 = scmp.ne.s32.totalorder %s80, %s81
      %p93 = scmp.eq.s32.totalorder %s29, 3
      %p94 = por %p92, %p93
      %p96 = scmp.ne.s32.totalorder %s81, %s95
      %p97 = scmp.eq.s32.totalorder %s29, 0
      %p98 = por %p96, %p97
      %s100 = sadd.s32 %s99, 1
      %p103 = scmp.eq.s32.totalorder %s23, 3
      %p104 = scmp.ne.s32.totalorder %s99, %s101
      %p105 = scmp.eq.s32.totalorder %s23, 0
      %p106 = por %p104, %p105
      %p107 = scmp.ne.s32.totalorder %s99, %s101
      %p108 = scmp.eq.s32.totalorder %s28, 3
      %p109 = por %p107, %p108
      %p110 = scmp.ne.s32.totalorder %s101, %s102
      %p111 = scmp.eq.s32.totalorder %s28, 0
      %p112 = por %p110, %p111
      %p113 = scmp.ne.s32.totalorder %s101, %s102
      %p114 = scmp.eq.s32.totalorder %s29, 3
      %p115 = por %p113, %p114
      %p117 = scmp.ne.s32.totalorder %s102, %s116
      %p118 = scmp.eq.s32.totalorder %s29, 0
      %p119 = por %p117, %p118
      %s121 = sadd.s32 %s120, 1
      %p124 = scmp.eq.s32.totalorder %s23, 3
      %p125 = scmp.ne.s32.totalorder %s120, %s122
      %p126 = scmp.eq.s32.totalorder %s23, 0
      %p127 = por %p125, %p126
      %p128 = scmp.ne.s32.totalorder %s120, %s122
      %p129 = scmp.eq.s32.totalorder %s28, 3
      %p130 = por %p128, %p129
      %p131 = scmp.ne.s32.totalorder %s122, %s123
      %p132 = scmp.eq.s32.totalorder %s28, 0
      %p133 = por %p131, %p132
      %p134 = scmp.ne.s32.totalorder %s122, %s123
      %p135 = scmp.eq.s32.totalorder %s29, 3
      %p136 = por %p134, %p135
      %p138 = scmp.ne.s32.totalorder %s123, %s137
      %p139 = scmp.eq.s32.totalorder %s29, 0
      %p140 = por %p138, %p139
      %s141 = ssub.s32 %s23, %s30
      %p142 = scmp.eq.s32.totalorder %s141, 0
      %s144 = sadd.s32 %s143, 1
      %s145 = scalar_select %p142, %s143, %s144
      %p148 = pneg %p142
      %p149 = scmp.eq.s32.totalorder %s23, 3
      %p150 = por %p148, %p149
      %p151 = scmp.ne.s32.totalorder %s143, %s146
      %p152 = scmp.eq.s32.totalorder %s23, 0
      %p153 = por %p151, %p152
      %p154 = scmp.ne.s32.totalorder %s143, %s146
      %p155 = scmp.eq.s32.totalorder %s28, 3
      %p156 = por %p154, %p155
      %p157 = scmp.ne.s32.totalorder %s146, %s147
      %p158 = scmp.eq.s32.totalorder %s28, 0
      %p159 = por %p157, %p158
      %p160 = scmp.ne.s32.totalorder %s146, %s147
      %p161 = scmp.eq.s32.totalorder %s29, 3
      %p162 = por %p160, %p161
      %p164 = scmp.ne.s32.totalorder %s147, %s163
      %p165 = scmp.eq.s32.totalorder %s29, 0
      %p166 = por %p164, %p165
      %s167 = ssub.s32 %s23, %s30
      %p168 = scmp.eq.s32.totalorder %s167, 0
      %s170 = sadd.s32 %s169, 1
      %s171 = scalar_select %p168, %s169, %s170
      %p174 = pneg %p168
      %p175 = scmp.eq.s32.totalorder %s23, 3
      %p176 = por %p174, %p175
      %p177 = scmp.ne.s32.totalorder %s169, %s172
      %p178 = scmp.eq.s32.totalorder %s23, 0
      %p179 = por %p177, %p178
      %p180 = scmp.ne.s32.totalorder %s169, %s172
      %p181 = scmp.eq.s32.totalorder %s28, 3
      %p182 = por %p180, %p181
      %p183 = scmp.ne.s32.totalorder %s172, %s173
      %p184 = scmp.eq.s32.totalorder %s28, 0
      %p185 = por %p183, %p184
      %p186 = scmp.ne.s32.totalorder %s172, %s173
      %p187 = scmp.eq.s32.totalorder %s29, 3
      %p188 = por %p186, %p187
      %p190 = scmp.ne.s32.totalorder %s173, %s189
      %p191 = scmp.eq.s32.totalorder %s29, 0
      %p192 = por %p190, %p191
      %p193 = scmp.le.s32.totalorder 1, %s23
      %p194 = scmp.lt.s32.totalorder %s23, 5
      %p195 = pnand %p193, %p194
      %p196 = pneg %p195
      // Predicated region
      $region9: #{bottleneck_forward.5} parent=5 // pred_check
        _
      $region10: #{bottleneck_forward.5} parent=5 // pred_check_branch
        %198 = sbr.rel (%p195) target = $region12
      $region11: #{bottleneck_forward.5} parent=5 // pred_region
        %s199 = ssub.s32 %s23, 1
        // Predicated region
        $region13: #{bottleneck_forward.5} parent=11 // pred_check
          %p200 = pneg %p70
        $region14: #{bottleneck_forward.5} parent=11 // pred_check_branch
          %202 = sbr.rel (%p200) target = $region16
        $region15: #{bottleneck_forward.5} parent=11 // pred_region
          %s204 = ssub.s32 16, 16
          %205 = vsyncadd [#allocation6], %s204
          %s207 = sshll.u32 [#allocation5], 4
          %s208 = int_to_ptr.vmem [resolvable:$true] %s207
          %210 = dma.hbm_to_vmem [thread:$0]  %s1, 16, %s208, [#allocation6]
        $region16: #{bottleneck_forward.5} parent=11 // pred_fallthru
          _
        // Predicated region
        $region17: #{bottleneck_forward.5} parent=11 // pred_check
          %p211 = pneg %p91
        $region18: #{bottleneck_forward.5} parent=11 // pred_check_branch
          %213 = sbr.rel (%p211) target = $region20
        $region19: #{bottleneck_forward.5} parent=11 // pred_region
          %s215 = ssub.s32 16, 16
          %216 = vsyncadd [#allocation6], %s215
          %s218 = sshll.u32 [#allocation7], 4
          %s219 = int_to_ptr.vmem [resolvable:$true] %s218
          %221 = dma.hbm_to_vmem [thread:$0]  %s2, 16, %s219, [#allocation6]
        $region20: #{bottleneck_forward.5} parent=11 // pred_fallthru
          _
        // Predicated region
        $region21: #{bottleneck_forward.5} parent=11 // pred_check
          %p222 = pneg %p112
        $region22: #{bottleneck_forward.5} parent=11 // pred_check_branch
          %224 = sbr.rel (%p222) target = $region24
        $region23: #{bottleneck_forward.5} parent=11 // pred_region
          %s226 = ssub.s32 1024, 1024
          %227 = vsyncadd [#allocation9], %s226
          %s228 = sshll.u32 [#allocation8], 4
          %s229 = int_to_ptr.vmem [resolvable:$true] %s228
          %234 = dma.hbm_to_vmem [thread:$0]  %s3, 1024, %s229, [#allocation9], 64, 64, 4
        $region24: #{bottleneck_forward.5} parent=11 // pred_fallthru
          _
        // Predicated region
        $region25: #{bottleneck_forward.5} parent=11 // pred_check
          %p235 = pneg %p133
        $region26: #{bottleneck_forward.5} parent=11 // pred_check_branch
          %237 = sbr.rel (%p235) target = $region28
        $region27: #{bottleneck_forward.5} parent=11 // pred_region
          %s239 = ssub.s32 16, 16
          %240 = vsyncadd [#allocation9], %s239
          %s242 = sshll.u32 [#allocation10], 4
          %s243 = int_to_ptr.vmem [resolvable:$true] %s242
          %245 = dma.hbm_to_vmem [thread:$0]  %s4, 16, %s243, [#allocation9]
        $region28: #{bottleneck_forward.5} parent=11 // pred_fallthru
          _
      $region12: #{bottleneck_forward.5} parent=5 // pred_fallthru
        _
      %p246 = scmp.lt.s32.totalorder %s23, 4
      // Predicated region
      $region29: #{bottleneck_forward.5} parent=5 // pred_check
        %p247 = pneg %p246
      $region30: #{bottleneck_forward.5} parent=5 // pred_check_branch
        %249 = sbr.rel (%p247) target = $region32
      $region31: #{bottleneck_forward.5} parent=5 // pred_region
        // Predicated region
        $region33: #{bottleneck_forward.5} parent=31 // pred_check
          %p250 = pneg %p43
        $region34: #{bottleneck_forward.5} parent=31 // pred_check_branch
          %252 = sbr.rel (%p250) target = $region36
        $region35: #{bottleneck_forward.5} parent=31 // pred_region
          %s253 = sand.u32 %s33, 1
          %s254 = scalar_lea.sflag [#allocation3], %s253
          %s255 = sand.u32 %s33, 1
          %s256 = smul.addr %s255, 128
          %s257 = scalar_lea.vmem [#allocation2], %s256
          %s258 = smul.u32 16, %s23
          %s260 = ssub.s32 2048, 2048
          %261 = vsyncadd %s254, %s260
          %s262 = smul.addr %s258, 128
          %s263 = scalar_lea.hbm %s0, %s262
          %s264 = sshll.u32 %s257, 4
          %s265 = int_to_ptr.vmem [resolvable:$true] %s264
          %270 = dma.hbm_to_vmem [thread:$0]  %s263, 2048, %s265, %s254, 128, 128, 8
        $region36: #{bottleneck_forward.5} parent=31 // pred_fallthru
          _
        // Predicated region
        $region37: #{bottleneck_forward.5} parent=31 // pred_check
          %p271 = pneg %p153
        $region38: #{bottleneck_forward.5} parent=31 // pred_check_branch
          %273 = sbr.rel (%p271) target = $region40
        $region39: #{bottleneck_forward.5} parent=31 // pred_region
          %s274 = sand.u32 %s143, 1
          %s275 = scalar_lea.sflag [#allocation12], %s274
          %s276 = sand.u32 %s143, 1
          %s277 = smul.addr %s276, 128
          %s278 = scalar_lea.vmem [#allocation11], %s277
          %s279 = smul.u32 16, %s23
          %s281 = ssub.s32 2048, 2048
          %282 = vsyncadd %s275, %s281
          %s283 = smul.addr %s279, 128
          %s284 = scalar_lea.hbm %s5, %s283
          %s285 = sshll.u32 %s278, 4
          %s286 = int_to_ptr.vmem [resolvable:$true] %s285
          %291 = dma.hbm_to_vmem [thread:$0]  %s284, 2048, %s286, %s275, 128, 128, 8
        $region40: #{bottleneck_forward.5} parent=31 // pred_fallthru
          _
      $region32: #{bottleneck_forward.5} parent=5 // pred_fallthru
        _
      %p292 = scmp.le.s32.totalorder 1, %s23
      %p293 = scmp.lt.s32.totalorder %s23, 5
      %p294 = pnand %p292, %p293
      %p295 = pneg %p294
      // Predicated region
      $region41: #{bottleneck_forward.5} parent=5 // pred_check
        _
      $region42: #{bottleneck_forward.5} parent=5 // pred_check_branch
        %297 = sbr.rel (%p294) target = $region44
      $region43: #{bottleneck_forward.5} parent=5 // pred_region
        %s298 = ssub.s32 %s23, 1
        %s299 = sand.u32 %s36, 1
        %s300 = scalar_lea.sflag [#allocation3], %s299
        %s301 = sand.u32 %s36, 1
        %s302 = smul.addr %s301, 128
        %s303 = scalar_lea.vmem [#allocation2], %s302
        // Predicated region
        $region45: #{bottleneck_forward.5} parent=43 // pred_check
          %p304 = pneg %p49
        $region46: #{bottleneck_forward.5} parent=43 // pred_check_branch
          %306 = sbr.rel (%p304) target = $region48
        $region47: #{bottleneck_forward.5} parent=43 // pred_region
          %307 = dma.done %s300, 2048
        $region48: #{bottleneck_forward.5} parent=43 // pred_fallthru
          _
        // Predicated region
        $region49: #{bottleneck_forward.5} parent=43 // pred_check
          %p308 = pneg %p70
        $region50: #{bottleneck_forward.5} parent=43 // pred_check_branch
          %310 = sbr.rel (%p308) target = $region52
        $region51: #{bottleneck_forward.5} parent=43 // pred_region
          %311 = dma.done [#allocation6], 16
        $region52: #{bottleneck_forward.5} parent=43 // pred_fallthru
          _
        // Predicated region
        $region53: #{bottleneck_forward.5} parent=43 // pred_check
          %p312 = pneg %p91
        $region54: #{bottleneck_forward.5} parent=43 // pred_check_branch
          %314 = sbr.rel (%p312) target = $region56
        $region55: #{bottleneck_forward.5} parent=43 // pred_region
          %315 = dma.done [#allocation6], 16
        $region56: #{bottleneck_forward.5} parent=43 // pred_fallthru
          _
        // Predicated region
        $region57: #{bottleneck_forward.5} parent=43 // pred_check
          %p316 = pneg %p112
        $region58: #{bottleneck_forward.5} parent=43 // pred_check_branch
          %318 = sbr.rel (%p316) target = $region60
        $region59: #{bottleneck_forward.5} parent=43 // pred_region
          %319 = dma.done [#allocation9], 1024
        $region60: #{bottleneck_forward.5} parent=43 // pred_fallthru
          _
        // Predicated region
        $region61: #{bottleneck_forward.5} parent=43 // pred_check
          %p320 = pneg %p133
        $region62: #{bottleneck_forward.5} parent=43 // pred_check_branch
          %322 = sbr.rel (%p320) target = $region64
        $region63: #{bottleneck_forward.5} parent=43 // pred_region
          %323 = dma.done [#allocation9], 16
        $region64: #{bottleneck_forward.5} parent=43 // pred_fallthru
          _
        %s324 = sand.u32 %s146, 1
        %s325 = scalar_lea.sflag [#allocation12], %s324
        %s326 = sand.u32 %s146, 1
        %s327 = smul.addr %s326, 128
        %s328 = scalar_lea.vmem [#allocation11], %s327
        // Predicated region
        $region65: #{bottleneck_forward.5} parent=43 // pred_check
          %p329 = pneg %p159
        $region66: #{bottleneck_forward.5} parent=43 // pred_check_branch
          %331 = sbr.rel (%p329) target = $region68
        $region67: #{bottleneck_forward.5} parent=43 // pred_region
          %332 = dma.done %s325, 2048
        $region68: #{bottleneck_forward.5} parent=43 // pred_fallthru
          _
        %s333 = sand.u32 %s36, 1
        %s334 = scalar_lea.sflag [#allocation3], %s333
        %s335 = sand.u32 %s36, 1
        %s336 = smul.addr %s335, 128
        %s337 = scalar_lea.vmem [#allocation2], %s336
        %p338 = pneg %p49
        %p339 = pneg %p46
        %p340 = pneg %p70
        %p341 = pneg %p67
        %p342 = pneg %p91
        %p343 = pneg %p88
        %p344 = pneg %p112
        %p345 = pneg %p109
        %p346 = pneg %p133
        %p347 = pneg %p130
        %s348 = sand.u32 %s146, 1
        %s349 = scalar_lea.sflag [#allocation12], %s348
        %s350 = sand.u32 %s146, 1
        %s351 = smul.addr %s350, 128
        %s352 = scalar_lea.vmem [#allocation11], %s351
        %p353 = pneg %p159
        %p354 = pneg %p156
        %p355 = pneg %p185
        %p356 = pneg %p182
        %s357 = sand.u32 %s172, 1
        %s358 = scalar_lea.sflag [#allocation4], %s357
        %s359 = sand.u32 %s172, 1
        %s360 = smul.addr %s359, 128
        %s361 = scalar_lea.vmem [#allocation13], %s360
        %s362 = smul.u32 16, %s28
        %s363 = smul.u32 16, %s28
        %s364 = smul.u32 16, %s28
        %v366 = vld [vmem:[%s303] sm:$0xff]
        %v367 = vld [vmem:[%s303 + $0x8] sm:$0xff]
        %v368 = vld [vmem:[%s303 + $0x10] sm:$0xff]
        %v369 = vld [vmem:[%s303 + $0x18] sm:$0xff]
        %v370 = vld [vmem:[%s303 + $0x20] sm:$0xff]
        %v371 = vld [vmem:[%s303 + $0x28] sm:$0xff]
        %v372 = vld [vmem:[%s303 + $0x30] sm:$0xff]
        %v373 = vld [vmem:[%s303 + $0x38] sm:$0xff]
        %v374 = vld [vmem:[%s303 + $0x40] sm:$0xff]
        %v375 = vld [vmem:[%s303 + $0x48] sm:$0xff]
        %v376 = vld [vmem:[%s303 + $0x50] sm:$0xff]
        %v377 = vld [vmem:[%s303 + $0x58] sm:$0xff]
        %v378 = vld [vmem:[%s303 + $0x60] sm:$0xff]
        %v379 = vld [vmem:[%s303 + $0x68] sm:$0xff]
        %v380 = vld [vmem:[%s303 + $0x70] sm:$0xff]
        %v381 = vld [vmem:[%s303 + $0x78] sm:$0xff]
        %v382 = vld [vmem:[#allocation5] sm:$0x1]
        %v384 = vlaneseq
        %v385 = vshrl.u32 %v384, 7
        %v386 = vsub.s32 0, %v385
        %v387 = vrot.slane %v382, %v386
        %v389 = vmul.f32 %v366, %v387
        %v390 = vmul.f32 %v367, %v387
        %v391 = vmul.f32 %v368, %v387
        %v392 = vmul.f32 %v369, %v387
        %v393 = vmul.f32 %v370, %v387
        %v394 = vmul.f32 %v371, %v387
        %v395 = vmul.f32 %v372, %v387
        %v396 = vmul.f32 %v373, %v387
        %v397 = vmul.f32 %v374, %v387
        %v398 = vmul.f32 %v375, %v387
        %v399 = vmul.f32 %v376, %v387
        %v400 = vmul.f32 %v377, %v387
        %v401 = vmul.f32 %v378, %v387
        %v402 = vmul.f32 %v379, %v387
        %v403 = vmul.f32 %v380, %v387
        %v404 = vmul.f32 %v381, %v387
        %v405 = vld [vmem:[#allocation7] sm:$0x1]
        %v407 = vlaneseq
        %v408 = vshrl.u32 %v407, 7
        %v409 = vsub.s32 0, %v408
        %v410 = vrot.slane %v405, %v409
        %v412 = vadd.f32 %v389, %v410
        %v413 = vadd.f32 %v390, %v410
        %v414 = vadd.f32 %v391, %v410
        %v415 = vadd.f32 %v392, %v410
        %v416 = vadd.f32 %v393, %v410
        %v417 = vadd.f32 %v394, %v410
        %v418 = vadd.f32 %v395, %v410
        %v419 = vadd.f32 %v396, %v410
        %v420 = vadd.f32 %v397, %v410
        %v421 = vadd.f32 %v398, %v410
        %v422 = vadd.f32 %v399, %v410
        %v423 = vadd.f32 %v400, %v410
        %v424 = vadd.f32 %v401, %v410
        %v425 = vadd.f32 %v402, %v410
        %v426 = vadd.f32 %v403, %v410
        %v427 = vadd.f32 %v404, %v410
        %v428 = vmax.f32 %v412, 0.0
        %v429 = vmax.f32 %v413, 0.0
        %v430 = vmax.f32 %v414, 0.0
        %v431 = vmax.f32 %v415, 0.0
        %v432 = vmax.f32 %v416, 0.0
        %v433 = vmax.f32 %v417, 0.0
        %v434 = vmax.f32 %v418, 0.0
        %v435 = vmax.f32 %v419, 0.0
        %v436 = vmax.f32 %v420, 0.0
        %v437 = vmax.f32 %v421, 0.0
        %v438 = vmax.f32 %v422, 0.0
        %v439 = vmax.f32 %v423, 0.0
        %v440 = vmax.f32 %v424, 0.0
        %v441 = vmax.f32 %v425, 0.0
        %v442 = vmax.f32 %v426, 0.0
        %v443 = vmax.f32 %v427, 0.0
        %v444 = vpack.c.bf16 %v429, %v428
        %v445 = vpack.c.bf16 %v431, %v430
        %v446 = vpack.c.bf16 %v433, %v432
        %v447 = vpack.c.bf16 %v435, %v434
        %v448 = vpack.c.bf16 %v437, %v436
        %v449 = vpack.c.bf16 %v439, %v438
        %v450 = vpack.c.bf16 %v441, %v440
        %v451 = vpack.c.bf16 %v443, %v442
        %v452 = vld [vmem:[#allocation8] sm:$0xf]
        %v453 = vld [vmem:[#allocation8 + $0x4] sm:$0xf]
        %v454 = vld [vmem:[#allocation8 + $0x8] sm:$0xf]
        %v455 = vld [vmem:[#allocation8 + $0xc] sm:$0xf]
        %v456 = vld [vmem:[#allocation8 + $0x10] sm:$0xf]
        %v457 = vld [vmem:[#allocation8 + $0x14] sm:$0xf]
        %v458 = vld [vmem:[#allocation8 + $0x18] sm:$0xf]
        %v459 = vld [vmem:[#allocation8 + $0x1c] sm:$0xf]
        %v460 = vld [vmem:[#allocation8 + $0x20] sm:$0xf]
        %v461 = vld [vmem:[#allocation8 + $0x24] sm:$0xf]
        %v462 = vld [vmem:[#allocation8 + $0x28] sm:$0xf]
        %v463 = vld [vmem:[#allocation8 + $0x2c] sm:$0xf]
        %v464 = vld [vmem:[#allocation8 + $0x30] sm:$0xf]
        %v465 = vld [vmem:[#allocation8 + $0x34] sm:$0xf]
        %v466 = vld [vmem:[#allocation8 + $0x38] sm:$0xf]
        %v467 = vld [vmem:[#allocation8 + $0x3c] sm:$0xf]
        %v468 = vld [vmem:[#allocation10] sm:$0x1]
        %v470 = vlaneseq
        %v471 = vshrl.u32 %v470, 7
        %v472 = vsub.s32 0, %v471
        %v473 = vrot.slane %v468, %v472
        %v491 = vunpack.c.l.b16 %v452
        %v492 = vunpack.c.l.b16 %v453
        %v493 = vunpack.c.l.b16 %v454
        %v494 = vunpack.c.l.b16 %v455
        %v495 = vunpack.c.l.b16 %v456
        %v496 = vunpack.c.l.b16 %v457
        %v497 = vunpack.c.l.b16 %v458
        %v498 = vunpack.c.l.b16 %v459
        %v499 = vunpack.c.l.b16 %v460
        %v500 = vunpack.c.l.b16 %v461
        %v501 = vunpack.c.l.b16 %v462
        %v502 = vunpack.c.l.b16 %v463
        %v503 = vunpack.c.l.b16 %v464
        %v504 = vunpack.c.l.b16 %v465
        %v505 = vunpack.c.l.b16 %v466
        %v506 = vunpack.c.l.b16 %v467
        %v507 = vpack.c.b16 %v492, %v491
        %v508 = vpack.c.b16 %v494, %v493
        %v509 = vpack.c.b16 %v496, %v495
        %v510 = vpack.c.b16 %v498, %v497
        %v511 = vpack.c.b16 %v500, %v499
        %v512 = vpack.c.b16 %v502, %v501
        %v513 = vpack.c.b16 %v504, %v503
        %v514 = vpack.c.b16 %v506, %v505
        %523 = vmatprep.subr.bf16.mxu0 0
        %524 = vmatpush1.bf16.msra.mxu0 %v507
        %525 = vmatprep.subr.bf16.mxu0 0
        %526 = vmatpush1.bf16.msra.mxu0 %v508
        %527 = vmatprep.subr.bf16.mxu0 0
        %528 = vmatpush1.bf16.msra.mxu0 %v509
        %529 = vmatprep.subr.bf16.mxu0 0
        %530 = vmatpush1.bf16.msra.mxu0 %v510
        %531 = vmatprep.subr.bf16.mxu0 0
        %532 = vmatpush1.bf16.msra.mxu0 %v511
        %533 = vmatprep.subr.bf16.mxu0 0
        %534 = vmatpush1.bf16.msra.mxu0 %v512
        %535 = vmatprep.subr.bf16.mxu0 0
        %536 = vmatpush1.bf16.msra.mxu0 %v513
        %537 = vmatprep.subr.bf16.mxu0 0
        %538 = vmatpush1.bf16.msra.mxu0 %v514
        %539 = vmatprep.subr.bf16.mxu0 0
        %540 = vmatpush1.bf16.msra.mxu0 0
        %541 = vmatprep.subr.bf16.mxu0 0
        %542 = vmatpush1.bf16.msra.mxu0 0
        %543 = vmatprep.subr.bf16.mxu0 0
        %544 = vmatpush1.bf16.msra.mxu0 0
        %545 = vmatprep.subr.bf16.mxu0 0
        %546 = vmatpush1.bf16.msra.mxu0 0
        %547 = vmatprep.subr.bf16.mxu0 0
        %548 = vmatpush1.bf16.msra.mxu0 0
        %549 = vmatprep.subr.bf16.mxu0 0
        %550 = vmatpush1.bf16.msra.mxu0 0
        %551 = vmatprep.subr.bf16.mxu0 0
        %552 = vmatpush1.bf16.msra.mxu0 0
        %553 = vmatprep.subr.bf16.mxu0 0
        %554 = vmatpush1.bf16.msra.mxu0 0
        %555 = vmatprep.mubr.bf16.mxu0 0
        %556 = vmatmul.mubr.bf16.gmra.mrb[0].mxu0 %v444
        %v557 = vpop.f32.mrb[0].mxu0
        %v558 = vadd.f32 %v473, %v557
        %v559 = vpop.f32.mrb[0].mxu0
        %v560 = vpop.f32.mrb[0].mxu0
        %v561 = vadd.f32 %v473, %v560
        %v562 = vpop.f32.mrb[0].mxu0
        %563 = vmatprep.mubr.bf16.mxu0 0
        %564 = vmatmul.mubr.bf16.gmra.mrb[0].mxu0 %v445
        %v565 = vpop.f32.mrb[0].mxu0
        %v566 = vadd.f32 %v473, %v565
        %v567 = vpop.f32.mrb[0].mxu0
        %v568 = vpop.f32.mrb[0].mxu0
        %v569 = vadd.f32 %v473, %v568
        %v570 = vpop.f32.mrb[0].mxu0
        %571 = vmatprep.mubr.bf16.mxu0 0
        %572 = vmatmul.mubr.bf16.gmra.mrb[0].mxu0 %v446
        %v573 = vpop.f32.mrb[0].mxu0
        %v574 = vadd.f32 %v473, %v573
        %v575 = vpop.f32.mrb[0].mxu0
        %v576 = vpop.f32.mrb[0].mxu0
        %v577 = vadd.f32 %v473, %v576
        %v578 = vpop.f32.mrb[0].mxu0
        %579 = vmatprep.mubr.bf16.mxu0 0
        %580 = vmatmul.mubr.bf16.gmra.mrb[0].mxu0 %v447
        %v581 = vpop.f32.mrb[0].mxu0
        %v582 = vadd.f32 %v473, %v581
        %v583 = vpop.f32.mrb[0].mxu0
        %v584 = vpop.f32.mrb[0].mxu0
        %v585 = vadd.f32 %v473, %v584
        %v586 = vpop.f32.mrb[0].mxu0
        %587 = vmatprep.mubr.bf16.mxu0 0
        %588 = vmatmul.mubr.bf16.gmra.mrb[0].mxu0 %v448
        %v589 = vpop.f32.mrb[0].mxu0
        %v590 = vadd.f32 %v473, %v589
        %v591 = vpop.f32.mrb[0].mxu0
        %v592 = vpop.f32.mrb[0].mxu0
        %v593 = vadd.f32 %v473, %v592
        %v594 = vpop.f32.mrb[0].mxu0
        %595 = vmatprep.mubr.bf16.mxu0 0
        %596 = vmatmul.mubr.bf16.gmra.mrb[0].mxu0 %v449
        %v597 = vpop.f32.mrb[0].mxu0
        %v598 = vadd.f32 %v473, %v597
        %v599 = vpop.f32.mrb[0].mxu0
        %v600 = vpop.f32.mrb[0].mxu0
        %v601 = vadd.f32 %v473, %v600
        %v602 = vpop.f32.mrb[0].mxu0
        %603 = vmatprep.mubr.bf16.mxu0 0
        %604 = vmatmul.mubr.bf16.gmra.mrb[0].mxu0 %v450
        %v605 = vpop.f32.mrb[0].mxu0
        %v606 = vadd.f32 %v473, %v605
        %v607 = vpop.f32.mrb[0].mxu0
        %v608 = vpop.f32.mrb[0].mxu0
        %v609 = vadd.f32 %v473, %v608
        %v610 = vpop.f32.mrb[0].mxu0
        %611 = vmatprep.mubr.bf16.mxu0 0
        %612 = vmatmul.mubr.bf16.gmra.mrb[0].mxu0 %v451
        %v613 = vpop.f32.mrb[0].mxu0
        %v614 = vadd.f32 %v473, %v613
        %v615 = vpop.f32.mrb[0].mxu0
        %v616 = vpop.f32.mrb[0].mxu0
        %v617 = vadd.f32 %v473, %v616
        %v618 = vpop.f32.mrb[0].mxu0
        %619 = vdwg.mxu0
        %v620 = vld [vmem:[%s328] sm:$0xff]
        %v621 = vld [vmem:[%s328 + $0x8] sm:$0xff]
        %v622 = vld [vmem:[%s328 + $0x10] sm:$0xff]
        %v623 = vld [vmem:[%s328 + $0x18] sm:$0xff]
        %v624 = vld [vmem:[%s328 + $0x20] sm:$0xff]
        %v625 = vld [vmem:[%s328 + $0x28] sm:$0xff]
        %v626 = vld [vmem:[%s328 + $0x30] sm:$0xff]
        %v627 = vld [vmem:[%s328 + $0x38] sm:$0xff]
        %v628 = vld [vmem:[%s328 + $0x40] sm:$0xff]
        %v629 = vld [vmem:[%s328 + $0x48] sm:$0xff]
        %v630 = vld [vmem:[%s328 + $0x50] sm:$0xff]
        %v631 = vld [vmem:[%s328 + $0x58] sm:$0xff]
        %v632 = vld [vmem:[%s328 + $0x60] sm:$0xff]
        %v633 = vld [vmem:[%s328 + $0x68] sm:$0xff]
        %v634 = vld [vmem:[%s328 + $0x70] sm:$0xff]
        %v635 = vld [vmem:[%s328 + $0x78] sm:$0xff]
        %v636 = vadd.f32 %v558, %v620
        %v637 = vadd.f32 %v561, %v621
        %v638 = vadd.f32 %v566, %v622
        %v639 = vadd.f32 %v569, %v623
        %v640 = vadd.f32 %v574, %v624
        %v641 = vadd.f32 %v577, %v625
        %v642 = vadd.f32 %v582, %v626
        %v643 = vadd.f32 %v585, %v627
        %v644 = vadd.f32 %v590, %v628
        %v645 = vadd.f32 %v593, %v629
        %v646 = vadd.f32 %v598, %v630
        %v647 = vadd.f32 %v601, %v631
        %v648 = vadd.f32 %v606, %v632
        %v649 = vadd.f32 %v609, %v633
        %v650 = vadd.f32 %v614, %v634
        %v651 = vadd.f32 %v617, %v635
        %652 = vst [vmem:[%s361] sm:$0xff] %v636
        %653 = vst [vmem:[%s361 + $0x8] sm:$0xff] %v637
        %654 = vst [vmem:[%s361 + $0x10] sm:$0xff] %v638
        %655 = vst [vmem:[%s361 + $0x18] sm:$0xff] %v639
        %656 = vst [vmem:[%s361 + $0x20] sm:$0xff] %v640
        %657 = vst [vmem:[%s361 + $0x28] sm:$0xff] %v641
        %658 = vst [vmem:[%s361 + $0x30] sm:$0xff] %v642
        %659 = vst [vmem:[%s361 + $0x38] sm:$0xff] %v643
        %660 = vst [vmem:[%s361 + $0x40] sm:$0xff] %v644
        %661 = vst [vmem:[%s361 + $0x48] sm:$0xff] %v645
        %662 = vst [vmem:[%s361 + $0x50] sm:$0xff] %v646
        %663 = vst [vmem:[%s361 + $0x58] sm:$0xff] %v647
        %664 = vst [vmem:[%s361 + $0x60] sm:$0xff] %v648
        %665 = vst [vmem:[%s361 + $0x68] sm:$0xff] %v649
        %666 = vst [vmem:[%s361 + $0x70] sm:$0xff] %v650
        %667 = vst [vmem:[%s361 + $0x78] sm:$0xff] %v651
        %s668 = sand.u32 %s172, 1
        %s669 = scalar_lea.sflag [#allocation4], %s668
        %s670 = sand.u32 %s172, 1
        %s671 = smul.addr %s670, 128
        %s672 = scalar_lea.vmem [#allocation13], %s671
        // Predicated region
        $region69: #{bottleneck_forward.5} parent=43 // pred_check
          %p673 = pneg %p182
        $region70: #{bottleneck_forward.5} parent=43 // pred_check_branch
          %675 = sbr.rel (%p673) target = $region72
        $region71: #{bottleneck_forward.5} parent=43 // pred_region
          %s676 = smul.u32 16, %s28
          %s678 = ssub.s32 2048, 2048
          %679 = vsyncadd %s669, %s678
          %s680 = smul.addr %s676, 128
          %s681 = scalar_lea.hbm %s6, %s680
          %s682 = sshll.u32 %s672, 4
          %s683 = int_to_ptr.vmem [resolvable:$true] %s682
          %688 = dma.vmem_to_hbm [thread:$0]  %s683, 2048, %s681, %s669, 128, 128, 8
        $region72: #{bottleneck_forward.5} parent=43 // pred_fallthru
          _
      $region44: #{bottleneck_forward.5} parent=5 // pred_fallthru
        _
      %p689 = scmp.le.s32.totalorder 2, %s23
      // Predicated region
      $region73: #{bottleneck_forward.5} parent=5 // pred_check
        %p690 = pneg %p689
      $region74: #{bottleneck_forward.5} parent=5 // pred_check_branch
        %692 = sbr.rel (%p690) target = $region76
      $region75: #{bottleneck_forward.5} parent=5 // pred_region
        %s693 = ssub.s32 %s23, 2
        // Predicated region
        $region77: #{bottleneck_forward.5} parent=75 // pred_check
          %p694 = pneg %p188
        $region78: #{bottleneck_forward.5} parent=75 // pred_check_branch
          %696 = sbr.rel (%p694) target = $region80
        $region79: #{bottleneck_forward.5} parent=75 // pred_region
          %s697 = sand.u32 %s173, 1
          %s698 = scalar_lea.sflag [#allocation4], %s697
          %s699 = sand.u32 %s173, 1
          %s700 = smul.addr %s699, 128
          %s701 = scalar_lea.vmem [#allocation13], %s700
          %702 = dma.done %s698, 2048
        $region80: #{bottleneck_forward.5} parent=75 // pred_fallthru
          _
      $region76: #{bottleneck_forward.5} parent=5 // pred_fallthru
        _
    $region6: #{bottleneck_forward.5} parent=1 // loop_footer
      %s27 = sadd.s32 1, %s23
    $region7: #{bottleneck_forward.5} parent=1 // loop_footer_branch
      %22 = sbr.rel target = $region3
    $region8: #{bottleneck_forward.5} parent=1 // loop_exit
      _
    %703 = vsyncpa [#allocation3], 1
    %s704 = scalar_lea.sflag [#allocation3], 1
    %705 = vsyncpa %s704, 1
    %706 = vsyncpa [#allocation6], 1
    %707 = vsyncpa [#allocation9], 1
    %708 = vsyncpa [#allocation12], 1
    %s709 = scalar_lea.sflag [#allocation12], 1
    %710 = vsyncpa %s709, 1
    %711 = vsyncpa [#allocation4], 1
    %s712 = scalar_lea.sflag [#allocation4], 1
    %713 = vsyncpa %s712, 1

// kernel: bottleneck_forward.3
$region0: #{bottleneck_forward.3}
  #allocation0 [shape = 'u32[]', space=smem, size = 0x4, offset = 0x4, fixed_abs, tag = 'smem constant byte address 0x4 - core index']
  #allocation1 [shape = 'u32[144,128]{1,0:T(1,128)}', space=vmem, size = 0x12000, scoped, tag = 'internal scratch']
  %s0 = inlined_call_operand.hbm [shape: f32[512,128], index: 0, kind: input, shape index: {}]
  %s1 = inlined_call_operand.hbm [shape: f32[1,128], index: 1, kind: input, shape index: {}]
  %s2 = inlined_call_operand.hbm [shape: f32[1,128], index: 2, kind: input, shape index: {}]
  %s3 = inlined_call_operand.hbm [shape: bf16[128,128], index: 3, kind: input, shape index: {}]
  %s4 = inlined_call_operand.hbm [shape: f32[1,128], index: 4, kind: input, shape index: {}]
  %s5 = inlined_call_operand.hbm [shape: f32[512,128], index: 5, kind: output, shape index: {0}]
  %s6 = inlined_call_operand.hbm [shape: f32[4,2,128], index: 6, kind: output, shape index: {1}]
  %7 = xla_tuple %s5, %s6
  %s8 = sld [smem:[#allocation0]]
  $region81: #{bottleneck_forward.3} parent=0
    _
  %s10 = ssub.s32 1, %s8
  %s11 = scalar_select 0, %s10, %s8
  $region1: #{bottleneck_forward.3} parent=0
    #allocation2 [shape = 'u8[131072]{0}', space=vmem, size = 0x20000, scoped, tag = 'input window, operand 0']
    #allocation3 [shape = 's32[2]{0}', space=sflag, size = 0x8, scoped, tag = 'scoped memory for bottleneck_forward.3']
    #allocation4 [shape = 's32[2]{0}', space=sflag, size = 0x8, scoped, tag = 'scoped memory for bottleneck_forward.3']
    #allocation5 [shape = 'u8[512]{0}', space=vmem, size = 0x400, scoped, tag = 'input window, operand 1, single buffered']
    #allocation6 [shape = 's32[1]{0}', space=sflag, size = 0x4, scoped, tag = 'scoped memory for bottleneck_forward.3']
    #allocation7 [shape = 'u8[512]{0}', space=vmem, size = 0x400, scoped, tag = 'input window, operand 2, single buffered']
    #allocation8 [shape = 'u8[32768]{0}', space=vmem, size = 0x8000, scoped, tag = 'input window, operand 3, single buffered']
    #allocation9 [shape = 's32[1]{0}', space=sflag, size = 0x4, scoped, tag = 'scoped memory for bottleneck_forward.3']
    #allocation10 [shape = 'u8[512]{0}', space=vmem, size = 0x400, scoped, tag = 'input window, operand 4, single buffered']
    #allocation11 [shape = 'u8[131072]{0}', space=vmem, size = 0x20000, scoped, tag = 'output window, operand 0']
    #allocation12 [shape = 'u8[2048]{0}', space=vmem, size = 0x800, scoped, tag = 'output window, operand 1']
    #allocation13 [shape = 's32[2]{0}', space=sflag, size = 0x8, scoped, tag = 'scoped memory for bottleneck_forward.3']
    %12 = vsyncpa [#allocation3], 0
    %s13 = scalar_lea.sflag [#allocation3], 1
    %14 = vsyncpa %s13, 0
    %15 = vsyncpa [#allocation6], 0
    %16 = vsyncpa [#allocation9], 0
    %17 = vsyncpa [#allocation4], 0
    %s18 = scalar_lea.sflag [#allocation4], 1
    %19 = vsyncpa %s18, 0
    %20 = vsyncpa [#allocation13], 0
    %s21 = scalar_lea.sflag [#allocation13], 1
    %22 = vsyncpa %s21, 0
    loop: start=0, step=1, limit=6
    $region2: #{bottleneck_forward.3} parent=1 // loop_pre_header
      _
    $region3: #{bottleneck_forward.3} parent=1 // loop_header
      %s24 = sphi 0, %s28
      %p25 = scmp.ge.s32.totalorder %s24, 6
      %s34 = sphi 0, %s36
      %s37 = sphi 0, %s34
      %s38 = sphi 0, %s37
      %s54 = sphi 0, %s38
      %s58 = sphi 0, %s58
      %s60 = sphi 0, %s58
      %s61 = sphi 0, %s60
      %s75 = sphi 0, %s61
      %s79 = sphi 0, %s79
      %s81 = sphi 0, %s79
      %s82 = sphi 0, %s81
      %s96 = sphi 0, %s82
      %s100 = sphi 0, %s100
      %s102 = sphi 0, %s100
      %s103 = sphi 0, %s102
      %s117 = sphi 0, %s103
      %s121 = sphi 0, %s121
      %s123 = sphi 0, %s121
      %s124 = sphi 0, %s123
      %s138 = sphi 0, %s124
      %s144 = sphi 0, %s146
      %s147 = sphi 0, %s144
      %s148 = sphi 0, %s147
      %s164 = sphi 0, %s148
      %s170 = sphi 0, %s172
      %s173 = sphi 0, %s170
      %s174 = sphi 0, %s173
      %s190 = sphi 0, %s174
    $region4: #{bottleneck_forward.3} parent=1 // loop_header_branch
      %27 = sbr.rel (%p25) target = $region8
    $region5: #{bottleneck_forward.3} parent=1 // loop_body
      %s29 = ssub.s32 %s24, 1
      %s30 = ssub.s32 %s24, 2
      %s31 = sadd.s32 %s24, 1
      %s32 = ssub.s32 %s24, %s31
      %p33 = scmp.eq.s32.totalorder %s32, 0
      %s35 = sadd.s32 %s34, 1
      %s36 = scalar_select %p33, %s34, %s35
      %p39 = pneg %p33
      %p40 = scmp.eq.s32.totalorder %s24, 3
      %p41 = por %p39, %p40
      %p42 = scmp.ne.s32.totalorder %s34, %s37
      %p43 = scmp.eq.s32.totalorder %s24, 0
      %p44 = por %p42, %p43
      %p45 = scmp.ne.s32.totalorder %s34, %s37
      %p46 = scmp.eq.s32.totalorder %s29, 3
      %p47 = por %p45, %p46
      %p48 = scmp.ne.s32.totalorder %s37, %s38
      %p49 = scmp.eq.s32.totalorder %s29, 0
      %p50 = por %p48, %p49
      %p51 = scmp.ne.s32.totalorder %s37, %s38
      %p52 = scmp.eq.s32.totalorder %s30, 3
      %p53 = por %p51, %p52
      %p55 = scmp.ne.s32.totalorder %s38, %s54
      %p56 = scmp.eq.s32.totalorder %s30, 0
      %p57 = por %p55, %p56
      %s59 = sadd.s32 %s58, 1
      %p62 = scmp.eq.s32.totalorder %s24, 3
      %p63 = scmp.ne.s32.totalorder %s58, %s60
      %p64 = scmp.eq.s32.totalorder %s24, 0
      %p65 = por %p63, %p64
      %p66 = scmp.ne.s32.totalorder %s58, %s60
      %p67 = scmp.eq.s32.totalorder %s29, 3
      %p68 = por %p66, %p67
      %p69 = scmp.ne.s32.totalorder %s60, %s61
      %p70 = scmp.eq.s32.totalorder %s29, 0
      %p71 = por %p69, %p70
      %p72 = scmp.ne.s32.totalorder %s60, %s61
      %p73 = scmp.eq.s32.totalorder %s30, 3
      %p74 = por %p72, %p73
      %p76 = scmp.ne.s32.totalorder %s61, %s75
      %p77 = scmp.eq.s32.totalorder %s30, 0
      %p78 = por %p76, %p77
      %s80 = sadd.s32 %s79, 1
      %p83 = scmp.eq.s32.totalorder %s24, 3
      %p84 = scmp.ne.s32.totalorder %s79, %s81
      %p85 = scmp.eq.s32.totalorder %s24, 0
      %p86 = por %p84, %p85
      %p87 = scmp.ne.s32.totalorder %s79, %s81
      %p88 = scmp.eq.s32.totalorder %s29, 3
      %p89 = por %p87, %p88
      %p90 = scmp.ne.s32.totalorder %s81, %s82
      %p91 = scmp.eq.s32.totalorder %s29, 0
      %p92 = por %p90, %p91
      %p93 = scmp.ne.s32.totalorder %s81, %s82
      %p94 = scmp.eq.s32.totalorder %s30, 3
      %p95 = por %p93, %p94
      %p97 = scmp.ne.s32.totalorder %s82, %s96
      %p98 = scmp.eq.s32.totalorder %s30, 0
      %p99 = por %p97, %p98
      %s101 = sadd.s32 %s100, 1
      %p104 = scmp.eq.s32.totalorder %s24, 3
      %p105 = scmp.ne.s32.totalorder %s100, %s102
      %p106 = scmp.eq.s32.totalorder %s24, 0
      %p107 = por %p105, %p106
      %p108 = scmp.ne.s32.totalorder %s100, %s102
      %p109 = scmp.eq.s32.totalorder %s29, 3
      %p110 = por %p108, %p109
      %p111 = scmp.ne.s32.totalorder %s102, %s103
      %p112 = scmp.eq.s32.totalorder %s29, 0
      %p113 = por %p111, %p112
      %p114 = scmp.ne.s32.totalorder %s102, %s103
      %p115 = scmp.eq.s32.totalorder %s30, 3
      %p116 = por %p114, %p115
      %p118 = scmp.ne.s32.totalorder %s103, %s117
      %p119 = scmp.eq.s32.totalorder %s30, 0
      %p120 = por %p118, %p119
      %s122 = sadd.s32 %s121, 1
      %p125 = scmp.eq.s32.totalorder %s24, 3
      %p126 = scmp.ne.s32.totalorder %s121, %s123
      %p127 = scmp.eq.s32.totalorder %s24, 0
      %p128 = por %p126, %p127
      %p129 = scmp.ne.s32.totalorder %s121, %s123
      %p130 = scmp.eq.s32.totalorder %s29, 3
      %p131 = por %p129, %p130
      %p132 = scmp.ne.s32.totalorder %s123, %s124
      %p133 = scmp.eq.s32.totalorder %s29, 0
      %p134 = por %p132, %p133
      %p135 = scmp.ne.s32.totalorder %s123, %s124
      %p136 = scmp.eq.s32.totalorder %s30, 3
      %p137 = por %p135, %p136
      %p139 = scmp.ne.s32.totalorder %s124, %s138
      %p140 = scmp.eq.s32.totalorder %s30, 0
      %p141 = por %p139, %p140
      %s142 = ssub.s32 %s24, %s31
      %p143 = scmp.eq.s32.totalorder %s142, 0
      %s145 = sadd.s32 %s144, 1
      %s146 = scalar_select %p143, %s144, %s145
      %p149 = pneg %p143
      %p150 = scmp.eq.s32.totalorder %s24, 3
      %p151 = por %p149, %p150
      %p152 = scmp.ne.s32.totalorder %s144, %s147
      %p153 = scmp.eq.s32.totalorder %s24, 0
      %p154 = por %p152, %p153
      %p155 = scmp.ne.s32.totalorder %s144, %s147
      %p156 = scmp.eq.s32.totalorder %s29, 3
      %p157 = por %p155, %p156
      %p158 = scmp.ne.s32.totalorder %s147, %s148
      %p159 = scmp.eq.s32.totalorder %s29, 0
      %p160 = por %p158, %p159
      %p161 = scmp.ne.s32.totalorder %s147, %s148
      %p162 = scmp.eq.s32.totalorder %s30, 3
      %p163 = por %p161, %p162
      %p165 = scmp.ne.s32.totalorder %s148, %s164
      %p166 = scmp.eq.s32.totalorder %s30, 0
      %p167 = por %p165, %p166
      %s168 = ssub.s32 %s24, %s31
      %p169 = scmp.eq.s32.totalorder %s168, 0
      %s171 = sadd.s32 %s170, 1
      %s172 = scalar_select %p169, %s170, %s171
      %p175 = pneg %p169
      %p176 = scmp.eq.s32.totalorder %s24, 3
      %p177 = por %p175, %p176
      %p178 = scmp.ne.s32.totalorder %s170, %s173
      %p179 = scmp.eq.s32.totalorder %s24, 0
      %p180 = por %p178, %p179
      %p181 = scmp.ne.s32.totalorder %s170, %s173
      %p182 = scmp.eq.s32.totalorder %s29, 3
      %p183 = por %p181, %p182
      %p184 = scmp.ne.s32.totalorder %s173, %s174
      %p185 = scmp.eq.s32.totalorder %s29, 0
      %p186 = por %p184, %p185
      %p187 = scmp.ne.s32.totalorder %s173, %s174
      %p188 = scmp.eq.s32.totalorder %s30, 3
      %p189 = por %p187, %p188
      %p191 = scmp.ne.s32.totalorder %s174, %s190
      %p192 = scmp.eq.s32.totalorder %s30, 0
      %p193 = por %p191, %p192
      %p194 = scmp.le.s32.totalorder 1, %s24
      %p195 = scmp.lt.s32.totalorder %s24, 5
      %p196 = pnand %p194, %p195
      %p197 = pneg %p196
      // Predicated region
      $region9: #{bottleneck_forward.3} parent=5 // pred_check
        _
      $region10: #{bottleneck_forward.3} parent=5 // pred_check_branch
        %199 = sbr.rel (%p196) target = $region12
      $region11: #{bottleneck_forward.3} parent=5 // pred_region
        %s200 = ssub.s32 %s24, 1
        // Predicated region
        $region13: #{bottleneck_forward.3} parent=11 // pred_check
          %p201 = pneg %p71
        $region14: #{bottleneck_forward.3} parent=11 // pred_check_branch
          %203 = sbr.rel (%p201) target = $region16
        $region15: #{bottleneck_forward.3} parent=11 // pred_region
          %s205 = ssub.s32 16, 16
          %206 = vsyncadd [#allocation6], %s205
          %s208 = sshll.u32 [#allocation5], 4
          %s209 = int_to_ptr.vmem [resolvable:$true] %s208
          %211 = dma.hbm_to_vmem [thread:$0]  %s1, 16, %s209, [#allocation6]
        $region16: #{bottleneck_forward.3} parent=11 // pred_fallthru
          _
        // Predicated region
        $region17: #{bottleneck_forward.3} parent=11 // pred_check
          %p212 = pneg %p92
        $region18: #{bottleneck_forward.3} parent=11 // pred_check_branch
          %214 = sbr.rel (%p212) target = $region20
        $region19: #{bottleneck_forward.3} parent=11 // pred_region
          %s216 = ssub.s32 16, 16
          %217 = vsyncadd [#allocation6], %s216
          %s219 = sshll.u32 [#allocation7], 4
          %s220 = int_to_ptr.vmem [resolvable:$true] %s219
          %222 = dma.hbm_to_vmem [thread:$0]  %s2, 16, %s220, [#allocation6]
        $region20: #{bottleneck_forward.3} parent=11 // pred_fallthru
          _
        // Predicated region
        $region21: #{bottleneck_forward.3} parent=11 // pred_check
          %p223 = pneg %p113
        $region22: #{bottleneck_forward.3} parent=11 // pred_check_branch
          %225 = sbr.rel (%p223) target = $region24
        $region23: #{bottleneck_forward.3} parent=11 // pred_region
          %s227 = ssub.s32 1024, 1024
          %228 = vsyncadd [#allocation9], %s227
          %s229 = sshll.u32 [#allocation8], 4
          %s230 = int_to_ptr.vmem [resolvable:$true] %s229
          %235 = dma.hbm_to_vmem [thread:$0]  %s3, 1024, %s230, [#allocation9], 64, 64, 4
        $region24: #{bottleneck_forward.3} parent=11 // pred_fallthru
          _
        // Predicated region
        $region25: #{bottleneck_forward.3} parent=11 // pred_check
          %p236 = pneg %p134
        $region26: #{bottleneck_forward.3} parent=11 // pred_check_branch
          %238 = sbr.rel (%p236) target = $region28
        $region27: #{bottleneck_forward.3} parent=11 // pred_region
          %s240 = ssub.s32 16, 16
          %241 = vsyncadd [#allocation9], %s240
          %s243 = sshll.u32 [#allocation10], 4
          %s244 = int_to_ptr.vmem [resolvable:$true] %s243
          %246 = dma.hbm_to_vmem [thread:$0]  %s4, 16, %s244, [#allocation9]
        $region28: #{bottleneck_forward.3} parent=11 // pred_fallthru
          _
      $region12: #{bottleneck_forward.3} parent=5 // pred_fallthru
        _
      %p247 = scmp.lt.s32.totalorder %s24, 4
      // Predicated region
      $region29: #{bottleneck_forward.3} parent=5 // pred_check
        %p248 = pneg %p247
      $region30: #{bottleneck_forward.3} parent=5 // pred_check_branch
        %250 = sbr.rel (%p248) target = $region32
      $region31: #{bottleneck_forward.3} parent=5 // pred_region
        // Predicated region
        $region33: #{bottleneck_forward.3} parent=31 // pred_check
          %p251 = pneg %p44
        $region34: #{bottleneck_forward.3} parent=31 // pred_check_branch
          %253 = sbr.rel (%p251) target = $region36
        $region35: #{bottleneck_forward.3} parent=31 // pred_region
          %s254 = sand.u32 %s34, 1
          %s255 = scalar_lea.sflag [#allocation3], %s254
          %s256 = sand.u32 %s34, 1
          %s257 = smul.addr %s256, 128
          %s258 = scalar_lea.vmem [#allocation2], %s257
          %s259 = smul.u32 16, %s24
          %s261 = ssub.s32 2048, 2048
          %262 = vsyncadd %s255, %s261
          %s263 = smul.addr %s259, 128
          %s264 = scalar_lea.hbm %s0, %s263
          %s265 = sshll.u32 %s258, 4
          %s266 = int_to_ptr.vmem [resolvable:$true] %s265
          %271 = dma.hbm_to_vmem [thread:$0]  %s264, 2048, %s266, %s255, 128, 128, 8
        $region36: #{bottleneck_forward.3} parent=31 // pred_fallthru
          _
      $region32: #{bottleneck_forward.3} parent=5 // pred_fallthru
        _
      %p272 = scmp.le.s32.totalorder 1, %s24
      %p273 = scmp.lt.s32.totalorder %s24, 5
      %p274 = pnand %p272, %p273
      %p275 = pneg %p274
      // Predicated region
      $region37: #{bottleneck_forward.3} parent=5 // pred_check
        _
      $region38: #{bottleneck_forward.3} parent=5 // pred_check_branch
        %277 = sbr.rel (%p274) target = $region40
      $region39: #{bottleneck_forward.3} parent=5 // pred_region
        %s278 = ssub.s32 %s24, 1
        %s279 = sand.u32 %s37, 1
        %s280 = scalar_lea.sflag [#allocation3], %s279
        %s281 = sand.u32 %s37, 1
        %s282 = smul.addr %s281, 128
        %s283 = scalar_lea.vmem [#allocation2], %s282
        // Predicated region
        $region41: #{bottleneck_forward.3} parent=39 // pred_check
          %p284 = pneg %p50
        $region42: #{bottleneck_forward.3} parent=39 // pred_check_branch
          %286 = sbr.rel (%p284) target = $region44
        $region43: #{bottleneck_forward.3} parent=39 // pred_region
          %287 = dma.done %s280, 2048
        $region44: #{bottleneck_forward.3} parent=39 // pred_fallthru
          _
        // Predicated region
        $region45: #{bottleneck_forward.3} parent=39 // pred_check
          %p288 = pneg %p71
        $region46: #{bottleneck_forward.3} parent=39 // pred_check_branch
          %290 = sbr.rel (%p288) target = $region48
        $region47: #{bottleneck_forward.3} parent=39 // pred_region
          %291 = dma.done [#allocation6], 16
        $region48: #{bottleneck_forward.3} parent=39 // pred_fallthru
          _
        // Predicated region
        $region49: #{bottleneck_forward.3} parent=39 // pred_check
          %p292 = pneg %p92
        $region50: #{bottleneck_forward.3} parent=39 // pred_check_branch
          %294 = sbr.rel (%p292) target = $region52
        $region51: #{bottleneck_forward.3} parent=39 // pred_region
          %295 = dma.done [#allocation6], 16
        $region52: #{bottleneck_forward.3} parent=39 // pred_fallthru
          _
        // Predicated region
        $region53: #{bottleneck_forward.3} parent=39 // pred_check
          %p296 = pneg %p113
        $region54: #{bottleneck_forward.3} parent=39 // pred_check_branch
          %298 = sbr.rel (%p296) target = $region56
        $region55: #{bottleneck_forward.3} parent=39 // pred_region
          %299 = dma.done [#allocation9], 1024
        $region56: #{bottleneck_forward.3} parent=39 // pred_fallthru
          _
        // Predicated region
        $region57: #{bottleneck_forward.3} parent=39 // pred_check
          %p300 = pneg %p134
        $region58: #{bottleneck_forward.3} parent=39 // pred_check_branch
          %302 = sbr.rel (%p300) target = $region60
        $region59: #{bottleneck_forward.3} parent=39 // pred_region
          %303 = dma.done [#allocation9], 16
        $region60: #{bottleneck_forward.3} parent=39 // pred_fallthru
          _
        %s304 = sand.u32 %s37, 1
        %s305 = scalar_lea.sflag [#allocation3], %s304
        %s306 = sand.u32 %s37, 1
        %s307 = smul.addr %s306, 128
        %s308 = scalar_lea.vmem [#allocation2], %s307
        %p309 = pneg %p50
        %p310 = pneg %p47
        %p311 = pneg %p71
        %p312 = pneg %p68
        %p313 = pneg %p92
        %p314 = pneg %p89
        %p315 = pneg %p113
        %p316 = pneg %p110
        %p317 = pneg %p134
        %p318 = pneg %p131
        %p319 = pneg %p160
        %p320 = pneg %p157
        %s321 = sand.u32 %s147, 1
        %s322 = scalar_lea.sflag [#allocation4], %s321
        %s323 = sand.u32 %s147, 1
        %s324 = smul.addr %s323, 128
        %s325 = scalar_lea.vmem [#allocation11], %s324
        %p326 = pneg %p186
        %p327 = pneg %p183
        %s328 = sand.u32 %s173, 1
        %s329 = scalar_lea.sflag [#allocation13], %s328
        %s330 = sand.u32 %s173, 1
        %s331 = smul.addr %s330, 2
        %s332 = scalar_lea.vmem [#allocation12], %s331
        %s333 = smul.u32 16, %s29
        %s334 = smul.u32 16, %s29
        %v336 = vld [vmem:[%s283] sm:$0xff]
        %v337 = vld [vmem:[%s283 + $0x8] sm:$0xff]
        %v338 = vld [vmem:[%s283 + $0x10] sm:$0xff]
        %v339 = vld [vmem:[%s283 + $0x18] sm:$0xff]
        %v340 = vld [vmem:[%s283 + $0x20] sm:$0xff]
        %v341 = vld [vmem:[%s283 + $0x28] sm:$0xff]
        %v342 = vld [vmem:[%s283 + $0x30] sm:$0xff]
        %v343 = vld [vmem:[%s283 + $0x38] sm:$0xff]
        %v344 = vld [vmem:[%s283 + $0x40] sm:$0xff]
        %v345 = vld [vmem:[%s283 + $0x48] sm:$0xff]
        %v346 = vld [vmem:[%s283 + $0x50] sm:$0xff]
        %v347 = vld [vmem:[%s283 + $0x58] sm:$0xff]
        %v348 = vld [vmem:[%s283 + $0x60] sm:$0xff]
        %v349 = vld [vmem:[%s283 + $0x68] sm:$0xff]
        %v350 = vld [vmem:[%s283 + $0x70] sm:$0xff]
        %v351 = vld [vmem:[%s283 + $0x78] sm:$0xff]
        %v352 = vld [vmem:[#allocation5] sm:$0x1]
        %v354 = vlaneseq
        %v355 = vshrl.u32 %v354, 7
        %v356 = vsub.s32 0, %v355
        %v357 = vrot.slane %v352, %v356
        %v359 = vmul.f32 %v336, %v357
        %v360 = vmul.f32 %v337, %v357
        %v361 = vmul.f32 %v338, %v357
        %v362 = vmul.f32 %v339, %v357
        %v363 = vmul.f32 %v340, %v357
        %v364 = vmul.f32 %v341, %v357
        %v365 = vmul.f32 %v342, %v357
        %v366 = vmul.f32 %v343, %v357
        %v367 = vmul.f32 %v344, %v357
        %v368 = vmul.f32 %v345, %v357
        %v369 = vmul.f32 %v346, %v357
        %v370 = vmul.f32 %v347, %v357
        %v371 = vmul.f32 %v348, %v357
        %v372 = vmul.f32 %v349, %v357
        %v373 = vmul.f32 %v350, %v357
        %v374 = vmul.f32 %v351, %v357
        %v375 = vld [vmem:[#allocation7] sm:$0x1]
        %v377 = vlaneseq
        %v378 = vshrl.u32 %v377, 7
        %v379 = vsub.s32 0, %v378
        %v380 = vrot.slane %v375, %v379
        %v382 = vadd.f32 %v359, %v380
        %v383 = vadd.f32 %v360, %v380
        %v384 = vadd.f32 %v361, %v380
        %v385 = vadd.f32 %v362, %v380
        %v386 = vadd.f32 %v363, %v380
        %v387 = vadd.f32 %v364, %v380
        %v388 = vadd.f32 %v365, %v380
        %v389 = vadd.f32 %v366, %v380
        %v390 = vadd.f32 %v367, %v380
        %v391 = vadd.f32 %v368, %v380
        %v392 = vadd.f32 %v369, %v380
        %v393 = vadd.f32 %v370, %v380
        %v394 = vadd.f32 %v371, %v380
        %v395 = vadd.f32 %v372, %v380
        %v396 = vadd.f32 %v373, %v380
        %v397 = vadd.f32 %v374, %v380
        %v398 = vmax.f32 %v382, 0.0
        %v399 = vmax.f32 %v383, 0.0
        %v400 = vmax.f32 %v384, 0.0
        %v401 = vmax.f32 %v385, 0.0
        %v402 = vmax.f32 %v386, 0.0
        %v403 = vmax.f32 %v387, 0.0
        %v404 = vmax.f32 %v388, 0.0
        %v405 = vmax.f32 %v389, 0.0
        %v406 = vmax.f32 %v390, 0.0
        %v407 = vmax.f32 %v391, 0.0
        %v408 = vmax.f32 %v392, 0.0
        %v409 = vmax.f32 %v393, 0.0
        %v410 = vmax.f32 %v394, 0.0
        %v411 = vmax.f32 %v395, 0.0
        %v412 = vmax.f32 %v396, 0.0
        %v413 = vmax.f32 %v397, 0.0
        %v414 = vpack.c.bf16 %v399, %v398
        %v415 = vpack.c.bf16 %v401, %v400
        %v416 = vpack.c.bf16 %v403, %v402
        %v417 = vpack.c.bf16 %v405, %v404
        %v418 = vpack.c.bf16 %v407, %v406
        %v419 = vpack.c.bf16 %v409, %v408
        %v420 = vpack.c.bf16 %v411, %v410
        %v421 = vpack.c.bf16 %v413, %v412
        %v422 = vld [vmem:[#allocation8] sm:$0xf]
        %v423 = vld [vmem:[#allocation8 + $0x4] sm:$0xf]
        %v424 = vld [vmem:[#allocation8 + $0x8] sm:$0xf]
        %v425 = vld [vmem:[#allocation8 + $0xc] sm:$0xf]
        %v426 = vld [vmem:[#allocation8 + $0x10] sm:$0xf]
        %v427 = vld [vmem:[#allocation8 + $0x14] sm:$0xf]
        %v428 = vld [vmem:[#allocation8 + $0x18] sm:$0xf]
        %v429 = vld [vmem:[#allocation8 + $0x1c] sm:$0xf]
        %v430 = vld [vmem:[#allocation8 + $0x20] sm:$0xf]
        %v431 = vld [vmem:[#allocation8 + $0x24] sm:$0xf]
        %v432 = vld [vmem:[#allocation8 + $0x28] sm:$0xf]
        %v433 = vld [vmem:[#allocation8 + $0x2c] sm:$0xf]
        %v434 = vld [vmem:[#allocation8 + $0x30] sm:$0xf]
        %v435 = vld [vmem:[#allocation8 + $0x34] sm:$0xf]
        %v436 = vld [vmem:[#allocation8 + $0x38] sm:$0xf]
        %v437 = vld [vmem:[#allocation8 + $0x3c] sm:$0xf]
        %v438 = vld [vmem:[#allocation10] sm:$0x1]
        %v440 = vlaneseq
        %v441 = vshrl.u32 %v440, 7
        %v442 = vsub.s32 0, %v441
        %v443 = vrot.slane %v438, %v442
        %v461 = vunpack.c.l.b16 %v422
        %v462 = vunpack.c.l.b16 %v423
        %v463 = vunpack.c.l.b16 %v424
        %v464 = vunpack.c.l.b16 %v425
        %v465 = vunpack.c.l.b16 %v426
        %v466 = vunpack.c.l.b16 %v427
        %v467 = vunpack.c.l.b16 %v428
        %v468 = vunpack.c.l.b16 %v429
        %v469 = vunpack.c.l.b16 %v430
        %v470 = vunpack.c.l.b16 %v431
        %v471 = vunpack.c.l.b16 %v432
        %v472 = vunpack.c.l.b16 %v433
        %v473 = vunpack.c.l.b16 %v434
        %v474 = vunpack.c.l.b16 %v435
        %v475 = vunpack.c.l.b16 %v436
        %v476 = vunpack.c.l.b16 %v437
        %v477 = vpack.c.b16 %v462, %v461
        %v478 = vpack.c.b16 %v464, %v463
        %v479 = vpack.c.b16 %v466, %v465
        %v480 = vpack.c.b16 %v468, %v467
        %v481 = vpack.c.b16 %v470, %v469
        %v482 = vpack.c.b16 %v472, %v471
        %v483 = vpack.c.b16 %v474, %v473
        %v484 = vpack.c.b16 %v476, %v475
        %493 = vmatprep.subr.bf16.mxu0 0
        %494 = vmatpush1.bf16.msra.mxu0 %v477
        %495 = vmatprep.subr.bf16.mxu0 0
        %496 = vmatpush1.bf16.msra.mxu0 %v478
        %497 = vmatprep.subr.bf16.mxu0 0
        %498 = vmatpush1.bf16.msra.mxu0 %v479
        %499 = vmatprep.subr.bf16.mxu0 0
        %500 = vmatpush1.bf16.msra.mxu0 %v480
        %501 = vmatprep.subr.bf16.mxu0 0
        %502 = vmatpush1.bf16.msra.mxu0 %v481
        %503 = vmatprep.subr.bf16.mxu0 0
        %504 = vmatpush1.bf16.msra.mxu0 %v482
        %505 = vmatprep.subr.bf16.mxu0 0
        %506 = vmatpush1.bf16.msra.mxu0 %v483
        %507 = vmatprep.subr.bf16.mxu0 0
        %508 = vmatpush1.bf16.msra.mxu0 %v484
        %509 = vmatprep.subr.bf16.mxu0 0
        %510 = vmatpush1.bf16.msra.mxu0 0
        %511 = vmatprep.subr.bf16.mxu0 0
        %512 = vmatpush1.bf16.msra.mxu0 0
        %513 = vmatprep.subr.bf16.mxu0 0
        %514 = vmatpush1.bf16.msra.mxu0 0
        %515 = vmatprep.subr.bf16.mxu0 0
        %516 = vmatpush1.bf16.msra.mxu0 0
        %517 = vmatprep.subr.bf16.mxu0 0
        %518 = vmatpush1.bf16.msra.mxu0 0
        %519 = vmatprep.subr.bf16.mxu0 0
        %520 = vmatpush1.bf16.msra.mxu0 0
        %521 = vmatprep.subr.bf16.mxu0 0
        %522 = vmatpush1.bf16.msra.mxu0 0
        %523 = vmatprep.subr.bf16.mxu0 0
        %524 = vmatpush1.bf16.msra.mxu0 0
        %525 = vmatprep.mubr.bf16.mxu0 0
        %526 = vmatmul.mubr.bf16.gmra.mrb[0].mxu0 %v414
        %v527 = vpop.f32.mrb[0].mxu0
        %v528 = vadd.f32 %v443, %v527
        %v529 = vpop.f32.mrb[0].mxu0
        %v530 = vpop.f32.mrb[0].mxu0
        %v531 = vadd.f32 %v443, %v530
        %v532 = vpop.f32.mrb[0].mxu0
        %533 = vmatprep.mubr.bf16.mxu0 0
        %534 = vmatmul.mubr.bf16.gmra.mrb[0].mxu0 %v415
        %v535 = vpop.f32.mrb[0].mxu0
        %v536 = vadd.f32 %v443, %v535
        %v537 = vpop.f32.mrb[0].mxu0
        %v538 = vpop.f32.mrb[0].mxu0
        %v539 = vadd.f32 %v443, %v538
        %v540 = vpop.f32.mrb[0].mxu0
        %541 = vmatprep.mubr.bf16.mxu0 0
        %542 = vmatmul.mubr.bf16.gmra.mrb[0].mxu0 %v416
        %v543 = vpop.f32.mrb[0].mxu0
        %v544 = vadd.f32 %v443, %v543
        %v545 = vpop.f32.mrb[0].mxu0
        %v546 = vpop.f32.mrb[0].mxu0
        %v547 = vadd.f32 %v443, %v546
        %v548 = vpop.f32.mrb[0].mxu0
        %549 = vmatprep.mubr.bf16.mxu0 0
        %550 = vmatmul.mubr.bf16.gmra.mrb[0].mxu0 %v417
        %v551 = vpop.f32.mrb[0].mxu0
        %v552 = vadd.f32 %v443, %v551
        %v553 = vpop.f32.mrb[0].mxu0
        %v554 = vpop.f32.mrb[0].mxu0
        %v555 = vadd.f32 %v443, %v554
        %v556 = vpop.f32.mrb[0].mxu0
        %557 = vmatprep.mubr.bf16.mxu0 0
        %558 = vmatmul.mubr.bf16.gmra.mrb[0].mxu0 %v418
        %v559 = vpop.f32.mrb[0].mxu0
        %v560 = vadd.f32 %v443, %v559
        %v561 = vpop.f32.mrb[0].mxu0
        %v562 = vpop.f32.mrb[0].mxu0
        %v563 = vadd.f32 %v443, %v562
        %v564 = vpop.f32.mrb[0].mxu0
        %565 = vmatprep.mubr.bf16.mxu0 0
        %566 = vmatmul.mubr.bf16.gmra.mrb[0].mxu0 %v419
        %v567 = vpop.f32.mrb[0].mxu0
        %v568 = vadd.f32 %v443, %v567
        %v569 = vpop.f32.mrb[0].mxu0
        %v570 = vpop.f32.mrb[0].mxu0
        %v571 = vadd.f32 %v443, %v570
        %v572 = vpop.f32.mrb[0].mxu0
        %573 = vmatprep.mubr.bf16.mxu0 0
        %574 = vmatmul.mubr.bf16.gmra.mrb[0].mxu0 %v420
        %v575 = vpop.f32.mrb[0].mxu0
        %v576 = vadd.f32 %v443, %v575
        %v577 = vpop.f32.mrb[0].mxu0
        %v578 = vpop.f32.mrb[0].mxu0
        %v579 = vadd.f32 %v443, %v578
        %v580 = vpop.f32.mrb[0].mxu0
        %581 = vmatprep.mubr.bf16.mxu0 0
        %582 = vmatmul.mubr.bf16.gmra.mrb[0].mxu0 %v421
        %v583 = vpop.f32.mrb[0].mxu0
        %v584 = vadd.f32 %v443, %v583
        %v585 = vpop.f32.mrb[0].mxu0
        %v586 = vpop.f32.mrb[0].mxu0
        %v587 = vadd.f32 %v443, %v586
        %v588 = vpop.f32.mrb[0].mxu0
        %589 = vdwg.mxu0
        %s590 = smul.u32 %s29, 128
        %v591 = vlaneseq
        %v592 = vshrl.u32 %v591, 7
        %v593 = vadd.s32 %v592, 8
        %v594 = vadd.s32 %v592, 16
        %v595 = vadd.s32 %v592, 24
        %v596 = vadd.s32 %v592, 32
        %v597 = vadd.s32 %v592, 40
        %v598 = vadd.s32 %v592, 48
        %v599 = vadd.s32 %v592, 56
        %v600 = vadd.s32 %v592, 64
        %v601 = vadd.s32 %v592, 72
        %v602 = vadd.s32 %v592, 80
        %v603 = vadd.s32 %v592, 88
        %v604 = vadd.s32 %v592, 96
        %v605 = vadd.s32 %v592, 104
        %v606 = vadd.s32 %v592, 112
        %v607 = vadd.s32 %v592, 120
        %v608 = vstv %s590
        %v609 = vadd.s32 %v608, %v592
        %v610 = vadd.s32 %v608, %v593
        %v611 = vadd.s32 %v608, %v594
        %v612 = vadd.s32 %v608, %v595
        %v613 = vadd.s32 %v608, %v596
        %v614 = vadd.s32 %v608, %v597
        %v615 = vadd.s32 %v608, %v598
        %v616 = vadd.s32 %v608, %v599
        %v617 = vadd.s32 %v608, %v600
        %v618 = vadd.s32 %v608, %v601
        %v619 = vadd.s32 %v608, %v602
        %v620 = vadd.s32 %v608, %v603
        %v621 = vadd.s32 %v608, %v604
        %v622 = vadd.s32 %v608, %v605
        %v623 = vadd.s32 %v608, %v606
        %v624 = vadd.s32 %v608, %v607
        %vm625 = vcmp.lt.s32.totalorder %v609, 392
        %vm626 = vcmp.lt.s32.totalorder %v610, 392
        %vm627 = vcmp.lt.s32.totalorder %v611, 392
        %vm628 = vcmp.lt.s32.totalorder %v612, 392
        %vm629 = vcmp.lt.s32.totalorder %v613, 392
        %vm630 = vcmp.lt.s32.totalorder %v614, 392
        %vm631 = vcmp.lt.s32.totalorder %v615, 392
        %vm632 = vcmp.lt.s32.totalorder %v616, 392
        %vm633 = vcmp.lt.s32.totalorder %v617, 392
        %vm634 = vcmp.lt.s32.totalorder %v618, 392
        %vm635 = vcmp.lt.s32.totalorder %v619, 392
        %vm636 = vcmp.lt.s32.totalorder %v620, 392
        %vm637 = vcmp.lt.s32.totalorder %v621, 392
        %vm638 = vcmp.lt.s32.totalorder %v622, 392
        %vm639 = vcmp.lt.s32.totalorder %v623, 392
        %vm640 = vcmp.lt.s32.totalorder %v624, 392
        %v641 = vsel %vm625, 1, 0
        %v642 = vsel %vm626, 1, 0
        %v643 = vsel %vm627, 1, 0
        %v644 = vsel %vm628, 1, 0
        %v645 = vsel %vm629, 1, 0
        %v646 = vsel %vm630, 1, 0
        %v647 = vsel %vm631, 1, 0
        %v648 = vsel %vm632, 1, 0
        %v649 = vsel %vm633, 1, 0
        %v650 = vsel %vm634, 1, 0
        %v651 = vsel %vm635, 1, 0
        %v652 = vsel %vm636, 1, 0
        %v653 = vsel %vm637, 1, 0
        %v654 = vsel %vm638, 1, 0
        %v655 = vsel %vm639, 1, 0
        %v656 = vsel %vm640, 1, 0
        %vm657 = vcmp.eq.s32.totalorder %v641, 1
        %vm658 = vcmp.eq.s32.totalorder %v642, 1
        %vm659 = vcmp.eq.s32.totalorder %v643, 1
        %vm660 = vcmp.eq.s32.totalorder %v644, 1
        %vm661 = vcmp.eq.s32.totalorder %v645, 1
        %vm662 = vcmp.eq.s32.totalorder %v646, 1
        %vm663 = vcmp.eq.s32.totalorder %v647, 1
        %vm664 = vcmp.eq.s32.totalorder %v648, 1
        %vm665 = vcmp.eq.s32.totalorder %v649, 1
        %vm666 = vcmp.eq.s32.totalorder %v650, 1
        %vm667 = vcmp.eq.s32.totalorder %v651, 1
        %vm668 = vcmp.eq.s32.totalorder %v652, 1
        %vm669 = vcmp.eq.s32.totalorder %v653, 1
        %vm670 = vcmp.eq.s32.totalorder %v654, 1
        %vm671 = vcmp.eq.s32.totalorder %v655, 1
        %vm672 = vcmp.eq.s32.totalorder %v656, 1
        %v673 = vsel %vm657, %v528, 0.0
        %v674 = vsel %vm658, %v531, 0.0
        %v675 = vsel %vm659, %v536, 0.0
        %v676 = vsel %vm660, %v539, 0.0
        %v677 = vsel %vm661, %v544, 0.0
        %v678 = vsel %vm662, %v547, 0.0
        %v679 = vsel %vm663, %v552, 0.0
        %v680 = vsel %vm664, %v555, 0.0
        %v681 = vsel %vm665, %v560, 0.0
        %v682 = vsel %vm666, %v563, 0.0
        %v683 = vsel %vm667, %v568, 0.0
        %v684 = vsel %vm668, %v571, 0.0
        %v685 = vsel %vm669, %v576, 0.0
        %v686 = vsel %vm670, %v579, 0.0
        %v687 = vsel %vm671, %v584, 0.0
        %v688 = vsel %vm672, %v587, 0.0
        %689 = vst [vmem:[%s325] sm:$0xff] %v673
        %690 = vst [vmem:[%s325 + $0x8] sm:$0xff] %v674
        %691 = vst [vmem:[%s325 + $0x10] sm:$0xff] %v675
        %692 = vst [vmem:[%s325 + $0x18] sm:$0xff] %v676
        %693 = vst [vmem:[%s325 + $0x20] sm:$0xff] %v677
        %694 = vst [vmem:[%s325 + $0x28] sm:$0xff] %v678
        %695 = vst [vmem:[%s325 + $0x30] sm:$0xff] %v679
        %696 = vst [vmem:[%s325 + $0x38] sm:$0xff] %v680
        %697 = vst [vmem:[%s325 + $0x40] sm:$0xff] %v681
        %698 = vst [vmem:[%s325 + $0x48] sm:$0xff] %v682
        %699 = vst [vmem:[%s325 + $0x50] sm:$0xff] %v683
        %700 = vst [vmem:[%s325 + $0x58] sm:$0xff] %v684
        %701 = vst [vmem:[%s325 + $0x60] sm:$0xff] %v685
        %702 = vst [vmem:[%s325 + $0x68] sm:$0xff] %v686
        %703 = vst [vmem:[%s325 + $0x70] sm:$0xff] %v687
        %704 = vst [vmem:[%s325 + $0x78] sm:$0xff] %v688
        %v705 = vadd.f32 %v673, %v674
        %v706 = vadd.f32 %v705, %v675
        %v707 = vadd.f32 %v706, %v676
        %v708 = vadd.f32 %v707, %v677
        %v709 = vadd.f32 %v708, %v678
        %v710 = vadd.f32 %v709, %v679
        %v711 = vadd.f32 %v710, %v680
        %v712 = vadd.f32 %v711, %v681
        %v713 = vadd.f32 %v712, %v682
        %v714 = vadd.f32 %v713, %v683
        %v715 = vadd.f32 %v714, %v684
        %v716 = vadd.f32 %v715, %v685
        %v717 = vadd.f32 %v716, %v686
        %v718 = vadd.f32 %v717, %v687
        %v719 = vadd.f32 %v718, %v688
        %v720 = vrot.slane %v719, 4
        %v721 = vadd.f32 %v719, %v720
        %v722 = vrot.slane %v721, 2
        %v723 = vadd.f32 %v721, %v722
        %v724 = vrot.slane %v723, 1
        %v725 = vadd.f32 %v723, %v724
        %v726 = vmul.f32 %v673, %v673
        %v727 = vmul.f32 %v674, %v674
        %v728 = vmul.f32 %v675, %v675
        %v729 = vmul.f32 %v676, %v676
        %v730 = vmul.f32 %v677, %v677
        %v731 = vmul.f32 %v678, %v678
        %v732 = vmul.f32 %v679, %v679
        %v733 = vmul.f32 %v680, %v680
        %v734 = vmul.f32 %v681, %v681
        %v735 = vmul.f32 %v682, %v682
        %v736 = vmul.f32 %v683, %v683
        %v737 = vmul.f32 %v684, %v684
        %v738 = vmul.f32 %v685, %v685
        %v739 = vmul.f32 %v686, %v686
        %v740 = vmul.f32 %v687, %v687
        %v741 = vmul.f32 %v688, %v688
        %v742 = vadd.f32 %v726, %v727
        %v743 = vadd.f32 %v742, %v728
        %v744 = vadd.f32 %v743, %v729
        %v745 = vadd.f32 %v744, %v730
        %v746 = vadd.f32 %v745, %v731
        %v747 = vadd.f32 %v746, %v732
        %v748 = vadd.f32 %v747, %v733
        %v749 = vadd.f32 %v748, %v734
        %v750 = vadd.f32 %v749, %v735
        %v751 = vadd.f32 %v750, %v736
        %v752 = vadd.f32 %v751, %v737
        %v753 = vadd.f32 %v752, %v738
        %v754 = vadd.f32 %v753, %v739
        %v755 = vadd.f32 %v754, %v740
        %v756 = vadd.f32 %v755, %v741
        %v757 = vrot.slane %v756, 4
        %v758 = vadd.f32 %v756, %v757
        %v759 = vrot.slane %v758, 2
        %v760 = vadd.f32 %v758, %v759
        %v761 = vrot.slane %v760, 1
        %v762 = vadd.f32 %v760, %v761
        %vm763 = vcmask 1040384
        %v764 = vsel %vm763, %v725, %v762
        %765 = vst [vmem:[%s332] sm:$0x3] %v764
        %s766 = sand.u32 %s147, 1
        %s767 = scalar_lea.sflag [#allocation4], %s766
        %s768 = sand.u32 %s147, 1
        %s769 = smul.addr %s768, 128
        %s770 = scalar_lea.vmem [#allocation11], %s769
        %s771 = sand.u32 %s173, 1
        %s772 = scalar_lea.sflag [#allocation13], %s771
        %s773 = sand.u32 %s173, 1
        %s774 = smul.addr %s773, 2
        %s775 = scalar_lea.vmem [#allocation12], %s774
        // Predicated region
        $region61: #{bottleneck_forward.3} parent=39 // pred_check
          %p776 = pneg %p157
        $region62: #{bottleneck_forward.3} parent=39 // pred_check_branch
          %778 = sbr.rel (%p776) target = $region64
        $region63: #{bottleneck_forward.3} parent=39 // pred_region
          %s779 = smul.u32 16, %s29
          %s781 = ssub.s32 2048, 2048
          %782 = vsyncadd %s767, %s781
          %s783 = smul.addr %s779, 128
          %s784 = scalar_lea.hbm %s5, %s783
          %s785 = sshll.u32 %s770, 4
          %s786 = int_to_ptr.vmem [resolvable:$true] %s785
          %791 = dma.vmem_to_hbm [thread:$0]  %s786, 2048, %s784, %s767, 128, 128, 8
        $region64: #{bottleneck_forward.3} parent=39 // pred_fallthru
          _
        // Predicated region
        $region65: #{bottleneck_forward.3} parent=39 // pred_check
          %p792 = pneg %p183
        $region66: #{bottleneck_forward.3} parent=39 // pred_check_branch
          %794 = sbr.rel (%p792) target = $region68
        $region67: #{bottleneck_forward.3} parent=39 // pred_region
          %s796 = ssub.s32 32, 32
          %797 = vsyncadd %s772, %s796
          %s798 = smul.addr %s29, 32
          %s799 = scalar_lea.hbm %s6, %s798
          %s801 = sshll.u32 %s775, 4
          %s802 = int_to_ptr.vmem [resolvable:$true] %s801
          %804 = dma.vmem_to_hbm [thread:$0]  %s802, 32, %s799, %s772
        $region68: #{bottleneck_forward.3} parent=39 // pred_fallthru
          _
      $region40: #{bottleneck_forward.3} parent=5 // pred_fallthru
        _
      %p805 = scmp.le.s32.totalorder 2, %s24
      // Predicated region
      $region69: #{bottleneck_forward.3} parent=5 // pred_check
        %p806 = pneg %p805
      $region70: #{bottleneck_forward.3} parent=5 // pred_check_branch
        %808 = sbr.rel (%p806) target = $region72
      $region71: #{bottleneck_forward.3} parent=5 // pred_region
        %s809 = ssub.s32 %s24, 2
        // Predicated region
        $region73: #{bottleneck_forward.3} parent=71 // pred_check
          %p810 = pneg %p163
        $region74: #{bottleneck_forward.3} parent=71 // pred_check_branch
          %812 = sbr.rel (%p810) target = $region76
        $region75: #{bottleneck_forward.3} parent=71 // pred_region
          %s813 = sand.u32 %s148, 1
          %s814 = scalar_lea.sflag [#allocation4], %s813
          %s815 = sand.u32 %s148, 1
          %s816 = smul.addr %s815, 128
          %s817 = scalar_lea.vmem [#allocation11], %s816
          %818 = dma.done %s814, 2048
        $region76: #{bottleneck_forward.3} parent=71 // pred_fallthru
          _
        // Predicated region
        $region77: #{bottleneck_forward.3} parent=71 // pred_check
          %p819 = pneg %p189
        $region78: #{bottleneck_forward.3} parent=71 // pred_check_branch
          %821 = sbr.rel (%p819) target = $region80
        $region79: #{bottleneck_forward.3} parent=71 // pred_region
          %s822 = sand.u32 %s174, 1
          %s823 = scalar_lea.sflag [#allocation13], %s822
          %s824 = sand.u32 %s174, 1
          %s825 = smul.addr %s824, 2
          %s826 = scalar_lea.vmem [#allocation12], %s825
          %827 = dma.done %s823, 32
        $region80: #{bottleneck_forward.3} parent=71 // pred_fallthru
          _
      $region72: #{bottleneck_forward.3} parent=5 // pred_fallthru
        _
    $region6: #{bottleneck_forward.3} parent=1 // loop_footer
      %s28 = sadd.s32 1, %s24
    $region7: #{bottleneck_forward.3} parent=1 // loop_footer_branch
      %23 = sbr.rel target = $region3
    $region8: #{bottleneck_forward.3} parent=1 // loop_exit
      _
    %828 = vsyncpa [#allocation3], 1
    %s829 = scalar_lea.sflag [#allocation3], 1
    %830 = vsyncpa %s829, 1
    %831 = vsyncpa [#allocation6], 1
    %832 = vsyncpa [#allocation9], 1
    %833 = vsyncpa [#allocation4], 1
    %s834 = scalar_lea.sflag [#allocation4], 1
    %835 = vsyncpa %s834, 1
    %836 = vsyncpa [#allocation13], 1
    %s837 = scalar_lea.sflag [#allocation13], 1
    %838 = vsyncpa %s837, 1

// kernel: bottleneck_forward.4
$region0: #{bottleneck_forward.4}
  #allocation0 [shape = 'u32[]', space=smem, size = 0x4, offset = 0x4, fixed_abs, tag = 'smem constant byte address 0x4 - core index']
  #allocation1 [shape = 'u32[144,128]{1,0:T(1,128)}', space=vmem, size = 0x12000, scoped, tag = 'internal scratch']
  %s0 = inlined_call_operand.hbm [shape: f32[2,290,128], index: 0, kind: input, shape index: {}]
  %s1 = inlined_call_operand.hbm [shape: bf16[3,3,128,128], index: 1, kind: input, shape index: {}]
  %s2 = inlined_call_operand.hbm [shape: f32[1,128], index: 2, kind: input, shape index: {}]
  %s3 = inlined_call_operand.hbm [shape: f32[256,1], index: 3, kind: input, shape index: {}]
  %s4 = inlined_call_operand.hbm [shape: f32[2,256,128], index: 4, kind: output, shape index: {0}]
  %s5 = inlined_call_operand.hbm [shape: f32[2,2,128], index: 5, kind: output, shape index: {1}]
  %6 = xla_tuple %s4, %s5
  %s7 = sld [smem:[#allocation0]]
  $region73: #{bottleneck_forward.4} parent=0
    _
  %s9 = ssub.s32 1, %s7
  %s10 = scalar_select 0, %s9, %s7
  $region1: #{bottleneck_forward.4} parent=0
    #allocation2 [shape = 'u8[303104]{0}', space=vmem, size = 0x4a000, scoped, tag = 'input window, operand 0']
    #allocation3 [shape = 's32[2]{0}', space=sflag, size = 0x8, scoped, tag = 'scoped memory for bottleneck_forward.4']
    #allocation4 [shape = 's32[2]{0}', space=sflag, size = 0x8, scoped, tag = 'scoped memory for bottleneck_forward.4']
    #allocation5 [shape = 'u8[294912]{0}', space=vmem, size = 0x48000, scoped, tag = 'input window, operand 1, single buffered']
    #allocation6 [shape = 's32[1]{0}', space=sflag, size = 0x4, scoped, tag = 'scoped memory for bottleneck_forward.4']
    #allocation7 [shape = 'u8[512]{0}', space=vmem, size = 0x400, scoped, tag = 'input window, operand 2, single buffered']
    #allocation8 [shape = 'u8[131072]{0}', space=vmem, size = 0x20000, scoped, tag = 'input window, operand 3, single buffered']
    #allocation9 [shape = 's32[1]{0}', space=sflag, size = 0x4, scoped, tag = 'scoped memory for bottleneck_forward.4']
    #allocation10 [shape = 'u8[262144]{0}', space=vmem, size = 0x40000, scoped, tag = 'output window, operand 0']
    #allocation11 [shape = 'u8[2048]{0}', space=vmem, size = 0x800, scoped, tag = 'output window, operand 1']
    #allocation12 [shape = 's32[2]{0}', space=sflag, size = 0x8, scoped, tag = 'scoped memory for bottleneck_forward.4']
    %11 = vsyncpa [#allocation3], 0
    %s12 = scalar_lea.sflag [#allocation3], 1
    %13 = vsyncpa %s12, 0
    %14 = vsyncpa [#allocation6], 0
    %15 = vsyncpa [#allocation9], 0
    %16 = vsyncpa [#allocation4], 0
    %s17 = scalar_lea.sflag [#allocation4], 1
    %18 = vsyncpa %s17, 0
    %19 = vsyncpa [#allocation12], 0
    %s20 = scalar_lea.sflag [#allocation12], 1
    %21 = vsyncpa %s20, 0
    loop: start=0, step=1, limit=4
    $region2: #{bottleneck_forward.4} parent=1 // loop_pre_header
      _
    $region3: #{bottleneck_forward.4} parent=1 // loop_header
      %s23 = sphi 0, %s27
      %p24 = scmp.ge.s32.totalorder %s23, 4
      %s33 = sphi 0, %s35
      %s36 = sphi 0, %s33
      %s37 = sphi 0, %s36
      %s53 = sphi 0, %s37
      %s57 = sphi 0, %s57
      %s59 = sphi 0, %s57
      %s60 = sphi 0, %s59
      %s74 = sphi 0, %s60
      %s78 = sphi 0, %s78
      %s80 = sphi 0, %s78
      %s81 = sphi 0, %s80
      %s95 = sphi 0, %s81
      %s99 = sphi 0, %s99
      %s101 = sphi 0, %s99
      %s102 = sphi 0, %s101
      %s116 = sphi 0, %s102
      %s122 = sphi 0, %s124
      %s125 = sphi 0, %s122
      %s126 = sphi 0, %s125
      %s142 = sphi 0, %s126
      %s148 = sphi 0, %s150
      %s151 = sphi 0, %s148
      %s152 = sphi 0, %s151
      %s168 = sphi 0, %s152
    $region4: #{bottleneck_forward.4} parent=1 // loop_header_branch
      %26 = sbr.rel (%p24) target = $region8
    $region5: #{bottleneck_forward.4} parent=1 // loop_body
      %s28 = ssub.s32 %s23, 1
      %s29 = ssub.s32 %s23, 2
      %s30 = sadd.s32 %s23, 1
      %s31 = ssub.s32 %s23, %s30
      %p32 = scmp.eq.s32.totalorder %s31, 0
      %s34 = sadd.s32 %s33, 1
      %s35 = scalar_select %p32, %s33, %s34
      %p38 = pneg %p32
      %p39 = scmp.eq.s32.totalorder %s23, 1
      %p40 = por %p38, %p39
      %p41 = scmp.ne.s32.totalorder %s33, %s36
      %p42 = scmp.eq.s32.totalorder %s23, 0
      %p43 = por %p41, %p42
      %p44 = scmp.ne.s32.totalorder %s33, %s36
      %p45 = scmp.eq.s32.totalorder %s28, 1
      %p46 = por %p44, %p45
      %p47 = scmp.ne.s32.totalorder %s36, %s37
      %p48 = scmp.eq.s32.totalorder %s28, 0
      %p49 = por %p47, %p48
      %p50 = scmp.ne.s32.totalorder %s36, %s37
      %p51 = scmp.eq.s32.totalorder %s29, 1
      %p52 = por %p50, %p51
      %p54 = scmp.ne.s32.totalorder %s37, %s53
      %p55 = scmp.eq.s32.totalorder %s29, 0
      %p56 = por %p54, %p55
      %s58 = sadd.s32 %s57, 1
      %p61 = scmp.eq.s32.totalorder %s23, 1
      %p62 = scmp.ne.s32.totalorder %s57, %s59
      %p63 = scmp.eq.s32.totalorder %s23, 0
      %p64 = por %p62, %p63
      %p65 = scmp.ne.s32.totalorder %s57, %s59
      %p66 = scmp.eq.s32.totalorder %s28, 1
      %p67 = por %p65, %p66
      %p68 = scmp.ne.s32.totalorder %s59, %s60
      %p69 = scmp.eq.s32.totalorder %s28, 0
      %p70 = por %p68, %p69
      %p71 = scmp.ne.s32.totalorder %s59, %s60
      %p72 = scmp.eq.s32.totalorder %s29, 1
      %p73 = por %p71, %p72
      %p75 = scmp.ne.s32.totalorder %s60, %s74
      %p76 = scmp.eq.s32.totalorder %s29, 0
      %p77 = por %p75, %p76
      %s79 = sadd.s32 %s78, 1
      %p82 = scmp.eq.s32.totalorder %s23, 1
      %p83 = scmp.ne.s32.totalorder %s78, %s80
      %p84 = scmp.eq.s32.totalorder %s23, 0
      %p85 = por %p83, %p84
      %p86 = scmp.ne.s32.totalorder %s78, %s80
      %p87 = scmp.eq.s32.totalorder %s28, 1
      %p88 = por %p86, %p87
      %p89 = scmp.ne.s32.totalorder %s80, %s81
      %p90 = scmp.eq.s32.totalorder %s28, 0
      %p91 = por %p89, %p90
      %p92 = scmp.ne.s32.totalorder %s80, %s81
      %p93 = scmp.eq.s32.totalorder %s29, 1
      %p94 = por %p92, %p93
      %p96 = scmp.ne.s32.totalorder %s81, %s95
      %p97 = scmp.eq.s32.totalorder %s29, 0
      %p98 = por %p96, %p97
      %s100 = sadd.s32 %s99, 1
      %p103 = scmp.eq.s32.totalorder %s23, 1
      %p104 = scmp.ne.s32.totalorder %s99, %s101
      %p105 = scmp.eq.s32.totalorder %s23, 0
      %p106 = por %p104, %p105
      %p107 = scmp.ne.s32.totalorder %s99, %s101
      %p108 = scmp.eq.s32.totalorder %s28, 1
      %p109 = por %p107, %p108
      %p110 = scmp.ne.s32.totalorder %s101, %s102
      %p111 = scmp.eq.s32.totalorder %s28, 0
      %p112 = por %p110, %p111
      %p113 = scmp.ne.s32.totalorder %s101, %s102
      %p114 = scmp.eq.s32.totalorder %s29, 1
      %p115 = por %p113, %p114
      %p117 = scmp.ne.s32.totalorder %s102, %s116
      %p118 = scmp.eq.s32.totalorder %s29, 0
      %p119 = por %p117, %p118
      %s120 = ssub.s32 %s23, %s30
      %p121 = scmp.eq.s32.totalorder %s120, 0
      %s123 = sadd.s32 %s122, 1
      %s124 = scalar_select %p121, %s122, %s123
      %p127 = pneg %p121
      %p128 = scmp.eq.s32.totalorder %s23, 1
      %p129 = por %p127, %p128
      %p130 = scmp.ne.s32.totalorder %s122, %s125
      %p131 = scmp.eq.s32.totalorder %s23, 0
      %p132 = por %p130, %p131
      %p133 = scmp.ne.s32.totalorder %s122, %s125
      %p134 = scmp.eq.s32.totalorder %s28, 1
      %p135 = por %p133, %p134
      %p136 = scmp.ne.s32.totalorder %s125, %s126
      %p137 = scmp.eq.s32.totalorder %s28, 0
      %p138 = por %p136, %p137
      %p139 = scmp.ne.s32.totalorder %s125, %s126
      %p140 = scmp.eq.s32.totalorder %s29, 1
      %p141 = por %p139, %p140
      %p143 = scmp.ne.s32.totalorder %s126, %s142
      %p144 = scmp.eq.s32.totalorder %s29, 0
      %p145 = por %p143, %p144
      %s146 = ssub.s32 %s23, %s30
      %p147 = scmp.eq.s32.totalorder %s146, 0
      %s149 = sadd.s32 %s148, 1
      %s150 = scalar_select %p147, %s148, %s149
      %p153 = pneg %p147
      %p154 = scmp.eq.s32.totalorder %s23, 1
      %p155 = por %p153, %p154
      %p156 = scmp.ne.s32.totalorder %s148, %s151
      %p157 = scmp.eq.s32.totalorder %s23, 0
      %p158 = por %p156, %p157
      %p159 = scmp.ne.s32.totalorder %s148, %s151
      %p160 = scmp.eq.s32.totalorder %s28, 1
      %p161 = por %p159, %p160
      %p162 = scmp.ne.s32.totalorder %s151, %s152
      %p163 = scmp.eq.s32.totalorder %s28, 0
      %p164 = por %p162, %p163
      %p165 = scmp.ne.s32.totalorder %s151, %s152
      %p166 = scmp.eq.s32.totalorder %s29, 1
      %p167 = por %p165, %p166
      %p169 = scmp.ne.s32.totalorder %s152, %s168
      %p170 = scmp.eq.s32.totalorder %s29, 0
      %p171 = por %p169, %p170
      %p172 = scmp.le.s32.totalorder 1, %s23
      %p173 = scmp.lt.s32.totalorder %s23, 3
      %p174 = pnand %p172, %p173
      %p175 = pneg %p174
      // Predicated region
      $region9: #{bottleneck_forward.4} parent=5 // pred_check
        _
      $region10: #{bottleneck_forward.4} parent=5 // pred_check_branch
        %177 = sbr.rel (%p174) target = $region12
      $region11: #{bottleneck_forward.4} parent=5 // pred_region
        %s178 = ssub.s32 %s23, 1
        // Predicated region
        $region13: #{bottleneck_forward.4} parent=11 // pred_check
          %p179 = pneg %p70
        $region14: #{bottleneck_forward.4} parent=11 // pred_check_branch
          %181 = sbr.rel (%p179) target = $region16
        $region15: #{bottleneck_forward.4} parent=11 // pred_region
          %s183 = ssub.s32 9216, 9216
          %184 = vsyncadd [#allocation6], %s183
          %s185 = sshll.u32 [#allocation5], 4
          %s186 = int_to_ptr.vmem [resolvable:$true] %s185
          %191 = dma.hbm_to_vmem [thread:$0]  %s1, 9216, %s186, [#allocation6], 64, 64, 4
        $region16: #{bottleneck_forward.4} parent=11 // pred_fallthru
          _
        // Predicated region
        $region17: #{bottleneck_forward.4} parent=11 // pred_check
          %p192 = pneg %p91
        $region18: #{bottleneck_forward.4} parent=11 // pred_check_branch
          %194 = sbr.rel (%p192) target = $region20
        $region19: #{bottleneck_forward.4} parent=11 // pred_region
          %s196 = ssub.s32 16, 16
          %197 = vsyncadd [#allocation6], %s196
          %s199 = sshll.u32 [#allocation7], 4
          %s200 = int_to_ptr.vmem [resolvable:$true] %s199
          %202 = dma.hbm_to_vmem [thread:$0]  %s2, 16, %s200, [#allocation6]
        $region20: #{bottleneck_forward.4} parent=11 // pred_fallthru
          _
        // Predicated region
        $region21: #{bottleneck_forward.4} parent=11 // pred_check
          %p203 = pneg %p112
        $region22: #{bottleneck_forward.4} parent=11 // pred_check_branch
          %205 = sbr.rel (%p203) target = $region24
        $region23: #{bottleneck_forward.4} parent=11 // pred_region
          %s207 = ssub.s32 4096, 4096
          %208 = vsyncadd [#allocation9], %s207
          %s209 = sshll.u32 [#allocation8], 4
          %s210 = int_to_ptr.vmem [resolvable:$true] %s209
          %215 = dma.hbm_to_vmem [thread:$0]  %s3, 4096, %s210, [#allocation9], 128, 128, 8
        $region24: #{bottleneck_forward.4} parent=11 // pred_fallthru
          _
      $region12: #{bottleneck_forward.4} parent=5 // pred_fallthru
        _
      %p216 = scmp.lt.s32.totalorder %s23, 2
      // Predicated region
      $region25: #{bottleneck_forward.4} parent=5 // pred_check
        %p217 = pneg %p216
      $region26: #{bottleneck_forward.4} parent=5 // pred_check_branch
        %219 = sbr.rel (%p217) target = $region28
      $region27: #{bottleneck_forward.4} parent=5 // pred_region
        // Predicated region
        $region29: #{bottleneck_forward.4} parent=27 // pred_check
          %p220 = pneg %p43
        $region30: #{bottleneck_forward.4} parent=27 // pred_check_branch
          %222 = sbr.rel (%p220) target = $region32
        $region31: #{bottleneck_forward.4} parent=27 // pred_region
          %s223 = sand.u32 %s33, 1
          %s224 = scalar_lea.sflag [#allocation3], %s223
          %s225 = sand.u32 %s33, 1
          %s226 = smul.addr %s225, 296
          %s227 = scalar_lea.vmem [#allocation2], %s226
          %s229 = ssub.s32 4736, 4736
          %230 = vsyncadd %s224, %s229
          %s231 = smul.addr %s23, 37
          %s232 = smul.addr %s231, 128
          %s233 = scalar_lea.hbm %s0, %s232
          %s234 = sshll.u32 %s227, 4
          %s235 = int_to_ptr.vmem [resolvable:$true] %s234
          %240 = dma.hbm_to_vmem [thread:$0]  %s233, 4736, %s235, %s224, 128, 128, 8
        $region32: #{bottleneck_forward.4} parent=27 // pred_fallthru
          _
      $region28: #{bottleneck_forward.4} parent=5 // pred_fallthru
        _
      %p241 = scmp.le.s32.totalorder 1, %s23
      %p242 = scmp.lt.s32.totalorder %s23, 3
      %p243 = pnand %p241, %p242
      %p244 = pneg %p243
      // Predicated region
      $region33: #{bottleneck_forward.4} parent=5 // pred_check
        _
      $region34: #{bottleneck_forward.4} parent=5 // pred_check_branch
        %246 = sbr.rel (%p243) target = $region36
      $region35: #{bottleneck_forward.4} parent=5 // pred_region
        %s247 = ssub.s32 %s23, 1
        %s248 = sand.u32 %s36, 1
        %s249 = scalar_lea.sflag [#allocation3], %s248
        %s250 = sand.u32 %s36, 1
        %s251 = smul.addr %s250, 296
        %s252 = scalar_lea.vmem [#allocation2], %s251
        // Predicated region
        $region37: #{bottleneck_forward.4} parent=35 // pred_check
          %p253 = pneg %p49
        $region38: #{bottleneck_forward.4} parent=35 // pred_check_branch
          %255 = sbr.rel (%p253) target = $region40
        $region39: #{bottleneck_forward.4} parent=35 // pred_region
          %256 = dma.done %s249, 4736
        $region40: #{bottleneck_forward.4} parent=35 // pred_fallthru
          _
        // Predicated region
        $region41: #{bottleneck_forward.4} parent=35 // pred_check
          %p257 = pneg %p70
        $region42: #{bottleneck_forward.4} parent=35 // pred_check_branch
          %259 = sbr.rel (%p257) target = $region44
        $region43: #{bottleneck_forward.4} parent=35 // pred_region
          %260 = dma.done [#allocation6], 9216
        $region44: #{bottleneck_forward.4} parent=35 // pred_fallthru
          _
        // Predicated region
        $region45: #{bottleneck_forward.4} parent=35 // pred_check
          %p261 = pneg %p91
        $region46: #{bottleneck_forward.4} parent=35 // pred_check_branch
          %263 = sbr.rel (%p261) target = $region48
        $region47: #{bottleneck_forward.4} parent=35 // pred_region
          %264 = dma.done [#allocation6], 16
        $region48: #{bottleneck_forward.4} parent=35 // pred_fallthru
          _
        // Predicated region
        $region49: #{bottleneck_forward.4} parent=35 // pred_check
          %p265 = pneg %p112
        $region50: #{bottleneck_forward.4} parent=35 // pred_check_branch
          %267 = sbr.rel (%p265) target = $region52
        $region51: #{bottleneck_forward.4} parent=35 // pred_region
          %268 = dma.done [#allocation9], 4096
        $region52: #{bottleneck_forward.4} parent=35 // pred_fallthru
          _
        %s269 = sand.u32 %s36, 1
        %s270 = scalar_lea.sflag [#allocation3], %s269
        %s271 = sand.u32 %s36, 1
        %s272 = smul.addr %s271, 296
        %s273 = scalar_lea.vmem [#allocation2], %s272
        %p274 = pneg %p49
        %p275 = pneg %p46
        %p276 = pneg %p70
        %p277 = pneg %p67
        %p278 = pneg %p91
        %p279 = pneg %p88
        %p280 = pneg %p112
        %p281 = pneg %p109
        %p282 = pneg %p138
        %p283 = pneg %p135
        %s284 = sand.u32 %s125, 1
        %s285 = scalar_lea.sflag [#allocation4], %s284
        %s286 = sand.u32 %s125, 1
        %s287 = smul.addr %s286, 256
        %s288 = scalar_lea.vmem [#allocation10], %s287
        %p289 = pneg %p164
        %p290 = pneg %p161
        %s291 = sand.u32 %s151, 1
        %s292 = scalar_lea.sflag [#allocation12], %s291
        %s293 = sand.u32 %s151, 1
        %s294 = smul.addr %s293, 2
        %s295 = scalar_lea.vmem [#allocation11], %s294
        %v297 = vld [vmem:[%s252] sm:$0xff]
        %v298 = vld [vmem:[%s252 + $0x8] sm:$0xff]
        %v299 = vld [vmem:[%s252 + $0x10] sm:$0xff]
        %v300 = vld [vmem:[%s252 + $0x18] sm:$0xff]
        %v301 = vld [vmem:[%s252 + $0x20] sm:$0xff]
        %v302 = vld [vmem:[%s252 + $0x28] sm:$0xff]
        %v303 = vld [vmem:[%s252 + $0x30] sm:$0xff]
        %v304 = vld [vmem:[%s252 + $0x38] sm:$0xff]
        %v305 = vld [vmem:[%s252 + $0x40] sm:$0xff]
        %v306 = vld [vmem:[%s252 + $0x48] sm:$0xff]
        %v307 = vld [vmem:[%s252 + $0x50] sm:$0xff]
        %v308 = vld [vmem:[%s252 + $0x58] sm:$0xff]
        %v309 = vld [vmem:[%s252 + $0x60] sm:$0xff]
        %v310 = vld [vmem:[%s252 + $0x68] sm:$0xff]
        %v311 = vld [vmem:[%s252 + $0x70] sm:$0xff]
        %v312 = vld [vmem:[%s252 + $0x78] sm:$0xff]
        %v313 = vld [vmem:[%s252 + $0x80] sm:$0xff]
        %v314 = vld [vmem:[%s252 + $0x88] sm:$0xff]
        %v315 = vld [vmem:[%s252 + $0x90] sm:$0xff]
        %v316 = vld [vmem:[%s252 + $0x98] sm:$0xff]
        %v317 = vld [vmem:[%s252 + $0xa0] sm:$0xff]
        %v318 = vld [vmem:[%s252 + $0xa8] sm:$0xff]
        %v319 = vld [vmem:[%s252 + $0xb0] sm:$0xff]
        %v320 = vld [vmem:[%s252 + $0xb8] sm:$0xff]
        %v321 = vld [vmem:[%s252 + $0xc0] sm:$0xff]
        %v322 = vld [vmem:[%s252 + $0xc8] sm:$0xff]
        %v323 = vld [vmem:[%s252 + $0xd0] sm:$0xff]
        %v324 = vld [vmem:[%s252 + $0xd8] sm:$0xff]
        %v325 = vld [vmem:[%s252 + $0xe0] sm:$0xff]
        %v326 = vld [vmem:[%s252 + $0xe8] sm:$0xff]
        %v327 = vld [vmem:[%s252 + $0xf0] sm:$0xff]
        %v328 = vld [vmem:[%s252 + $0xf8] sm:$0xff]
        %v329 = vpack.c.bf16 %v298, %v297
        %v330 = vpack.c.bf16 %v300, %v299
        %v331 = vpack.c.bf16 %v302, %v301
        %v332 = vpack.c.bf16 %v304, %v303
        %v333 = vpack.c.bf16 %v306, %v305
        %v334 = vpack.c.bf16 %v308, %v307
        %v335 = vpack.c.bf16 %v310, %v309
        %v336 = vpack.c.bf16 %v312, %v311
        %v337 = vpack.c.bf16 %v314, %v313
        %v338 = vpack.c.bf16 %v316, %v315
        %v339 = vpack.c.bf16 %v318, %v317
        %v340 = vpack.c.bf16 %v320, %v319
        %v341 = vpack.c.bf16 %v322, %v321
        %v342 = vpack.c.bf16 %v324, %v323
        %v343 = vpack.c.bf16 %v326, %v325
        %v344 = vpack.c.bf16 %v328, %v327
        %v345 = vld [vmem:[#allocation5] sm:$0xf]
        %v346 = vld [vmem:[#allocation5 + $0x4] sm:$0xf]
        %v347 = vld [vmem:[#allocation5 + $0x8] sm:$0xf]
        %v348 = vld [vmem:[#allocation5 + $0xc] sm:$0xf]
        %v349 = vld [vmem:[#allocation5 + $0x10] sm:$0xf]
        %v350 = vld [vmem:[#allocation5 + $0x14] sm:$0xf]
        %v351 = vld [vmem:[#allocation5 + $0x18] sm:$0xf]
        %v352 = vld [vmem:[#allocation5 + $0x1c] sm:$0xf]
        %v353 = vld [vmem:[#allocation5 + $0x20] sm:$0xf]
        %v354 = vld [vmem:[#allocation5 + $0x24] sm:$0xf]
        %v355 = vld [vmem:[#allocation5 + $0x28] sm:$0xf]
        %v356 = vld [vmem:[#allocation5 + $0x2c] sm:$0xf]
        %v357 = vld [vmem:[#allocation5 + $0x30] sm:$0xf]
        %v358 = vld [vmem:[#allocation5 + $0x34] sm:$0xf]
        %v359 = vld [vmem:[#allocation5 + $0x38] sm:$0xf]
        %v360 = vld [vmem:[#allocation5 + $0x3c] sm:$0xf]
        %v361 = vld [vmem:[%s252 + $0x1] sm:$0xff]
        %v362 = vld [vmem:[%s252 + $0x9] sm:$0xff]
        %v363 = vld [vmem:[%s252 + $0x11] sm:$0xff]
        %v364 = vld [vmem:[%s252 + $0x19] sm:$0xff]
        %v365 = vld [vmem:[%s252 + $0x21] sm:$0xff]
        %v366 = vld [vmem:[%s252 + $0x29] sm:$0xff]
        %v367 = vld [vmem:[%s252 + $0x31] sm:$0xff]
        %v368 = vld [vmem:[%s252 + $0x39] sm:$0xff]
        %v369 = vld [vmem:[%s252 + $0x41] sm:$0xff]
        %v370 = vld [vmem:[%s252 + $0x49] sm:$0xff]
        %v371 = vld [vmem:[%s252 + $0x51] sm:$0xff]
        %v372 = vld [vmem:[%s252 + $0x59] sm:$0xff]
        %v373 = vld [vmem:[%s252 + $0x61] sm:$0xff]
        %v374 = vld [vmem:[%s252 + $0x69] sm:$0xff]
        %v375 = vld [vmem:[%s252 + $0x71] sm:$0xff]
        %v376 = vld [vmem:[%s252 + $0x79] sm:$0xff]
        %v377 = vld [vmem:[%s252 + $0x81] sm:$0xff]
        %v378 = vld [vmem:[%s252 + $0x89] sm:$0xff]
        %v379 = vld [vmem:[%s252 + $0x91] sm:$0xff]
        %v380 = vld [vmem:[%s252 + $0x99] sm:$0xff]
        %v381 = vld [vmem:[%s252 + $0xa1] sm:$0xff]
        %v382 = vld [vmem:[%s252 + $0xa9] sm:$0xff]
        %v383 = vld [vmem:[%s252 + $0xb1] sm:$0xff]
        %v384 = vld [vmem:[%s252 + $0xb9] sm:$0xff]
        %v385 = vld [vmem:[%s252 + $0xc1] sm:$0xff]
        %v386 = vld [vmem:[%s252 + $0xc9] sm:$0xff]
        %v387 = vld [vmem:[%s252 + $0xd1] sm:$0xff]
        %v388 = vld [vmem:[%s252 + $0xd9] sm:$0xff]
        %v389 = vld [vmem:[%s252 + $0xe1] sm:$0xff]
        %v390 = vld [vmem:[%s252 + $0xe9] sm:$0xff]
        %v391 = vld [vmem:[%s252 + $0xf1] sm:$0xff]
        %v392 = vld [vmem:[%s252 + $0xf9] sm:$0xff]
        %v393 = vpack.c.bf16 %v362, %v361
        %v394 = vpack.c.bf16 %v364, %v363
        %v395 = vpack.c.bf16 %v366, %v365
        %v396 = vpack.c.bf16 %v368, %v367
        %v397 = vpack.c.bf16 %v370, %v369
        %v398 = vpack.c.bf16 %v372, %v371
        %v399 = vpack.c.bf16 %v374, %v373
        %v400 = vpack.c.bf16 %v376, %v375
        %v401 = vpack.c.bf16 %v378, %v377
        %v402 = vpack.c.bf16 %v380, %v379
        %v403 = vpack.c.bf16 %v382, %v381
        %v404 = vpack.c.bf16 %v384, %v383
        %v405 = vpack.c.bf16 %v386, %v385
        %v406 = vpack.c.bf16 %v388, %v387
        %v407 = vpack.c.bf16 %v390, %v389
        %v408 = vpack.c.bf16 %v392, %v391
        %s409 = scalar_lea.vmem [#allocation5], 64
        %v410 = vld [vmem:[%s409] sm:$0xf]
        %v411 = vld [vmem:[%s409 + $0x4] sm:$0xf]
        %v412 = vld [vmem:[%s409 + $0x8] sm:$0xf]
        %v413 = vld [vmem:[%s409 + $0xc] sm:$0xf]
        %v414 = vld [vmem:[%s409 + $0x10] sm:$0xf]
        %v415 = vld [vmem:[%s409 + $0x14] sm:$0xf]
        %v416 = vld [vmem:[%s409 + $0x18] sm:$0xf]
        %v417 = vld [vmem:[%s409 + $0x1c] sm:$0xf]
        %v418 = vld [vmem:[%s409 + $0x20] sm:$0xf]
        %v419 = vld [vmem:[%s409 + $0x24] sm:$0xf]
        %v420 = vld [vmem:[%s409 + $0x28] sm:$0xf]
        %v421 = vld [vmem:[%s409 + $0x2c] sm:$0xf]
        %v422 = vld [vmem:[%s409 + $0x30] sm:$0xf]
        %v423 = vld [vmem:[%s409 + $0x34] sm:$0xf]
        %v424 = vld [vmem:[%s409 + $0x38] sm:$0xf]
        %v425 = vld [vmem:[%s409 + $0x3c] sm:$0xf]
        %v442 = vunpack.c.l.b16 %v410
        %v443 = vunpack.c.l.b16 %v411
        %v444 = vunpack.c.l.b16 %v412
        %v445 = vunpack.c.l.b16 %v413
        %v446 = vunpack.c.l.b16 %v414
        %v447 = vunpack.c.l.b16 %v415
        %v448 = vunpack.c.l.b16 %v416
        %v449 = vunpack.c.l.b16 %v417
        %v450 = vunpack.c.l.b16 %v418
        %v451 = vunpack.c.l.b16 %v419
        %v452 = vunpack.c.l.b16 %v420
        %v453 = vunpack.c.l.b16 %v421
        %v454 = vunpack.c.l.b16 %v422
        %v455 = vunpack.c.l.b16 %v423
        %v456 = vunpack.c.l.b16 %v424
        %v457 = vunpack.c.l.b16 %v425
        %v458 = vpack.c.b16 %v443, %v442
        %v459 = vpack.c.b16 %v445, %v444
        %v460 = vpack.c.b16 %v447, %v446
        %v461 = vpack.c.b16 %v449, %v448
        %v462 = vpack.c.b16 %v451, %v450
        %v463 = vpack.c.b16 %v453, %v452
        %v464 = vpack.c.b16 %v455, %v454
        %v465 = vpack.c.b16 %v457, %v456
        %474 = vmatprep.subr.bf16.mxu0 0
        %475 = vmatpush1.bf16.msra.mxu0 %v458
        %476 = vmatprep.subr.bf16.mxu0 0
        %477 = vmatpush1.bf16.msra.mxu0 %v459
        %478 = vmatprep.subr.bf16.mxu0 0
        %479 = vmatpush1.bf16.msra.mxu0 %v460
        %480 = vmatprep.subr.bf16.mxu0 0
        %481 = vmatpush1.bf16.msra.mxu0 %v461
        %482 = vmatprep.subr.bf16.mxu0 0
        %483 = vmatpush1.bf16.msra.mxu0 %v462
        %484 = vmatprep.subr.bf16.mxu0 0
        %485 = vmatpush1.bf16.msra.mxu0 %v463
        %486 = vmatprep.subr.bf16.mxu0 0
        %487 = vmatpush1.bf16.msra.mxu0 %v464
        %488 = vmatprep.subr.bf16.mxu0 0
        %489 = vmatpush1.bf16.msra.mxu0 %v465
        %490 = vmatprep.subr.bf16.mxu0 0
        %491 = vmatpush1.bf16.msra.mxu0 0
        %492 = vmatprep.subr.bf16.mxu0 0
        %493 = vmatpush1.bf16.msra.mxu0 0
        %494 = vmatprep.subr.bf16.mxu0 0
        %495 = vmatpush1.bf16.msra.mxu0 0
        %496 = vmatprep.subr.bf16.mxu0 0
        %497 = vmatpush1.bf16.msra.mxu0 0
        %498 = vmatprep.subr.bf16.mxu0 0
        %499 = vmatpush1.bf16.msra.mxu0 0
        %500 = vmatprep.subr.bf16.mxu0 0
        %501 = vmatpush1.bf16.msra.mxu0 0
        %502 = vmatprep.subr.bf16.mxu0 0
        %503 = vmatpush1.bf16.msra.mxu0 0
        %504 = vmatprep.subr.bf16.mxu0 0
        %505 = vmatpush1.bf16.msra.mxu0 0
        %506 = vmatprep.mubr.bf16.mxu0 0
        %507 = vmatmul.mubr.bf16.gmra.mrb[0].mxu0 %v393
        %v508 = vpop.f32.mrb[0].mxu0
        %v509 = vadd.f32 0.0, %v508
        %v510 = vpop.f32.mrb[0].mxu0
        %v511 = vpop.f32.mrb[0].mxu0
        %v512 = vadd.f32 0.0, %v511
        %v513 = vpop.f32.mrb[0].mxu0
        %514 = vmatprep.mubr.bf16.mxu0 0
        %515 = vmatmul.mubr.bf16.gmra.mrb[0].mxu0 %v394
        %v516 = vpop.f32.mrb[0].mxu0
        %v517 = vadd.f32 0.0, %v516
        %v518 = vpop.f32.mrb[0].mxu0
        %v519 = vpop.f32.mrb[0].mxu0
        %v520 = vadd.f32 0.0, %v519
        %v521 = vpop.f32.mrb[0].mxu0
        %522 = vmatprep.mubr.bf16.mxu0 0
        %523 = vmatmul.mubr.bf16.gmra.mrb[0].mxu0 %v395
        %v524 = vpop.f32.mrb[0].mxu0
        %v525 = vadd.f32 0.0, %v524
        %v526 = vpop.f32.mrb[0].mxu0
        %v527 = vpop.f32.mrb[0].mxu0
        %v528 = vadd.f32 0.0, %v527
        %v529 = vpop.f32.mrb[0].mxu0
        %530 = vmatprep.mubr.bf16.mxu0 0
        %531 = vmatmul.mubr.bf16.gmra.mrb[0].mxu0 %v396
        %v532 = vpop.f32.mrb[0].mxu0
        %v533 = vadd.f32 0.0, %v532
        %v534 = vpop.f32.mrb[0].mxu0
        %v535 = vpop.f32.mrb[0].mxu0
        %v536 = vadd.f32 0.0, %v535
        %v537 = vpop.f32.mrb[0].mxu0
        %538 = vmatprep.mubr.bf16.mxu0 0
        %539 = vmatmul.mubr.bf16.gmra.mrb[0].mxu0 %v397
        %v540 = vpop.f32.mrb[0].mxu0
        %v541 = vadd.f32 0.0, %v540
        %v542 = vpop.f32.mrb[0].mxu0
        %v543 = vpop.f32.mrb[0].mxu0
        %v544 = vadd.f32 0.0, %v543
        %v545 = vpop.f32.mrb[0].mxu0
        %546 = vmatprep.mubr.bf16.mxu0 0
        %547 = vmatmul.mubr.bf16.gmra.mrb[0].mxu0 %v398
        %v548 = vpop.f32.mrb[0].mxu0
        %v549 = vadd.f32 0.0, %v548
        %v550 = vpop.f32.mrb[0].mxu0
        %v551 = vpop.f32.mrb[0].mxu0
        %v552 = vadd.f32 0.0, %v551
        %v553 = vpop.f32.mrb[0].mxu0
        %554 = vmatprep.mubr.bf16.mxu0 0
        %555 = vmatmul.mubr.bf16.gmra.mrb[0].mxu0 %v399
        %v556 = vpop.f32.mrb[0].mxu0
        %v557 = vadd.f32 0.0, %v556
        %v558 = vpop.f32.mrb[0].mxu0
        %v559 = vpop.f32.mrb[0].mxu0
        %v560 = vadd.f32 0.0, %v559
        %v561 = vpop.f32.mrb[0].mxu0
        %562 = vmatprep.mubr.bf16.mxu0 0
        %563 = vmatmul.mubr.bf16.gmra.mrb[0].mxu0 %v400
        %v564 = vpop.f32.mrb[0].mxu0
        %v565 = vadd.f32 0.0, %v564
        %v566 = vpop.f32.mrb[0].mxu0
        %v567 = vpop.f32.mrb[0].mxu0
        %v568 = vadd.f32 0.0, %v567
        %v569 = vpop.f32.mrb[0].mxu0
        %570 = vmatprep.mubr.bf16.mxu0 0
        %571 = vmatmul.mubr.bf16.gmra.mrb[0].mxu0 %v401
        %v572 = vpop.f32.mrb[0].mxu0
        %v573 = vadd.f32 0.0, %v572
        %v574 = vpop.f32.mrb[0].mxu0
        %v575 = vpop.f32.mrb[0].mxu0
        %v576 = vadd.f32 0.0, %v575
        %v577 = vpop.f32.mrb[0].mxu0
        %578 = vmatprep.mubr.bf16.mxu0 0
        %579 = vmatmul.mubr.bf16.gmra.mrb[0].mxu0 %v402
        %v580 = vpop.f32.mrb[0].mxu0
        %v581 = vadd.f32 0.0, %v580
        %v582 = vpop.f32.mrb[0].mxu0
        %v583 = vpop.f32.mrb[0].mxu0
        %v584 = vadd.f32 0.0, %v583
        %v585 = vpop.f32.mrb[0].mxu0
        %586 = vmatprep.mubr.bf16.mxu0 0
        %587 = vmatmul.mubr.bf16.gmra.mrb[0].mxu0 %v403
        %v588 = vpop.f32.mrb[0].mxu0
        %v589 = vadd.f32 0.0, %v588
        %v590 = vpop.f32.mrb[0].mxu0
        %v591 = vpop.f32.mrb[0].mxu0
        %v592 = vadd.f32 0.0, %v591
        %v593 = vpop.f32.mrb[0].mxu0
        %594 = vmatprep.mubr.bf16.mxu0 0
        %595 = vmatmul.mubr.bf16.gmra.mrb[0].mxu0 %v404
        %v596 = vpop.f32.mrb[0].mxu0
        %v597 = vadd.f32 0.0, %v596
        %v598 = vpop.f32.mrb[0].mxu0
        %v599 = vpop.f32.mrb[0].mxu0
        %v600 = vadd.f32 0.0, %v599
        %v601 = vpop.f32.mrb[0].mxu0
        %602 = vmatprep.mubr.bf16.mxu0 0
        %603 = vmatmul.mubr.bf16.gmra.mrb[0].mxu0 %v405
        %v604 = vpop.f32.mrb[0].mxu0
        %v605 = vadd.f32 0.0, %v604
        %v606 = vpop.f32.mrb[0].mxu0
        %v607 = vpop.f32.mrb[0].mxu0
        %v608 = vadd.f32 0.0, %v607
        %v609 = vpop.f32.mrb[0].mxu0
        %610 = vmatprep.mubr.bf16.mxu0 0
        %611 = vmatmul.mubr.bf16.gmra.mrb[0].mxu0 %v406
        %v612 = vpop.f32.mrb[0].mxu0
        %v613 = vadd.f32 0.0, %v612
        %v614 = vpop.f32.mrb[0].mxu0
        %v615 = vpop.f32.mrb[0].mxu0
        %v616 = vadd.f32 0.0, %v615
        %v617 = vpop.f32.mrb[0].mxu0
        %618 = vmatprep.mubr.bf16.mxu0 0
        %619 = vmatmul.mubr.bf16.gmra.mrb[0].mxu0 %v407
        %v620 = vpop.f32.mrb[0].mxu0
        %v621 = vadd.f32 0.0, %v620
        %v622 = vpop.f32.mrb[0].mxu0
        %v623 = vpop.f32.mrb[0].mxu0
        %v624 = vadd.f32 0.0, %v623
        %v625 = vpop.f32.mrb[0].mxu0
        %626 = vmatprep.mubr.bf16.mxu0 0
        %627 = vmatmul.mubr.bf16.gmra.mrb[0].mxu0 %v408
        %v628 = vpop.f32.mrb[0].mxu0
        %v629 = vadd.f32 0.0, %v628
        %v630 = vpop.f32.mrb[0].mxu0
        %v631 = vpop.f32.mrb[0].mxu0
        %v632 = vadd.f32 0.0, %v631
        %v633 = vpop.f32.mrb[0].mxu0
        %634 = vdwg.mxu0
        %v651 = vunpack.c.l.b16 %v345
        %v652 = vunpack.c.l.b16 %v346
        %v653 = vunpack.c.l.b16 %v347
        %v654 = vunpack.c.l.b16 %v348
        %v655 = vunpack.c.l.b16 %v349
        %v656 = vunpack.c.l.b16 %v350
        %v657 = vunpack.c.l.b16 %v351
        %v658 = vunpack.c.l.b16 %v352
        %v659 = vunpack.c.l.b16 %v353
        %v660 = vunpack.c.l.b16 %v354
        %v661 = vunpack.c.l.b16 %v355
        %v662 = vunpack.c.l.b16 %v356
        %v663 = vunpack.c.l.b16 %v357
        %v664 = vunpack.c.l.b16 %v358
        %v665 = vunpack.c.l.b16 %v359
        %v666 = vunpack.c.l.b16 %v360
        %v667 = vpack.c.b16 %v652, %v651
        %v668 = vpack.c.b16 %v654, %v653
        %v669 = vpack.c.b16 %v656, %v655
        %v670 = vpack.c.b16 %v658, %v657
        %v671 = vpack.c.b16 %v660, %v659
        %v672 = vpack.c.b16 %v662, %v661
        %v673 = vpack.c.b16 %v664, %v663
        %v674 = vpack.c.b16 %v666, %v665
        %683 = vmatprep.subr.bf16.mxu0 0
        %684 = vmatpush1.bf16.msra.mxu0 %v667
        %685 = vmatprep.subr.bf16.mxu0 0
        %686 = vmatpush1.bf16.msra.mxu0 %v668
        %687 = vmatprep.subr.bf16.mxu0 0
        %688 = vmatpush1.bf16.msra.mxu0 %v669
        %689 = vmatprep.subr.bf16.mxu0 0
        %690 = vmatpush1.bf16.msra.mxu0 %v670
        %691 = vmatprep.subr.bf16.mxu0 0
        %692 = vmatpush1.bf16.msra.mxu0 %v671
        %693 = vmatprep.subr.bf16.mxu0 0
        %694 = vmatpush1.bf16.msra.mxu0 %v672
        %695 = vmatprep.subr.bf16.mxu0 0
        %696 = vmatpush1.bf16.msra.mxu0 %v673
        %697 = vmatprep.subr.bf16.mxu0 0
        %698 = vmatpush1.bf16.msra.mxu0 %v674
        %699 = vmatprep.subr.bf16.mxu0 0
        %700 = vmatpush1.bf16.msra.mxu0 0
        %701 = vmatprep.subr.bf16.mxu0 0
        %702 = vmatpush1.bf16.msra.mxu0 0
        %703 = vmatprep.subr.bf16.mxu0 0
        %704 = vmatpush1.bf16.msra.mxu0 0
        %705 = vmatprep.subr.bf16.mxu0 0
        %706 = vmatpush1.bf16.msra.mxu0 0
        %707 = vmatprep.subr.bf16.mxu0 0
        %708 = vmatpush1.bf16.msra.mxu0 0
        %709 = vmatprep.subr.bf16.mxu0 0
        %710 = vmatpush1.bf16.msra.mxu0 0
        %711 = vmatprep.subr.bf16.mxu0 0
        %712 = vmatpush1.bf16.msra.mxu0 0
        %713 = vmatprep.subr.bf16.mxu0 0
        %714 = vmatpush1.bf16.msra.mxu0 0
        %715 = vmatprep.mubr.bf16.mxu0 0
        %716 = vmatmul.mubr.bf16.gmra.mrb[0].mxu0 %v329
        %v717 = vpop.f32.mrb[0].mxu0
        %v718 = vadd.f32 %v509, %v717
        %v719 = vpop.f32.mrb[0].mxu0
        %v720 = vpop.f32.mrb[0].mxu0
        %v721 = vadd.f32 %v512, %v720
        %v722 = vpop.f32.mrb[0].mxu0
        %723 = vmatprep.mubr.bf16.mxu0 0
        %724 = vmatmul.mubr.bf16.gmra.mrb[0].mxu0 %v330
        %v725 = vpop.f32.mrb[0].mxu0
        %v726 = vadd.f32 %v517, %v725
        %v727 = vpop.f32.mrb[0].mxu0
        %v728 = vpop.f32.mrb[0].mxu0
        %v729 = vadd.f32 %v520, %v728
        %v730 = vpop.f32.mrb[0].mxu0
        %731 = vmatprep.mubr.bf16.mxu0 0
        %732 = vmatmul.mubr.bf16.gmra.mrb[0].mxu0 %v331
        %v733 = vpop.f32.mrb[0].mxu0
        %v734 = vadd.f32 %v525, %v733
        %v735 = vpop.f32.mrb[0].mxu0
        %v736 = vpop.f32.mrb[0].mxu0
        %v737 = vadd.f32 %v528, %v736
        %v738 = vpop.f32.mrb[0].mxu0
        %739 = vmatprep.mubr.bf16.mxu0 0
        %740 = vmatmul.mubr.bf16.gmra.mrb[0].mxu0 %v332
        %v741 = vpop.f32.mrb[0].mxu0
        %v742 = vadd.f32 %v533, %v741
        %v743 = vpop.f32.mrb[0].mxu0
        %v744 = vpop.f32.mrb[0].mxu0
        %v745 = vadd.f32 %v536, %v744
        %v746 = vpop.f32.mrb[0].mxu0
        %747 = vmatprep.mubr.bf16.mxu0 0
        %748 = vmatmul.mubr.bf16.gmra.mrb[0].mxu0 %v333
        %v749 = vpop.f32.mrb[0].mxu0
        %v750 = vadd.f32 %v541, %v749
        %v751 = vpop.f32.mrb[0].mxu0
        %v752 = vpop.f32.mrb[0].mxu0
        %v753 = vadd.f32 %v544, %v752
        %v754 = vpop.f32.mrb[0].mxu0
        %755 = vmatprep.mubr.bf16.mxu0 0
        %756 = vmatmul.mubr.bf16.gmra.mrb[0].mxu0 %v334
        %v757 = vpop.f32.mrb[0].mxu0
        %v758 = vadd.f32 %v549, %v757
        %v759 = vpop.f32.mrb[0].mxu0
        %v760 = vpop.f32.mrb[0].mxu0
        %v761 = vadd.f32 %v552, %v760
        %v762 = vpop.f32.mrb[0].mxu0
        %763 = vmatprep.mubr.bf16.mxu0 0
        %764 = vmatmul.mubr.bf16.gmra.mrb[0].mxu0 %v335
        %v765 = vpop.f32.mrb[0].mxu0
        %v766 = vadd.f32 %v557, %v765
        %v767 = vpop.f32.mrb[0].mxu0
        %v768 = vpop.f32.mrb[0].mxu0
        %v769 = vadd.f32 %v560, %v768
        %v770 = vpop.f32.mrb[0].mxu0
        %771 = vmatprep.mubr.bf16.mxu0 0
        %772 = vmatmul.mubr.bf16.gmra.mrb[0].mxu0 %v336
        %v773 = vpop.f32.mrb[0].mxu0
        %v774 = vadd.f32 %v565, %v773
        %v775 = vpop.f32.mrb[0].mxu0
        %v776 = vpop.f32.mrb[0].mxu0
        %v777 = vadd.f32 %v568, %v776
        %v778 = vpop.f32.mrb[0].mxu0
        %779 = vmatprep.mubr.bf16.mxu0 0
        %780 = vmatmul.mubr.bf16.gmra.mrb[0].mxu0 %v337
        %v781 = vpop.f32.mrb[0].mxu0
        %v782 = vadd.f32 %v573, %v781
        %v783 = vpop.f32.mrb[0].mxu0
        %v784 = vpop.f32.mrb[0].mxu0
        %v785 = vadd.f32 %v576, %v784
        %v786 = vpop.f32.mrb[0].mxu0
        %787 = vmatprep.mubr.bf16.mxu0 0
        %788 = vmatmul.mubr.bf16.gmra.mrb[0].mxu0 %v338
        %v789 = vpop.f32.mrb[0].mxu0
        %v790 = vadd.f32 %v581, %v789
        %v791 = vpop.f32.mrb[0].mxu0
        %v792 = vpop.f32.mrb[0].mxu0
        %v793 = vadd.f32 %v584, %v792
        %v794 = vpop.f32.mrb[0].mxu0
        %795 = vmatprep.mubr.bf16.mxu0 0
        %796 = vmatmul.mubr.bf16.gmra.mrb[0].mxu0 %v339
        %v797 = vpop.f32.mrb[0].mxu0
        %v798 = vadd.f32 %v589, %v797
        %v799 = vpop.f32.mrb[0].mxu0
        %v800 = vpop.f32.mrb[0].mxu0
        %v801 = vadd.f32 %v592, %v800
        %v802 = vpop.f32.mrb[0].mxu0
        %803 = vmatprep.mubr.bf16.mxu0 0
        %804 = vmatmul.mubr.bf16.gmra.mrb[0].mxu0 %v340
        %v805 = vpop.f32.mrb[0].mxu0
        %v806 = vadd.f32 %v597, %v805
        %v807 = vpop.f32.mrb[0].mxu0
        %v808 = vpop.f32.mrb[0].mxu0
        %v809 = vadd.f32 %v600, %v808
        %v810 = vpop.f32.mrb[0].mxu0
        %811 = vmatprep.mubr.bf16.mxu0 0
        %812 = vmatmul.mubr.bf16.gmra.mrb[0].mxu0 %v341
        %v813 = vpop.f32.mrb[0].mxu0
        %v814 = vadd.f32 %v605, %v813
        %v815 = vpop.f32.mrb[0].mxu0
        %v816 = vpop.f32.mrb[0].mxu0
        %v817 = vadd.f32 %v608, %v816
        %v818 = vpop.f32.mrb[0].mxu0
        %819 = vmatprep.mubr.bf16.mxu0 0
        %820 = vmatmul.mubr.bf16.gmra.mrb[0].mxu0 %v342
        %v821 = vpop.f32.mrb[0].mxu0
        %v822 = vadd.f32 %v613, %v821
        %v823 = vpop.f32.mrb[0].mxu0
        %v824 = vpop.f32.mrb[0].mxu0
        %v825 = vadd.f32 %v616, %v824
        %v826 = vpop.f32.mrb[0].mxu0
        %827 = vmatprep.mubr.bf16.mxu0 0
        %828 = vmatmul.mubr.bf16.gmra.mrb[0].mxu0 %v343
        %v829 = vpop.f32.mrb[0].mxu0
        %v830 = vadd.f32 %v621, %v829
        %v831 = vpop.f32.mrb[0].mxu0
        %v832 = vpop.f32.mrb[0].mxu0
        %v833 = vadd.f32 %v624, %v832
        %v834 = vpop.f32.mrb[0].mxu0
        %835 = vmatprep.mubr.bf16.mxu0 0
        %836 = vmatmul.mubr.bf16.gmra.mrb[0].mxu0 %v344
        %v837 = vpop.f32.mrb[0].mxu0
        %v838 = vadd.f32 %v629, %v837
        %v839 = vpop.f32.mrb[0].mxu0
        %v840 = vpop.f32.mrb[0].mxu0
        %v841 = vadd.f32 %v632, %v840
        %v842 = vpop.f32.mrb[0].mxu0
        %843 = vdwg.mxu0
        %v844 = vld [vmem:[%s252 + $0x2] sm:$0xff]
        %v845 = vld [vmem:[%s252 + $0xa] sm:$0xff]
        %v846 = vld [vmem:[%s252 + $0x12] sm:$0xff]
        %v847 = vld [vmem:[%s252 + $0x1a] sm:$0xff]
        %v848 = vld [vmem:[%s252 + $0x22] sm:$0xff]
        %v849 = vld [vmem:[%s252 + $0x2a] sm:$0xff]
        %v850 = vld [vmem:[%s252 + $0x32] sm:$0xff]
        %v851 = vld [vmem:[%s252 + $0x3a] sm:$0xff]
        %v852 = vld [vmem:[%s252 + $0x42] sm:$0xff]
        %v853 = vld [vmem:[%s252 + $0x4a] sm:$0xff]
        %v854 = vld [vmem:[%s252 + $0x52] sm:$0xff]
        %v855 = vld [vmem:[%s252 + $0x5a] sm:$0xff]
        %v856 = vld [vmem:[%s252 + $0x62] sm:$0xff]
        %v857 = vld [vmem:[%s252 + $0x6a] sm:$0xff]
        %v858 = vld [vmem:[%s252 + $0x72] sm:$0xff]
        %v859 = vld [vmem:[%s252 + $0x7a] sm:$0xff]
        %v860 = vld [vmem:[%s252 + $0x82] sm:$0xff]
        %v861 = vld [vmem:[%s252 + $0x8a] sm:$0xff]
        %v862 = vld [vmem:[%s252 + $0x92] sm:$0xff]
        %v863 = vld [vmem:[%s252 + $0x9a] sm:$0xff]
        %v864 = vld [vmem:[%s252 + $0xa2] sm:$0xff]
        %v865 = vld [vmem:[%s252 + $0xaa] sm:$0xff]
        %v866 = vld [vmem:[%s252 + $0xb2] sm:$0xff]
        %v867 = vld [vmem:[%s252 + $0xba] sm:$0xff]
        %v868 = vld [vmem:[%s252 + $0xc2] sm:$0xff]
        %v869 = vld [vmem:[%s252 + $0xca] sm:$0xff]
        %v870 = vld [vmem:[%s252 + $0xd2] sm:$0xff]
        %v871 = vld [vmem:[%s252 + $0xda] sm:$0xff]
        %v872 = vld [vmem:[%s252 + $0xe2] sm:$0xff]
        %v873 = vld [vmem:[%s252 + $0xea] sm:$0xff]
        %v874 = vld [vmem:[%s252 + $0xf2] sm:$0xff]
        %v875 = vld [vmem:[%s252 + $0xfa] sm:$0xff]
        %v876 = vpack.c.bf16 %v845, %v844
        %v877 = vpack.c.bf16 %v847, %v846
        %v878 = vpack.c.bf16 %v849, %v848
        %v879 = vpack.c.bf16 %v851, %v850
        %v880 = vpack.c.bf16 %v853, %v852
        %v881 = vpack.c.bf16 %v855, %v854
        %v882 = vpack.c.bf16 %v857, %v856
        %v883 = vpack.c.bf16 %v859, %v858
        %v884 = vpack.c.bf16 %v861, %v860
        %v885 = vpack.c.bf16 %v863, %v862
        %v886 = vpack.c.bf16 %v865, %v864
        %v887 = vpack.c.bf16 %v867, %v866
        %v888 = vpack.c.bf16 %v869, %v868
        %v889 = vpack.c.bf16 %v871, %v870
        %v890 = vpack.c.bf16 %v873, %v872
        %v891 = vpack.c.bf16 %v875, %v874
        %s892 = scalar_lea.vmem [#allocation5], 128
        %v893 = vld [vmem:[%s892] sm:$0xf]
        %v894 = vld [vmem:[%s892 + $0x4] sm:$0xf]
        %v895 = vld [vmem:[%s892 + $0x8] sm:$0xf]
        %v896 = vld [vmem:[%s892 + $0xc] sm:$0xf]
        %v897 = vld [vmem:[%s892 + $0x10] sm:$0xf]
        %v898 = vld [vmem:[%s892 + $0x14] sm:$0xf]
        %v899 = vld [vmem:[%s892 + $0x18] sm:$0xf]
        %v900 = vld [vmem:[%s892 + $0x1c] sm:$0xf]
        %v901 = vld [vmem:[%s892 + $0x20] sm:$0xf]
        %v902 = vld [vmem:[%s892 + $0x24] sm:$0xf]
        %v903 = vld [vmem:[%s892 + $0x28] sm:$0xf]
        %v904 = vld [vmem:[%s892 + $0x2c] sm:$0xf]
        %v905 = vld [vmem:[%s892 + $0x30] sm:$0xf]
        %v906 = vld [vmem:[%s892 + $0x34] sm:$0xf]
        %v907 = vld [vmem:[%s892 + $0x38] sm:$0xf]
        %v908 = vld [vmem:[%s892 + $0x3c] sm:$0xf]
        %v925 = vunpack.c.l.b16 %v893
        %v926 = vunpack.c.l.b16 %v894
        %v927 = vunpack.c.l.b16 %v895
        %v928 = vunpack.c.l.b16 %v896
        %v929 = vunpack.c.l.b16 %v897
        %v930 = vunpack.c.l.b16 %v898
        %v931 = vunpack.c.l.b16 %v899
        %v932 = vunpack.c.l.b16 %v900
        %v933 = vunpack.c.l.b16 %v901
        %v934 = vunpack.c.l.b16 %v902
        %v935 = vunpack.c.l.b16 %v903
        %v936 = vunpack.c.l.b16 %v904
        %v937 = vunpack.c.l.b16 %v905
        %v938 = vunpack.c.l.b16 %v906
        %v939 = vunpack.c.l.b16 %v907
        %v940 = vunpack.c.l.b16 %v908
        %v941 = vpack.c.b16 %v926, %v925
        %v942 = vpack.c.b16 %v928, %v927
        %v943 = vpack.c.b16 %v930, %v929
        %v944 = vpack.c.b16 %v932, %v931
        %v945 = vpack.c.b16 %v934, %v933
        %v946 = vpack.c.b16 %v936, %v935
        %v947 = vpack.c.b16 %v938, %v937
        %v948 = vpack.c.b16 %v940, %v939
        %957 = vmatprep.subr.bf16.mxu0 0
        %958 = vmatpush1.bf16.msra.mxu0 %v941
        %959 = vmatprep.subr.bf16.mxu0 0
        %960 = vmatpush1.bf16.msra.mxu0 %v942
        %961 = vmatprep.subr.bf16.mxu0 0
        %962 = vmatpush1.bf16.msra.mxu0 %v943
        %963 = vmatprep.subr.bf16.mxu0 0
        %964 = vmatpush1.bf16.msra.mxu0 %v944
        %965 = vmatprep.subr.bf16.mxu0 0
        %966 = vmatpush1.bf16.msra.mxu0 %v945
        %967 = vmatprep.subr.bf16.mxu0 0
        %968 = vmatpush1.bf16.msra.mxu0 %v946
        %969 = vmatprep.subr.bf16.mxu0 0
        %970 = vmatpush1.bf16.msra.mxu0 %v947
        %971 = vmatprep.subr.bf16.mxu0 0
        %972 = vmatpush1.bf16.msra.mxu0 %v948
        %973 = vmatprep.subr.bf16.mxu0 0
        %974 = vmatpush1.bf16.msra.mxu0 0
        %975 = vmatprep.subr.bf16.mxu0 0
        %976 = vmatpush1.bf16.msra.mxu0 0
        %977 = vmatprep.subr.bf16.mxu0 0
        %978 = vmatpush1.bf16.msra.mxu0 0
        %979 = vmatprep.subr.bf16.mxu0 0
        %980 = vmatpush1.bf16.msra.mxu0 0
        %981 = vmatprep.subr.bf16.mxu0 0
        %982 = vmatpush1.bf16.msra.mxu0 0
        %983 = vmatprep.subr.bf16.mxu0 0
        %984 = vmatpush1.bf16.msra.mxu0 0
        %985 = vmatprep.subr.bf16.mxu0 0
        %986 = vmatpush1.bf16.msra.mxu0 0
        %987 = vmatprep.subr.bf16.mxu0 0
        %988 = vmatpush1.bf16.msra.mxu0 0
        %989 = vmatprep.mubr.bf16.mxu0 0
        %990 = vmatmul.mubr.bf16.gmra.mrb[0].mxu0 %v876
        %v991 = vpop.f32.mrb[0].mxu0
        %v992 = vadd.f32 0.0, %v991
        %v993 = vpop.f32.mrb[0].mxu0
        %v994 = vpop.f32.mrb[0].mxu0
        %v995 = vadd.f32 0.0, %v994
        %v996 = vpop.f32.mrb[0].mxu0
        %997 = vmatprep.mubr.bf16.mxu0 0
        %998 = vmatmul.mubr.bf16.gmra.mrb[0].mxu0 %v877
        %v999 = vpop.f32.mrb[0].mxu0
        %v1000 = vadd.f32 0.0, %v999
        %v1001 = vpop.f32.mrb[0].mxu0
        %v1002 = vpop.f32.mrb[0].mxu0
        %v1003 = vadd.f32 0.0, %v1002
        %v1004 = vpop.f32.mrb[0].mxu0
        %1005 = vmatprep.mubr.bf16.mxu0 0
        %1006 = vmatmul.mubr.bf16.gmra.mrb[0].mxu0 %v878
        %v1007 = vpop.f32.mrb[0].mxu0
        %v1008 = vadd.f32 0.0, %v1007
        %v1009 = vpop.f32.mrb[0].mxu0
        %v1010 = vpop.f32.mrb[0].mxu0
        %v1011 = vadd.f32 0.0, %v1010
        %v1012 = vpop.f32.mrb[0].mxu0
        %1013 = vmatprep.mubr.bf16.mxu0 0
        %1014 = vmatmul.mubr.bf16.gmra.mrb[0].mxu0 %v879
        %v1015 = vpop.f32.mrb[0].mxu0
        %v1016 = vadd.f32 0.0, %v1015
        %v1017 = vpop.f32.mrb[0].mxu0
        %v1018 = vpop.f32.mrb[0].mxu0
        %v1019 = vadd.f32 0.0, %v1018
        %v1020 = vpop.f32.mrb[0].mxu0
        %1021 = vmatprep.mubr.bf16.mxu0 0
        %1022 = vmatmul.mubr.bf16.gmra.mrb[0].mxu0 %v880
        %v1023 = vpop.f32.mrb[0].mxu0
        %v1024 = vadd.f32 0.0, %v1023
        %v1025 = vpop.f32.mrb[0].mxu0
        %v1026 = vpop.f32.mrb[0].mxu0
        %v1027 = vadd.f32 0.0, %v1026
        %v1028 = vpop.f32.mrb[0].mxu0
        %1029 = vmatprep.mubr.bf16.mxu0 0
        %1030 = vmatmul.mubr.bf16.gmra.mrb[0].mxu0 %v881
        %v1031 = vpop.f32.mrb[0].mxu0
        %v1032 = vadd.f32 0.0, %v1031
        %v1033 = vpop.f32.mrb[0].mxu0
        %v1034 = vpop.f32.mrb[0].mxu0
        %v1035 = vadd.f32 0.0, %v1034
        %v1036 = vpop.f32.mrb[0].mxu0
        %1037 = vmatprep.mubr.bf16.mxu0 0
        %1038 = vmatmul.mubr.bf16.gmra.mrb[0].mxu0 %v882
        %v1039 = vpop.f32.mrb[0].mxu0
        %v1040 = vadd.f32 0.0, %v1039
        %v1041 = vpop.f32.mrb[0].mxu0
        %v1042 = vpop.f32.mrb[0].mxu0
        %v1043 = vadd.f32 0.0, %v1042
        %v1044 = vpop.f32.mrb[0].mxu0
        %1045 = vmatprep.mubr.bf16.mxu0 0
        %1046 = vmatmul.mubr.bf16.gmra.mrb[0].mxu0 %v883
        %v1047 = vpop.f32.mrb[0].mxu0
        %v1048 = vadd.f32 0.0, %v1047
        %v1049 = vpop.f32.mrb[0].mxu0
        %v1050 = vpop.f32.mrb[0].mxu0
        %v1051 = vadd.f32 0.0, %v1050
        %v1052 = vpop.f32.mrb[0].mxu0
        %1053 = vmatprep.mubr.bf16.mxu0 0
        %1054 = vmatmul.mubr.bf16.gmra.mrb[0].mxu0 %v884
        %v1055 = vpop.f32.mrb[0].mxu0
        %v1056 = vadd.f32 0.0, %v1055
        %v1057 = vpop.f32.mrb[0].mxu0
        %v1058 = vpop.f32.mrb[0].mxu0
        %v1059 = vadd.f32 0.0, %v1058
        %v1060 = vpop.f32.mrb[0].mxu0
        %1061 = vmatprep.mubr.bf16.mxu0 0
        %1062 = vmatmul.mubr.bf16.gmra.mrb[0].mxu0 %v885
        %v1063 = vpop.f32.mrb[0].mxu0
        %v1064 = vadd.f32 0.0, %v1063
        %v1065 = vpop.f32.mrb[0].mxu0
        %v1066 = vpop.f32.mrb[0].mxu0
        %v1067 = vadd.f32 0.0, %v1066
        %v1068 = vpop.f32.mrb[0].mxu0
        %1069 = vmatprep.mubr.bf16.mxu0 0
        %1070 = vmatmul.mubr.bf16.gmra.mrb[0].mxu0 %v886
        %v1071 = vpop.f32.mrb[0].mxu0
        %v1072 = vadd.f32 0.0, %v1071
        %v1073 = vpop.f32.mrb[0].mxu0
        %v1074 = vpop.f32.mrb[0].mxu0
        %v1075 = vadd.f32 0.0, %v1074
        %v1076 = vpop.f32.mrb[0].mxu0
        %1077 = vmatprep.mubr.bf16.mxu0 0
        %1078 = vmatmul.mubr.bf16.gmra.mrb[0].mxu0 %v887
        %v1079 = vpop.f32.mrb[0].mxu0
        %v1080 = vadd.f32 0.0, %v1079
        %v1081 = vpop.f32.mrb[0].mxu0
        %v1082 = vpop.f32.mrb[0].mxu0
        %v1083 = vadd.f32 0.0, %v1082
        %v1084 = vpop.f32.mrb[0].mxu0
        %1085 = vmatprep.mubr.bf16.mxu0 0
        %1086 = vmatmul.mubr.bf16.gmra.mrb[0].mxu0 %v888
        %v1087 = vpop.f32.mrb[0].mxu0
        %v1088 = vadd.f32 0.0, %v1087
        %v1089 = vpop.f32.mrb[0].mxu0
        %v1090 = vpop.f32.mrb[0].mxu0
        %v1091 = vadd.f32 0.0, %v1090
        %v1092 = vpop.f32.mrb[0].mxu0
        %1093 = vmatprep.mubr.bf16.mxu0 0
        %1094 = vmatmul.mubr.bf16.gmra.mrb[0].mxu0 %v889
        %v1095 = vpop.f32.mrb[0].mxu0
        %v1096 = vadd.f32 0.0, %v1095
        %v1097 = vpop.f32.mrb[0].mxu0
        %v1098 = vpop.f32.mrb[0].mxu0
        %v1099 = vadd.f32 0.0, %v1098
        %v1100 = vpop.f32.mrb[0].mxu0
        %1101 = vmatprep.mubr.bf16.mxu0 0
        %1102 = vmatmul.mubr.bf16.gmra.mrb[0].mxu0 %v890
        %v1103 = vpop.f32.mrb[0].mxu0
        %v1104 = vadd.f32 0.0, %v1103
        %v1105 = vpop.f32.mrb[0].mxu0
        %v1106 = vpop.f32.mrb[0].mxu0
        %v1107 = vadd.f32 0.0, %v1106
        %v1108 = vpop.f32.mrb[0].mxu0
        %1109 = vmatprep.mubr.bf16.mxu0 0
        %1110 = vmatmul.mubr.bf16.gmra.mrb[0].mxu0 %v891
        %v1111 = vpop.f32.mrb[0].mxu0
        %v1112 = vadd.f32 0.0, %v1111
        %v1113 = vpop.f32.mrb[0].mxu0
        %v1114 = vpop.f32.mrb[0].mxu0
        %v1115 = vadd.f32 0.0, %v1114
        %v1116 = vpop.f32.mrb[0].mxu0
        %1117 = vdwg.mxu0
        %v1118 = vadd.f32 %v718, %v992
        %v1119 = vadd.f32 %v721, %v995
        %v1120 = vadd.f32 %v726, %v1000
        %v1121 = vadd.f32 %v729, %v1003
        %v1122 = vadd.f32 %v734, %v1008
        %v1123 = vadd.f32 %v737, %v1011
        %v1124 = vadd.f32 %v742, %v1016
        %v1125 = vadd.f32 %v745, %v1019
        %v1126 = vadd.f32 %v750, %v1024
        %v1127 = vadd.f32 %v753, %v1027
        %v1128 = vadd.f32 %v758, %v1032
        %v1129 = vadd.f32 %v761, %v1035
        %v1130 = vadd.f32 %v766, %v1040
        %v1131 = vadd.f32 %v769, %v1043
        %v1132 = vadd.f32 %v774, %v1048
        %v1133 = vadd.f32 %v777, %v1051
        %v1134 = vadd.f32 %v782, %v1056
        %v1135 = vadd.f32 %v785, %v1059
        %v1136 = vadd.f32 %v790, %v1064
        %v1137 = vadd.f32 %v793, %v1067
        %v1138 = vadd.f32 %v798, %v1072
        %v1139 = vadd.f32 %v801, %v1075
        %v1140 = vadd.f32 %v806, %v1080
        %v1141 = vadd.f32 %v809, %v1083
        %v1142 = vadd.f32 %v814, %v1088
        %v1143 = vadd.f32 %v817, %v1091
        %v1144 = vadd.f32 %v822, %v1096
        %v1145 = vadd.f32 %v825, %v1099
        %v1146 = vadd.f32 %v830, %v1104
        %v1147 = vadd.f32 %v833, %v1107
        %v1148 = vadd.f32 %v838, %v1112
        %v1149 = vadd.f32 %v841, %v1115
        %v1150 = vld [vmem:[%s252 + $0x10] sm:$0xff]
        %v1151 = vld [vmem:[%s252 + $0x18] sm:$0xff]
        %v1152 = vld [vmem:[%s252 + $0x20] sm:$0xff]
        %v1153 = vld [vmem:[%s252 + $0x28] sm:$0xff]
        %v1154 = vld [vmem:[%s252 + $0x30] sm:$0xff]
        %v1155 = vld [vmem:[%s252 + $0x38] sm:$0xff]
        %v1156 = vld [vmem:[%s252 + $0x40] sm:$0xff]
        %v1157 = vld [vmem:[%s252 + $0x48] sm:$0xff]
        %v1158 = vld [vmem:[%s252 + $0x50] sm:$0xff]
        %v1159 = vld [vmem:[%s252 + $0x58] sm:$0xff]
        %v1160 = vld [vmem:[%s252 + $0x60] sm:$0xff]
        %v1161 = vld [vmem:[%s252 + $0x68] sm:$0xff]
        %v1162 = vld [vmem:[%s252 + $0x70] sm:$0xff]
        %v1163 = vld [vmem:[%s252 + $0x78] sm:$0xff]
        %v1164 = vld [vmem:[%s252 + $0x80] sm:$0xff]
        %v1165 = vld [vmem:[%s252 + $0x88] sm:$0xff]
        %v1166 = vld [vmem:[%s252 + $0x90] sm:$0xff]
        %v1167 = vld [vmem:[%s252 + $0x98] sm:$0xff]
        %v1168 = vld [vmem:[%s252 + $0xa0] sm:$0xff]
        %v1169 = vld [vmem:[%s252 + $0xa8] sm:$0xff]
        %v1170 = vld [vmem:[%s252 + $0xb0] sm:$0xff]
        %v1171 = vld [vmem:[%s252 + $0xb8] sm:$0xff]
        %v1172 = vld [vmem:[%s252 + $0xc0] sm:$0xff]
        %v1173 = vld [vmem:[%s252 + $0xc8] sm:$0xff]
        %v1174 = vld [vmem:[%s252 + $0xd0] sm:$0xff]
        %v1175 = vld [vmem:[%s252 + $0xd8] sm:$0xff]
        %v1176 = vld [vmem:[%s252 + $0xe0] sm:$0xff]
        %v1177 = vld [vmem:[%s252 + $0xe8] sm:$0xff]
        %v1178 = vld [vmem:[%s252 + $0xf0] sm:$0xff]
        %v1179 = vld [vmem:[%s252 + $0xf8] sm:$0xff]
        %v1180 = vld [vmem:[%s252 + $0x100] sm:$0xff]
        %v1181 = vld [vmem:[%s252 + $0x108] sm:$0xff]
        %v1182 = vpack.c.bf16 %v1151, %v1150
        %v1183 = vpack.c.bf16 %v1153, %v1152
        %v1184 = vpack.c.bf16 %v1155, %v1154
        %v1185 = vpack.c.bf16 %v1157, %v1156
        %v1186 = vpack.c.bf16 %v1159, %v1158
        %v1187 = vpack.c.bf16 %v1161, %v1160
        %v1188 = vpack.c.bf16 %v1163, %v1162
        %v1189 = vpack.c.bf16 %v1165, %v1164
        %v1190 = vpack.c.bf16 %v1167, %v1166
        %v1191 = vpack.c.bf16 %v1169, %v1168
        %v1192 = vpack.c.bf16 %v1171, %v1170
        %v1193 = vpack.c.bf16 %v1173, %v1172
        %v1194 = vpack.c.bf16 %v1175, %v1174
        %v1195 = vpack.c.bf16 %v1177, %v1176
        %v1196 = vpack.c.bf16 %v1179, %v1178
        %v1197 = vpack.c.bf16 %v1181, %v1180
        %s1198 = scalar_lea.vmem [#allocation5], 192
        %v1199 = vld [vmem:[%s1198] sm:$0xf]
        %v1200 = vld [vmem:[%s1198 + $0x4] sm:$0xf]
        %v1201 = vld [vmem:[%s1198 + $0x8] sm:$0xf]
        %v1202 = vld [vmem:[%s1198 + $0xc] sm:$0xf]
        %v1203 = vld [vmem:[%s1198 + $0x10] sm:$0xf]
        %v1204 = vld [vmem:[%s1198 + $0x14] sm:$0xf]
        %v1205 = vld [vmem:[%s1198 + $0x18] sm:$0xf]
        %v1206 = vld [vmem:[%s1198 + $0x1c] sm:$0xf]
        %v1207 = vld [vmem:[%s1198 + $0x20] sm:$0xf]
        %v1208 = vld [vmem:[%s1198 + $0x24] sm:$0xf]
        %v1209 = vld [vmem:[%s1198 + $0x28] sm:$0xf]
        %v1210 = vld [vmem:[%s1198 + $0x2c] sm:$0xf]
        %v1211 = vld [vmem:[%s1198 + $0x30] sm:$0xf]
        %v1212 = vld [vmem:[%s1198 + $0x34] sm:$0xf]
        %v1213 = vld [vmem:[%s1198 + $0x38] sm:$0xf]
        %v1214 = vld [vmem:[%s1198 + $0x3c] sm:$0xf]
        %v1231 = vunpack.c.l.b16 %v1199
        %v1232 = vunpack.c.l.b16 %v1200
        %v1233 = vunpack.c.l.b16 %v1201
        %v1234 = vunpack.c.l.b16 %v1202
        %v1235 = vunpack.c.l.b16 %v1203
        %v1236 = vunpack.c.l.b16 %v1204
        %v1237 = vunpack.c.l.b16 %v1205
        %v1238 = vunpack.c.l.b16 %v1206
        %v1239 = vunpack.c.l.b16 %v1207
        %v1240 = vunpack.c.l.b16 %v1208
        %v1241 = vunpack.c.l.b16 %v1209
        %v1242 = vunpack.c.l.b16 %v1210
        %v1243 = vunpack.c.l.b16 %v1211
        %v1244 = vunpack.c.l.b16 %v1212
        %v1245 = vunpack.c.l.b16 %v1213
        %v1246 = vunpack.c.l.b16 %v1214
        %v1247 = vpack.c.b16 %v1232, %v1231
        %v1248 = vpack.c.b16 %v1234, %v1233
        %v1249 = vpack.c.b16 %v1236, %v1235
        %v1250 = vpack.c.b16 %v1238, %v1237
        %v1251 = vpack.c.b16 %v1240, %v1239
        %v1252 = vpack.c.b16 %v1242, %v1241
        %v1253 = vpack.c.b16 %v1244, %v1243
        %v1254 = vpack.c.b16 %v1246, %v1245
        %1263 = vmatprep.subr.bf16.mxu0 0
        %1264 = vmatpush1.bf16.msra.mxu0 %v1247
        %1265 = vmatprep.subr.bf16.mxu0 0
        %1266 = vmatpush1.bf16.msra.mxu0 %v1248
        %1267 = vmatprep.subr.bf16.mxu0 0
        %1268 = vmatpush1.bf16.msra.mxu0 %v1249
        %1269 = vmatprep.subr.bf16.mxu0 0
        %1270 = vmatpush1.bf16.msra.mxu0 %v1250
        %1271 = vmatprep.subr.bf16.mxu0 0
        %1272 = vmatpush1.bf16.msra.mxu0 %v1251
        %1273 = vmatprep.subr.bf16.mxu0 0
        %1274 = vmatpush1.bf16.msra.mxu0 %v1252
        %1275 = vmatprep.subr.bf16.mxu0 0
        %1276 = vmatpush1.bf16.msra.mxu0 %v1253
        %1277 = vmatprep.subr.bf16.mxu0 0
        %1278 = vmatpush1.bf16.msra.mxu0 %v1254
        %1279 = vmatprep.subr.bf16.mxu0 0
        %1280 = vmatpush1.bf16.msra.mxu0 0
        %1281 = vmatprep.subr.bf16.mxu0 0
        %1282 = vmatpush1.bf16.msra.mxu0 0
        %1283 = vmatprep.subr.bf16.mxu0 0
        %1284 = vmatpush1.bf16.msra.mxu0 0
        %1285 = vmatprep.subr.bf16.mxu0 0
        %1286 = vmatpush1.bf16.msra.mxu0 0
        %1287 = vmatprep.subr.bf16.mxu0 0
        %1288 = vmatpush1.bf16.msra.mxu0 0
        %1289 = vmatprep.subr.bf16.mxu0 0
        %1290 = vmatpush1.bf16.msra.mxu0 0
        %1291 = vmatprep.subr.bf16.mxu0 0
        %1292 = vmatpush1.bf16.msra.mxu0 0
        %1293 = vmatprep.subr.bf16.mxu0 0
        %1294 = vmatpush1.bf16.msra.mxu0 0
        %1295 = vmatprep.mubr.bf16.mxu0 0
        %1296 = vmatmul.mubr.bf16.gmra.mrb[0].mxu0 %v1182
        %v1297 = vpop.f32.mrb[0].mxu0
        %v1298 = vadd.f32 0.0, %v1297
        %v1299 = vpop.f32.mrb[0].mxu0
        %v1300 = vpop.f32.mrb[0].mxu0
        %v1301 = vadd.f32 0.0, %v1300
        %v1302 = vpop.f32.mrb[0].mxu0
        %1303 = vmatprep.mubr.bf16.mxu0 0
        %1304 = vmatmul.mubr.bf16.gmra.mrb[0].mxu0 %v1183
        %v1305 = vpop.f32.mrb[0].mxu0
        %v1306 = vadd.f32 0.0, %v1305
        %v1307 = vpop.f32.mrb[0].mxu0
        %v1308 = vpop.f32.mrb[0].mxu0
        %v1309 = vadd.f32 0.0, %v1308
        %v1310 = vpop.f32.mrb[0].mxu0
        %1311 = vmatprep.mubr.bf16.mxu0 0
        %1312 = vmatmul.mubr.bf16.gmra.mrb[0].mxu0 %v1184
        %v1313 = vpop.f32.mrb[0].mxu0
        %v1314 = vadd.f32 0.0, %v1313
        %v1315 = vpop.f32.mrb[0].mxu0
        %v1316 = vpop.f32.mrb[0].mxu0
        %v1317 = vadd.f32 0.0, %v1316
        %v1318 = vpop.f32.mrb[0].mxu0
        %1319 = vmatprep.mubr.bf16.mxu0 0
        %1320 = vmatmul.mubr.bf16.gmra.mrb[0].mxu0 %v1185
        %v1321 = vpop.f32.mrb[0].mxu0
        %v1322 = vadd.f32 0.0, %v1321
        %v1323 = vpop.f32.mrb[0].mxu0
        %v1324 = vpop.f32.mrb[0].mxu0
        %v1325 = vadd.f32 0.0, %v1324
        %v1326 = vpop.f32.mrb[0].mxu0
        %1327 = vmatprep.mubr.bf16.mxu0 0
        %1328 = vmatmul.mubr.bf16.gmra.mrb[0].mxu0 %v1186
        %v1329 = vpop.f32.mrb[0].mxu0
        %v1330 = vadd.f32 0.0, %v1329
        %v1331 = vpop.f32.mrb[0].mxu0
        %v1332 = vpop.f32.mrb[0].mxu0
        %v1333 = vadd.f32 0.0, %v1332
        %v1334 = vpop.f32.mrb[0].mxu0
        %1335 = vmatprep.mubr.bf16.mxu0 0
        %1336 = vmatmul.mubr.bf16.gmra.mrb[0].mxu0 %v1187
        %v1337 = vpop.f32.mrb[0].mxu0
        %v1338 = vadd.f32 0.0, %v1337
        %v1339 = vpop.f32.mrb[0].mxu0
        %v1340 = vpop.f32.mrb[0].mxu0
        %v1341 = vadd.f32 0.0, %v1340
        %v1342 = vpop.f32.mrb[0].mxu0
        %1343 = vmatprep.mubr.bf16.mxu0 0
        %1344 = vmatmul.mubr.bf16.gmra.mrb[0].mxu0 %v1188
        %v1345 = vpop.f32.mrb[0].mxu0
        %v1346 = vadd.f32 0.0, %v1345
        %v1347 = vpop.f32.mrb[0].mxu0
        %v1348 = vpop.f32.mrb[0].mxu0
        %v1349 = vadd.f32 0.0, %v1348
        %v1350 = vpop.f32.mrb[0].mxu0
        %1351 = vmatprep.mubr.bf16.mxu0 0
        %1352 = vmatmul.mubr.bf16.gmra.mrb[0].mxu0 %v1189
        %v1353 = vpop.f32.mrb[0].mxu0
        %v1354 = vadd.f32 0.0, %v1353
        %v1355 = vpop.f32.mrb[0].mxu0
        %v1356 = vpop.f32.mrb[0].mxu0
        %v1357 = vadd.f32 0.0, %v1356
        %v1358 = vpop.f32.mrb[0].mxu0
        %1359 = vmatprep.mubr.bf16.mxu0 0
        %1360 = vmatmul.mubr.bf16.gmra.mrb[0].mxu0 %v1190
        %v1361 = vpop.f32.mrb[0].mxu0
        %v1362 = vadd.f32 0.0, %v1361
        %v1363 = vpop.f32.mrb[0].mxu0
        %v1364 = vpop.f32.mrb[0].mxu0
        %v1365 = vadd.f32 0.0, %v1364
        %v1366 = vpop.f32.mrb[0].mxu0
        %1367 = vmatprep.mubr.bf16.mxu0 0
        %1368 = vmatmul.mubr.bf16.gmra.mrb[0].mxu0 %v1191
        %v1369 = vpop.f32.mrb[0].mxu0
        %v1370 = vadd.f32 0.0, %v1369
        %v1371 = vpop.f32.mrb[0].mxu0
        %v1372 = vpop.f32.mrb[0].mxu0
        %v1373 = vadd.f32 0.0, %v1372
        %v1374 = vpop.f32.mrb[0].mxu0
        %1375 = vmatprep.mubr.bf16.mxu0 0
        %1376 = vmatmul.mubr.bf16.gmra.mrb[0].mxu0 %v1192
        %v1377 = vpop.f32.mrb[0].mxu0
        %v1378 = vadd.f32 0.0, %v1377
        %v1379 = vpop.f32.mrb[0].mxu0
        %v1380 = vpop.f32.mrb[0].mxu0
        %v1381 = vadd.f32 0.0, %v1380
        %v1382 = vpop.f32.mrb[0].mxu0
        %1383 = vmatprep.mubr.bf16.mxu0 0
        %1384 = vmatmul.mubr.bf16.gmra.mrb[0].mxu0 %v1193
        %v1385 = vpop.f32.mrb[0].mxu0
        %v1386 = vadd.f32 0.0, %v1385
        %v1387 = vpop.f32.mrb[0].mxu0
        %v1388 = vpop.f32.mrb[0].mxu0
        %v1389 = vadd.f32 0.0, %v1388
        %v1390 = vpop.f32.mrb[0].mxu0
        %1391 = vmatprep.mubr.bf16.mxu0 0
        %1392 = vmatmul.mubr.bf16.gmra.mrb[0].mxu0 %v1194
        %v1393 = vpop.f32.mrb[0].mxu0
        %v1394 = vadd.f32 0.0, %v1393
        %v1395 = vpop.f32.mrb[0].mxu0
        %v1396 = vpop.f32.mrb[0].mxu0
        %v1397 = vadd.f32 0.0, %v1396
        %v1398 = vpop.f32.mrb[0].mxu0
        %1399 = vmatprep.mubr.bf16.mxu0 0
        %1400 = vmatmul.mubr.bf16.gmra.mrb[0].mxu0 %v1195
        %v1401 = vpop.f32.mrb[0].mxu0
        %v1402 = vadd.f32 0.0, %v1401
        %v1403 = vpop.f32.mrb[0].mxu0
        %v1404 = vpop.f32.mrb[0].mxu0
        %v1405 = vadd.f32 0.0, %v1404
        %v1406 = vpop.f32.mrb[0].mxu0
        %1407 = vmatprep.mubr.bf16.mxu0 0
        %1408 = vmatmul.mubr.bf16.gmra.mrb[0].mxu0 %v1196
        %v1409 = vpop.f32.mrb[0].mxu0
        %v1410 = vadd.f32 0.0, %v1409
        %v1411 = vpop.f32.mrb[0].mxu0
        %v1412 = vpop.f32.mrb[0].mxu0
        %v1413 = vadd.f32 0.0, %v1412
        %v1414 = vpop.f32.mrb[0].mxu0
        %1415 = vmatprep.mubr.bf16.mxu0 0
        %1416 = vmatmul.mubr.bf16.gmra.mrb[0].mxu0 %v1197
        %v1417 = vpop.f32.mrb[0].mxu0
        %v1418 = vadd.f32 0.0, %v1417
        %v1419 = vpop.f32.mrb[0].mxu0
        %v1420 = vpop.f32.mrb[0].mxu0
        %v1421 = vadd.f32 0.0, %v1420
        %v1422 = vpop.f32.mrb[0].mxu0
        %1423 = vdwg.mxu0
        %v1424 = vadd.f32 %v1118, %v1298
        %v1425 = vadd.f32 %v1119, %v1301
        %v1426 = vadd.f32 %v1120, %v1306
        %v1427 = vadd.f32 %v1121, %v1309
        %v1428 = vadd.f32 %v1122, %v1314
        %v1429 = vadd.f32 %v1123, %v1317
        %v1430 = vadd.f32 %v1124, %v1322
        %v1431 = vadd.f32 %v1125, %v1325
        %v1432 = vadd.f32 %v1126, %v1330
        %v1433 = vadd.f32 %v1127, %v1333
        %v1434 = vadd.f32 %v1128, %v1338
        %v1435 = vadd.f32 %v1129, %v1341
        %v1436 = vadd.f32 %v1130, %v1346
        %v1437 = vadd.f32 %v1131, %v1349
        %v1438 = vadd.f32 %v1132, %v1354
        %v1439 = vadd.f32 %v1133, %v1357
        %v1440 = vadd.f32 %v1134, %v1362
        %v1441 = vadd.f32 %v1135, %v1365
        %v1442 = vadd.f32 %v1136, %v1370
        %v1443 = vadd.f32 %v1137, %v1373
        %v1444 = vadd.f32 %v1138, %v1378
        %v1445 = vadd.f32 %v1139, %v1381
        %v1446 = vadd.f32 %v1140, %v1386
        %v1447 = vadd.f32 %v1141, %v1389
        %v1448 = vadd.f32 %v1142, %v1394
        %v1449 = vadd.f32 %v1143, %v1397
        %v1450 = vadd.f32 %v1144, %v1402
        %v1451 = vadd.f32 %v1145, %v1405
        %v1452 = vadd.f32 %v1146, %v1410
        %v1453 = vadd.f32 %v1147, %v1413
        %v1454 = vadd.f32 %v1148, %v1418
        %v1455 = vadd.f32 %v1149, %v1421
        %v1456 = vld [vmem:[%s252 + $0x11] sm:$0xff]
        %v1457 = vld [vmem:[%s252 + $0x19] sm:$0xff]
        %v1458 = vld [vmem:[%s252 + $0x21] sm:$0xff]
        %v1459 = vld [vmem:[%s252 + $0x29] sm:$0xff]
        %v1460 = vld [vmem:[%s252 + $0x31] sm:$0xff]
        %v1461 = vld [vmem:[%s252 + $0x39] sm:$0xff]
        %v1462 = vld [vmem:[%s252 + $0x41] sm:$0xff]
        %v1463 = vld [vmem:[%s252 + $0x49] sm:$0xff]
        %v1464 = vld [vmem:[%s252 + $0x51] sm:$0xff]
        %v1465 = vld [vmem:[%s252 + $0x59] sm:$0xff]
        %v1466 = vld [vmem:[%s252 + $0x61] sm:$0xff]
        %v1467 = vld [vmem:[%s252 + $0x69] sm:$0xff]
        %v1468 = vld [vmem:[%s252 + $0x71] sm:$0xff]
        %v1469 = vld [vmem:[%s252 + $0x79] sm:$0xff]
        %v1470 = vld [vmem:[%s252 + $0x81] sm:$0xff]
        %v1471 = vld [vmem:[%s252 + $0x89] sm:$0xff]
        %v1472 = vld [vmem:[%s252 + $0x91] sm:$0xff]
        %v1473 = vld [vmem:[%s252 + $0x99] sm:$0xff]
        %v1474 = vld [vmem:[%s252 + $0xa1] sm:$0xff]
        %v1475 = vld [vmem:[%s252 + $0xa9] sm:$0xff]
        %v1476 = vld [vmem:[%s252 + $0xb1] sm:$0xff]
        %v1477 = vld [vmem:[%s252 + $0xb9] sm:$0xff]
        %v1478 = vld [vmem:[%s252 + $0xc1] sm:$0xff]
        %v1479 = vld [vmem:[%s252 + $0xc9] sm:$0xff]
        %v1480 = vld [vmem:[%s252 + $0xd1] sm:$0xff]
        %v1481 = vld [vmem:[%s252 + $0xd9] sm:$0xff]
        %v1482 = vld [vmem:[%s252 + $0xe1] sm:$0xff]
        %v1483 = vld [vmem:[%s252 + $0xe9] sm:$0xff]
        %v1484 = vld [vmem:[%s252 + $0xf1] sm:$0xff]
        %v1485 = vld [vmem:[%s252 + $0xf9] sm:$0xff]
        %v1486 = vld [vmem:[%s252 + $0x101] sm:$0xff]
        %v1487 = vld [vmem:[%s252 + $0x109] sm:$0xff]
        %v1488 = vpack.c.bf16 %v1457, %v1456
        %v1489 = vpack.c.bf16 %v1459, %v1458
        %v1490 = vpack.c.bf16 %v1461, %v1460
        %v1491 = vpack.c.bf16 %v1463, %v1462
        %v1492 = vpack.c.bf16 %v1465, %v1464
        %v1493 = vpack.c.bf16 %v1467, %v1466
        %v1494 = vpack.c.bf16 %v1469, %v1468
        %v1495 = vpack.c.bf16 %v1471, %v1470
        %v1496 = vpack.c.bf16 %v1473, %v1472
        %v1497 = vpack.c.bf16 %v1475, %v1474
        %v1498 = vpack.c.bf16 %v1477, %v1476
        %v1499 = vpack.c.bf16 %v1479, %v1478
        %v1500 = vpack.c.bf16 %v1481, %v1480
        %v1501 = vpack.c.bf16 %v1483, %v1482
        %v1502 = vpack.c.bf16 %v1485, %v1484
        %v1503 = vpack.c.bf16 %v1487, %v1486
        %s1504 = scalar_lea.vmem [#allocation5], 256
        %v1505 = vld [vmem:[%s1504] sm:$0xf]
        %v1506 = vld [vmem:[%s1504 + $0x4] sm:$0xf]
        %v1507 = vld [vmem:[%s1504 + $0x8] sm:$0xf]
        %v1508 = vld [vmem:[%s1504 + $0xc] sm:$0xf]
        %v1509 = vld [vmem:[%s1504 + $0x10] sm:$0xf]
        %v1510 = vld [vmem:[%s1504 + $0x14] sm:$0xf]
        %v1511 = vld [vmem:[%s1504 + $0x18] sm:$0xf]
        %v1512 = vld [vmem:[%s1504 + $0x1c] sm:$0xf]
        %v1513 = vld [vmem:[%s1504 + $0x20] sm:$0xf]
        %v1514 = vld [vmem:[%s1504 + $0x24] sm:$0xf]
        %v1515 = vld [vmem:[%s1504 + $0x28] sm:$0xf]
        %v1516 = vld [vmem:[%s1504 + $0x2c] sm:$0xf]
        %v1517 = vld [vmem:[%s1504 + $0x30] sm:$0xf]
        %v1518 = vld [vmem:[%s1504 + $0x34] sm:$0xf]
        %v1519 = vld [vmem:[%s1504 + $0x38] sm:$0xf]
        %v1520 = vld [vmem:[%s1504 + $0x3c] sm:$0xf]
        %v1537 = vunpack.c.l.b16 %v1505
        %v1538 = vunpack.c.l.b16 %v1506
        %v1539 = vunpack.c.l.b16 %v1507
        %v1540 = vunpack.c.l.b16 %v1508
        %v1541 = vunpack.c.l.b16 %v1509
        %v1542 = vunpack.c.l.b16 %v1510
        %v1543 = vunpack.c.l.b16 %v1511
        %v1544 = vunpack.c.l.b16 %v1512
        %v1545 = vunpack.c.l.b16 %v1513
        %v1546 = vunpack.c.l.b16 %v1514
        %v1547 = vunpack.c.l.b16 %v1515
        %v1548 = vunpack.c.l.b16 %v1516
        %v1549 = vunpack.c.l.b16 %v1517
        %v1550 = vunpack.c.l.b16 %v1518
        %v1551 = vunpack.c.l.b16 %v1519
        %v1552 = vunpack.c.l.b16 %v1520
        %v1553 = vpack.c.b16 %v1538, %v1537
        %v1554 = vpack.c.b16 %v1540, %v1539
        %v1555 = vpack.c.b16 %v1542, %v1541
        %v1556 = vpack.c.b16 %v1544, %v1543
        %v1557 = vpack.c.b16 %v1546, %v1545
        %v1558 = vpack.c.b16 %v1548, %v1547
        %v1559 = vpack.c.b16 %v1550, %v1549
        %v1560 = vpack.c.b16 %v1552, %v1551
        %1569 = vmatprep.subr.bf16.mxu0 0
        %1570 = vmatpush1.bf16.msra.mxu0 %v1553
        %1571 = vmatprep.subr.bf16.mxu0 0
        %1572 = vmatpush1.bf16.msra.mxu0 %v1554
        %1573 = vmatprep.subr.bf16.mxu0 0
        %1574 = vmatpush1.bf16.msra.mxu0 %v1555
        %1575 = vmatprep.subr.bf16.mxu0 0
        %1576 = vmatpush1.bf16.msra.mxu0 %v1556
        %1577 = vmatprep.subr.bf16.mxu0 0
        %1578 = vmatpush1.bf16.msra.mxu0 %v1557
        %1579 = vmatprep.subr.bf16.mxu0 0
        %1580 = vmatpush1.bf16.msra.mxu0 %v1558
        %1581 = vmatprep.subr.bf16.mxu0 0
        %1582 = vmatpush1.bf16.msra.mxu0 %v1559
        %1583 = vmatprep.subr.bf16.mxu0 0
        %1584 = vmatpush1.bf16.msra.mxu0 %v1560
        %1585 = vmatprep.subr.bf16.mxu0 0
        %1586 = vmatpush1.bf16.msra.mxu0 0
        %1587 = vmatprep.subr.bf16.mxu0 0
        %1588 = vmatpush1.bf16.msra.mxu0 0
        %1589 = vmatprep.subr.bf16.mxu0 0
        %1590 = vmatpush1.bf16.msra.mxu0 0
        %1591 = vmatprep.subr.bf16.mxu0 0
        %1592 = vmatpush1.bf16.msra.mxu0 0
        %1593 = vmatprep.subr.bf16.mxu0 0
        %1594 = vmatpush1.bf16.msra.mxu0 0
        %1595 = vmatprep.subr.bf16.mxu0 0
        %1596 = vmatpush1.bf16.msra.mxu0 0
        %1597 = vmatprep.subr.bf16.mxu0 0
        %1598 = vmatpush1.bf16.msra.mxu0 0
        %1599 = vmatprep.subr.bf16.mxu0 0
        %1600 = vmatpush1.bf16.msra.mxu0 0
        %1601 = vmatprep.mubr.bf16.mxu0 0
        %1602 = vmatmul.mubr.bf16.gmra.mrb[0].mxu0 %v1488
        %v1603 = vpop.f32.mrb[0].mxu0
        %v1604 = vadd.f32 0.0, %v1603
        %v1605 = vpop.f32.mrb[0].mxu0
        %v1606 = vpop.f32.mrb[0].mxu0
        %v1607 = vadd.f32 0.0, %v1606
        %v1608 = vpop.f32.mrb[0].mxu0
        %1609 = vmatprep.mubr.bf16.mxu0 0
        %1610 = vmatmul.mubr.bf16.gmra.mrb[0].mxu0 %v1489
        %v1611 = vpop.f32.mrb[0].mxu0
        %v1612 = vadd.f32 0.0, %v1611
        %v1613 = vpop.f32.mrb[0].mxu0
        %v1614 = vpop.f32.mrb[0].mxu0
        %v1615 = vadd.f32 0.0, %v1614
        %v1616 = vpop.f32.mrb[0].mxu0
        %1617 = vmatprep.mubr.bf16.mxu0 0
        %1618 = vmatmul.mubr.bf16.gmra.mrb[0].mxu0 %v1490
        %v1619 = vpop.f32.mrb[0].mxu0
        %v1620 = vadd.f32 0.0, %v1619
        %v1621 = vpop.f32.mrb[0].mxu0
        %v1622 = vpop.f32.mrb[0].mxu0
        %v1623 = vadd.f32 0.0, %v1622
        %v1624 = vpop.f32.mrb[0].mxu0
        %1625 = vmatprep.mubr.bf16.mxu0 0
        %1626 = vmatmul.mubr.bf16.gmra.mrb[0].mxu0 %v1491
        %v1627 = vpop.f32.mrb[0].mxu0
        %v1628 = vadd.f32 0.0, %v1627
        %v1629 = vpop.f32.mrb[0].mxu0
        %v1630 = vpop.f32.mrb[0].mxu0
        %v1631 = vadd.f32 0.0, %v1630
        %v1632 = vpop.f32.mrb[0].mxu0
        %1633 = vmatprep.mubr.bf16.mxu0 0
        %1634 = vmatmul.mubr.bf16.gmra.mrb[0].mxu0 %v1492
        %v1635 = vpop.f32.mrb[0].mxu0
        %v1636 = vadd.f32 0.0, %v1635
        %v1637 = vpop.f32.mrb[0].mxu0
        %v1638 = vpop.f32.mrb[0].mxu0
        %v1639 = vadd.f32 0.0, %v1638
        %v1640 = vpop.f32.mrb[0].mxu0
        %1641 = vmatprep.mubr.bf16.mxu0 0
        %1642 = vmatmul.mubr.bf16.gmra.mrb[0].mxu0 %v1493
        %v1643 = vpop.f32.mrb[0].mxu0
        %v1644 = vadd.f32 0.0, %v1643
        %v1645 = vpop.f32.mrb[0].mxu0
        %v1646 = vpop.f32.mrb[0].mxu0
        %v1647 = vadd.f32 0.0, %v1646
        %v1648 = vpop.f32.mrb[0].mxu0
        %1649 = vmatprep.mubr.bf16.mxu0 0
        %1650 = vmatmul.mubr.bf16.gmra.mrb[0].mxu0 %v1494
        %v1651 = vpop.f32.mrb[0].mxu0
        %v1652 = vadd.f32 0.0, %v1651
        %v1653 = vpop.f32.mrb[0].mxu0
        %v1654 = vpop.f32.mrb[0].mxu0
        %v1655 = vadd.f32 0.0, %v1654
        %v1656 = vpop.f32.mrb[0].mxu0
        %1657 = vmatprep.mubr.bf16.mxu0 0
        %1658 = vmatmul.mubr.bf16.gmra.mrb[0].mxu0 %v1495
        %v1659 = vpop.f32.mrb[0].mxu0
        %v1660 = vadd.f32 0.0, %v1659
        %v1661 = vpop.f32.mrb[0].mxu0
        %v1662 = vpop.f32.mrb[0].mxu0
        %v1663 = vadd.f32 0.0, %v1662
        %v1664 = vpop.f32.mrb[0].mxu0
        %1665 = vmatprep.mubr.bf16.mxu0 0
        %1666 = vmatmul.mubr.bf16.gmra.mrb[0].mxu0 %v1496
        %v1667 = vpop.f32.mrb[0].mxu0
        %v1668 = vadd.f32 0.0, %v1667
        %v1669 = vpop.f32.mrb[0].mxu0
        %v1670 = vpop.f32.mrb[0].mxu0
        %v1671 = vadd.f32 0.0, %v1670
        %v1672 = vpop.f32.mrb[0].mxu0
        %1673 = vmatprep.mubr.bf16.mxu0 0
        %1674 = vmatmul.mubr.bf16.gmra.mrb[0].mxu0 %v1497
        %v1675 = vpop.f32.mrb[0].mxu0
        %v1676 = vadd.f32 0.0, %v1675
        %v1677 = vpop.f32.mrb[0].mxu0
        %v1678 = vpop.f32.mrb[0].mxu0
        %v1679 = vadd.f32 0.0, %v1678
        %v1680 = vpop.f32.mrb[0].mxu0
        %1681 = vmatprep.mubr.bf16.mxu0 0
        %1682 = vmatmul.mubr.bf16.gmra.mrb[0].mxu0 %v1498
        %v1683 = vpop.f32.mrb[0].mxu0
        %v1684 = vadd.f32 0.0, %v1683
        %v1685 = vpop.f32.mrb[0].mxu0
        %v1686 = vpop.f32.mrb[0].mxu0
        %v1687 = vadd.f32 0.0, %v1686
        %v1688 = vpop.f32.mrb[0].mxu0
        %1689 = vmatprep.mubr.bf16.mxu0 0
        %1690 = vmatmul.mubr.bf16.gmra.mrb[0].mxu0 %v1499
        %v1691 = vpop.f32.mrb[0].mxu0
        %v1692 = vadd.f32 0.0, %v1691
        %v1693 = vpop.f32.mrb[0].mxu0
        %v1694 = vpop.f32.mrb[0].mxu0
        %v1695 = vadd.f32 0.0, %v1694
        %v1696 = vpop.f32.mrb[0].mxu0
        %1697 = vmatprep.mubr.bf16.mxu0 0
        %1698 = vmatmul.mubr.bf16.gmra.mrb[0].mxu0 %v1500
        %v1699 = vpop.f32.mrb[0].mxu0
        %v1700 = vadd.f32 0.0, %v1699
        %v1701 = vpop.f32.mrb[0].mxu0
        %v1702 = vpop.f32.mrb[0].mxu0
        %v1703 = vadd.f32 0.0, %v1702
        %v1704 = vpop.f32.mrb[0].mxu0
        %1705 = vmatprep.mubr.bf16.mxu0 0
        %1706 = vmatmul.mubr.bf16.gmra.mrb[0].mxu0 %v1501
        %v1707 = vpop.f32.mrb[0].mxu0
        %v1708 = vadd.f32 0.0, %v1707
        %v1709 = vpop.f32.mrb[0].mxu0
        %v1710 = vpop.f32.mrb[0].mxu0
        %v1711 = vadd.f32 0.0, %v1710
        %v1712 = vpop.f32.mrb[0].mxu0
        %1713 = vmatprep.mubr.bf16.mxu0 0
        %1714 = vmatmul.mubr.bf16.gmra.mrb[0].mxu0 %v1502
        %v1715 = vpop.f32.mrb[0].mxu0
        %v1716 = vadd.f32 0.0, %v1715
        %v1717 = vpop.f32.mrb[0].mxu0
        %v1718 = vpop.f32.mrb[0].mxu0
        %v1719 = vadd.f32 0.0, %v1718
        %v1720 = vpop.f32.mrb[0].mxu0
        %1721 = vmatprep.mubr.bf16.mxu0 0
        %1722 = vmatmul.mubr.bf16.gmra.mrb[0].mxu0 %v1503
        %v1723 = vpop.f32.mrb[0].mxu0
        %v1724 = vadd.f32 0.0, %v1723
        %v1725 = vpop.f32.mrb[0].mxu0
        %v1726 = vpop.f32.mrb[0].mxu0
        %v1727 = vadd.f32 0.0, %v1726
        %v1728 = vpop.f32.mrb[0].mxu0
        %1729 = vdwg.mxu0
        %v1730 = vadd.f32 %v1424, %v1604
        %v1731 = vadd.f32 %v1425, %v1607
        %v1732 = vadd.f32 %v1426, %v1612
        %v1733 = vadd.f32 %v1427, %v1615
        %v1734 = vadd.f32 %v1428, %v1620
        %v1735 = vadd.f32 %v1429, %v1623
        %v1736 = vadd.f32 %v1430, %v1628
        %v1737 = vadd.f32 %v1431, %v1631
        %v1738 = vadd.f32 %v1432, %v1636
        %v1739 = vadd.f32 %v1433, %v1639
        %v1740 = vadd.f32 %v1434, %v1644
        %v1741 = vadd.f32 %v1435, %v1647
        %v1742 = vadd.f32 %v1436, %v1652
        %v1743 = vadd.f32 %v1437, %v1655
        %v1744 = vadd.f32 %v1438, %v1660
        %v1745 = vadd.f32 %v1439, %v1663
        %v1746 = vadd.f32 %v1440, %v1668
        %v1747 = vadd.f32 %v1441, %v1671
        %v1748 = vadd.f32 %v1442, %v1676
        %v1749 = vadd.f32 %v1443, %v1679
        %v1750 = vadd.f32 %v1444, %v1684
        %v1751 = vadd.f32 %v1445, %v1687
        %v1752 = vadd.f32 %v1446, %v1692
        %v1753 = vadd.f32 %v1447, %v1695
        %v1754 = vadd.f32 %v1448, %v1700
        %v1755 = vadd.f32 %v1449, %v1703
        %v1756 = vadd.f32 %v1450, %v1708
        %v1757 = vadd.f32 %v1451, %v1711
        %v1758 = vadd.f32 %v1452, %v1716
        %v1759 = vadd.f32 %v1453, %v1719
        %v1760 = vadd.f32 %v1454, %v1724
        %v1761 = vadd.f32 %v1455, %v1727
        %v1762 = vld [vmem:[%s252 + $0x12] sm:$0xff]
        %v1763 = vld [vmem:[%s252 + $0x1a] sm:$0xff]
        %v1764 = vld [vmem:[%s252 + $0x22] sm:$0xff]
        %v1765 = vld [vmem:[%s252 + $0x2a] sm:$0xff]
        %v1766 = vld [vmem:[%s252 + $0x32] sm:$0xff]
        %v1767 = vld [vmem:[%s252 + $0x3a] sm:$0xff]
        %v1768 = vld [vmem:[%s252 + $0x42] sm:$0xff]
        %v1769 = vld [vmem:[%s252 + $0x4a] sm:$0xff]
        %v1770 = vld [vmem:[%s252 + $0x52] sm:$0xff]
        %v1771 = vld [vmem:[%s252 + $0x5a] sm:$0xff]
        %v1772 = vld [vmem:[%s252 + $0x62] sm:$0xff]
        %v1773 = vld [vmem:[%s252 + $0x6a] sm:$0xff]
        %v1774 = vld [vmem:[%s252 + $0x72] sm:$0xff]
        %v1775 = vld [vmem:[%s252 + $0x7a] sm:$0xff]
        %v1776 = vld [vmem:[%s252 + $0x82] sm:$0xff]
        %v1777 = vld [vmem:[%s252 + $0x8a] sm:$0xff]
        %v1778 = vld [vmem:[%s252 + $0x92] sm:$0xff]
        %v1779 = vld [vmem:[%s252 + $0x9a] sm:$0xff]
        %v1780 = vld [vmem:[%s252 + $0xa2] sm:$0xff]
        %v1781 = vld [vmem:[%s252 + $0xaa] sm:$0xff]
        %v1782 = vld [vmem:[%s252 + $0xb2] sm:$0xff]
        %v1783 = vld [vmem:[%s252 + $0xba] sm:$0xff]
        %v1784 = vld [vmem:[%s252 + $0xc2] sm:$0xff]
        %v1785 = vld [vmem:[%s252 + $0xca] sm:$0xff]
        %v1786 = vld [vmem:[%s252 + $0xd2] sm:$0xff]
        %v1787 = vld [vmem:[%s252 + $0xda] sm:$0xff]
        %v1788 = vld [vmem:[%s252 + $0xe2] sm:$0xff]
        %v1789 = vld [vmem:[%s252 + $0xea] sm:$0xff]
        %v1790 = vld [vmem:[%s252 + $0xf2] sm:$0xff]
        %v1791 = vld [vmem:[%s252 + $0xfa] sm:$0xff]
        %v1792 = vld [vmem:[%s252 + $0x102] sm:$0xff]
        %v1793 = vld [vmem:[%s252 + $0x10a] sm:$0xff]
        %v1794 = vpack.c.bf16 %v1763, %v1762
        %v1795 = vpack.c.bf16 %v1765, %v1764
        %v1796 = vpack.c.bf16 %v1767, %v1766
        %v1797 = vpack.c.bf16 %v1769, %v1768
        %v1798 = vpack.c.bf16 %v1771, %v1770
        %v1799 = vpack.c.bf16 %v1773, %v1772
        %v1800 = vpack.c.bf16 %v1775, %v1774
        %v1801 = vpack.c.bf16 %v1777, %v1776
        %v1802 = vpack.c.bf16 %v1779, %v1778
        %v1803 = vpack.c.bf16 %v1781, %v1780
        %v1804 = vpack.c.bf16 %v1783, %v1782
        %v1805 = vpack.c.bf16 %v1785, %v1784
        %v1806 = vpack.c.bf16 %v1787, %v1786
        %v1807 = vpack.c.bf16 %v1789, %v1788
        %v1808 = vpack.c.bf16 %v1791, %v1790
        %v1809 = vpack.c.bf16 %v1793, %v1792
        %s1810 = scalar_lea.vmem [#allocation5], 320
        %v1811 = vld [vmem:[%s1810] sm:$0xf]
        %v1812 = vld [vmem:[%s1810 + $0x4] sm:$0xf]
        %v1813 = vld [vmem:[%s1810 + $0x8] sm:$0xf]
        %v1814 = vld [vmem:[%s1810 + $0xc] sm:$0xf]
        %v1815 = vld [vmem:[%s1810 + $0x10] sm:$0xf]
        %v1816 = vld [vmem:[%s1810 + $0x14] sm:$0xf]
        %v1817 = vld [vmem:[%s1810 + $0x18] sm:$0xf]
        %v1818 = vld [vmem:[%s1810 + $0x1c] sm:$0xf]
        %v1819 = vld [vmem:[%s1810 + $0x20] sm:$0xf]
        %v1820 = vld [vmem:[%s1810 + $0x24] sm:$0xf]
        %v1821 = vld [vmem:[%s1810 + $0x28] sm:$0xf]
        %v1822 = vld [vmem:[%s1810 + $0x2c] sm:$0xf]
        %v1823 = vld [vmem:[%s1810 + $0x30] sm:$0xf]
        %v1824 = vld [vmem:[%s1810 + $0x34] sm:$0xf]
        %v1825 = vld [vmem:[%s1810 + $0x38] sm:$0xf]
        %v1826 = vld [vmem:[%s1810 + $0x3c] sm:$0xf]
        %v1843 = vunpack.c.l.b16 %v1811
        %v1844 = vunpack.c.l.b16 %v1812
        %v1845 = vunpack.c.l.b16 %v1813
        %v1846 = vunpack.c.l.b16 %v1814
        %v1847 = vunpack.c.l.b16 %v1815
        %v1848 = vunpack.c.l.b16 %v1816
        %v1849 = vunpack.c.l.b16 %v1817
        %v1850 = vunpack.c.l.b16 %v1818
        %v1851 = vunpack.c.l.b16 %v1819
        %v1852 = vunpack.c.l.b16 %v1820
        %v1853 = vunpack.c.l.b16 %v1821
        %v1854 = vunpack.c.l.b16 %v1822
        %v1855 = vunpack.c.l.b16 %v1823
        %v1856 = vunpack.c.l.b16 %v1824
        %v1857 = vunpack.c.l.b16 %v1825
        %v1858 = vunpack.c.l.b16 %v1826
        %v1859 = vpack.c.b16 %v1844, %v1843
        %v1860 = vpack.c.b16 %v1846, %v1845
        %v1861 = vpack.c.b16 %v1848, %v1847
        %v1862 = vpack.c.b16 %v1850, %v1849
        %v1863 = vpack.c.b16 %v1852, %v1851
        %v1864 = vpack.c.b16 %v1854, %v1853
        %v1865 = vpack.c.b16 %v1856, %v1855
        %v1866 = vpack.c.b16 %v1858, %v1857
        %1875 = vmatprep.subr.bf16.mxu0 0
        %1876 = vmatpush1.bf16.msra.mxu0 %v1859
        %1877 = vmatprep.subr.bf16.mxu0 0
        %1878 = vmatpush1.bf16.msra.mxu0 %v1860
        %1879 = vmatprep.subr.bf16.mxu0 0
        %1880 = vmatpush1.bf16.msra.mxu0 %v1861
        %1881 = vmatprep.subr.bf16.mxu0 0
        %1882 = vmatpush1.bf16.msra.mxu0 %v1862
        %1883 = vmatprep.subr.bf16.mxu0 0
        %1884 = vmatpush1.bf16.msra.mxu0 %v1863
        %1885 = vmatprep.subr.bf16.mxu0 0
        %1886 = vmatpush1.bf16.msra.mxu0 %v1864
        %1887 = vmatprep.subr.bf16.mxu0 0
        %1888 = vmatpush1.bf16.msra.mxu0 %v1865
        %1889 = vmatprep.subr.bf16.mxu0 0
        %1890 = vmatpush1.bf16.msra.mxu0 %v1866
        %1891 = vmatprep.subr.bf16.mxu0 0
        %1892 = vmatpush1.bf16.msra.mxu0 0
        %1893 = vmatprep.subr.bf16.mxu0 0
        %1894 = vmatpush1.bf16.msra.mxu0 0
        %1895 = vmatprep.subr.bf16.mxu0 0
        %1896 = vmatpush1.bf16.msra.mxu0 0
        %1897 = vmatprep.subr.bf16.mxu0 0
        %1898 = vmatpush1.bf16.msra.mxu0 0
        %1899 = vmatprep.subr.bf16.mxu0 0
        %1900 = vmatpush1.bf16.msra.mxu0 0
        %1901 = vmatprep.subr.bf16.mxu0 0
        %1902 = vmatpush1.bf16.msra.mxu0 0
        %1903 = vmatprep.subr.bf16.mxu0 0
        %1904 = vmatpush1.bf16.msra.mxu0 0
        %1905 = vmatprep.subr.bf16.mxu0 0
        %1906 = vmatpush1.bf16.msra.mxu0 0
        %1907 = vmatprep.mubr.bf16.mxu0 0
        %1908 = vmatmul.mubr.bf16.gmra.mrb[0].mxu0 %v1794
        %v1909 = vpop.f32.mrb[0].mxu0
        %v1910 = vadd.f32 0.0, %v1909
        %v1911 = vpop.f32.mrb[0].mxu0
        %v1912 = vpop.f32.mrb[0].mxu0
        %v1913 = vadd.f32 0.0, %v1912
        %v1914 = vpop.f32.mrb[0].mxu0
        %1915 = vmatprep.mubr.bf16.mxu0 0
        %1916 = vmatmul.mubr.bf16.gmra.mrb[0].mxu0 %v1795
        %v1917 = vpop.f32.mrb[0].mxu0
        %v1918 = vadd.f32 0.0, %v1917
        %v1919 = vpop.f32.mrb[0].mxu0
        %v1920 = vpop.f32.mrb[0].mxu0
        %v1921 = vadd.f32 0.0, %v1920
        %v1922 = vpop.f32.mrb[0].mxu0
        %1923 = vmatprep.mubr.bf16.mxu0 0
        %1924 = vmatmul.mubr.bf16.gmra.mrb[0].mxu0 %v1796
        %v1925 = vpop.f32.mrb[0].mxu0
        %v1926 = vadd.f32 0.0, %v1925
        %v1927 = vpop.f32.mrb[0].mxu0
        %v1928 = vpop.f32.mrb[0].mxu0
        %v1929 = vadd.f32 0.0, %v1928
        %v1930 = vpop.f32.mrb[0].mxu0
        %1931 = vmatprep.mubr.bf16.mxu0 0
        %1932 = vmatmul.mubr.bf16.gmra.mrb[0].mxu0 %v1797
        %v1933 = vpop.f32.mrb[0].mxu0
        %v1934 = vadd.f32 0.0, %v1933
        %v1935 = vpop.f32.mrb[0].mxu0
        %v1936 = vpop.f32.mrb[0].mxu0
        %v1937 = vadd.f32 0.0, %v1936
        %v1938 = vpop.f32.mrb[0].mxu0
        %1939 = vmatprep.mubr.bf16.mxu0 0
        %1940 = vmatmul.mubr.bf16.gmra.mrb[0].mxu0 %v1798
        %v1941 = vpop.f32.mrb[0].mxu0
        %v1942 = vadd.f32 0.0, %v1941
        %v1943 = vpop.f32.mrb[0].mxu0
        %v1944 = vpop.f32.mrb[0].mxu0
        %v1945 = vadd.f32 0.0, %v1944
        %v1946 = vpop.f32.mrb[0].mxu0
        %1947 = vmatprep.mubr.bf16.mxu0 0
        %1948 = vmatmul.mubr.bf16.gmra.mrb[0].mxu0 %v1799
        %v1949 = vpop.f32.mrb[0].mxu0
        %v1950 = vadd.f32 0.0, %v1949
        %v1951 = vpop.f32.mrb[0].mxu0
        %v1952 = vpop.f32.mrb[0].mxu0
        %v1953 = vadd.f32 0.0, %v1952
        %v1954 = vpop.f32.mrb[0].mxu0
        %1955 = vmatprep.mubr.bf16.mxu0 0
        %1956 = vmatmul.mubr.bf16.gmra.mrb[0].mxu0 %v1800
        %v1957 = vpop.f32.mrb[0].mxu0
        %v1958 = vadd.f32 0.0, %v1957
        %v1959 = vpop.f32.mrb[0].mxu0
        %v1960 = vpop.f32.mrb[0].mxu0
        %v1961 = vadd.f32 0.0, %v1960
        %v1962 = vpop.f32.mrb[0].mxu0
        %1963 = vmatprep.mubr.bf16.mxu0 0
        %1964 = vmatmul.mubr.bf16.gmra.mrb[0].mxu0 %v1801
        %v1965 = vpop.f32.mrb[0].mxu0
        %v1966 = vadd.f32 0.0, %v1965
        %v1967 = vpop.f32.mrb[0].mxu0
        %v1968 = vpop.f32.mrb[0].mxu0
        %v1969 = vadd.f32 0.0, %v1968
        %v1970 = vpop.f32.mrb[0].mxu0
        %1971 = vmatprep.mubr.bf16.mxu0 0
        %1972 = vmatmul.mubr.bf16.gmra.mrb[0].mxu0 %v1802
        %v1973 = vpop.f32.mrb[0].mxu0
        %v1974 = vadd.f32 0.0, %v1973
        %v1975 = vpop.f32.mrb[0].mxu0
        %v1976 = vpop.f32.mrb[0].mxu0
        %v1977 = vadd.f32 0.0, %v1976
        %v1978 = vpop.f32.mrb[0].mxu0
        %1979 = vmatprep.mubr.bf16.mxu0 0
        %1980 = vmatmul.mubr.bf16.gmra.mrb[0].mxu0 %v1803
        %v1981 = vpop.f32.mrb[0].mxu0
        %v1982 = vadd.f32 0.0, %v1981
        %v1983 = vpop.f32.mrb[0].mxu0
        %v1984 = vpop.f32.mrb[0].mxu0
        %v1985 = vadd.f32 0.0, %v1984
        %v1986 = vpop.f32.mrb[0].mxu0
        %1987 = vmatprep.mubr.bf16.mxu0 0
        %1988 = vmatmul.mubr.bf16.gmra.mrb[0].mxu0 %v1804
        %v1989 = vpop.f32.mrb[0].mxu0
        %v1990 = vadd.f32 0.0, %v1989
        %v1991 = vpop.f32.mrb[0].mxu0
        %v1992 = vpop.f32.mrb[0].mxu0
        %v1993 = vadd.f32 0.0, %v1992
        %v1994 = vpop.f32.mrb[0].mxu0
        %1995 = vmatprep.mubr.bf16.mxu0 0
        %1996 = vmatmul.mubr.bf16.gmra.mrb[0].mxu0 %v1805
        %v1997 = vpop.f32.mrb[0].mxu0
        %v1998 = vadd.f32 0.0, %v1997
        %v1999 = vpop.f32.mrb[0].mxu0
        %v2000 = vpop.f32.mrb[0].mxu0
        %v2001 = vadd.f32 0.0, %v2000
        %v2002 = vpop.f32.mrb[0].mxu0
        %2003 = vmatprep.mubr.bf16.mxu0 0
        %2004 = vmatmul.mubr.bf16.gmra.mrb[0].mxu0 %v1806
        %v2005 = vpop.f32.mrb[0].mxu0
        %v2006 = vadd.f32 0.0, %v2005
        %v2007 = vpop.f32.mrb[0].mxu0
        %v2008 = vpop.f32.mrb[0].mxu0
        %v2009 = vadd.f32 0.0, %v2008
        %v2010 = vpop.f32.mrb[0].mxu0
        %2011 = vmatprep.mubr.bf16.mxu0 0
        %2012 = vmatmul.mubr.bf16.gmra.mrb[0].mxu0 %v1807
        %v2013 = vpop.f32.mrb[0].mxu0
        %v2014 = vadd.f32 0.0, %v2013
        %v2015 = vpop.f32.mrb[0].mxu0
        %v2016 = vpop.f32.mrb[0].mxu0
        %v2017 = vadd.f32 0.0, %v2016
        %v2018 = vpop.f32.mrb[0].mxu0
        %2019 = vmatprep.mubr.bf16.mxu0 0
        %2020 = vmatmul.mubr.bf16.gmra.mrb[0].mxu0 %v1808
        %v2021 = vpop.f32.mrb[0].mxu0
        %v2022 = vadd.f32 0.0, %v2021
        %v2023 = vpop.f32.mrb[0].mxu0
        %v2024 = vpop.f32.mrb[0].mxu0
        %v2025 = vadd.f32 0.0, %v2024
        %v2026 = vpop.f32.mrb[0].mxu0
        %2027 = vmatprep.mubr.bf16.mxu0 0
        %2028 = vmatmul.mubr.bf16.gmra.mrb[0].mxu0 %v1809
        %v2029 = vpop.f32.mrb[0].mxu0
        %v2030 = vadd.f32 0.0, %v2029
        %v2031 = vpop.f32.mrb[0].mxu0
        %v2032 = vpop.f32.mrb[0].mxu0
        %v2033 = vadd.f32 0.0, %v2032
        %v2034 = vpop.f32.mrb[0].mxu0
        %2035 = vdwg.mxu0
        %v2036 = vadd.f32 %v1730, %v1910
        %v2037 = vadd.f32 %v1731, %v1913
        %v2038 = vadd.f32 %v1732, %v1918
        %v2039 = vadd.f32 %v1733, %v1921
        %v2040 = vadd.f32 %v1734, %v1926
        %v2041 = vadd.f32 %v1735, %v1929
        %v2042 = vadd.f32 %v1736, %v1934
        %v2043 = vadd.f32 %v1737, %v1937
        %v2044 = vadd.f32 %v1738, %v1942
        %v2045 = vadd.f32 %v1739, %v1945
        %v2046 = vadd.f32 %v1740, %v1950
        %v2047 = vadd.f32 %v1741, %v1953
        %v2048 = vadd.f32 %v1742, %v1958
        %v2049 = vadd.f32 %v1743, %v1961
        %v2050 = vadd.f32 %v1744, %v1966
        %v2051 = vadd.f32 %v1745, %v1969
        %v2052 = vadd.f32 %v1746, %v1974
        %v2053 = vadd.f32 %v1747, %v1977
        %v2054 = vadd.f32 %v1748, %v1982
        %v2055 = vadd.f32 %v1749, %v1985
        %v2056 = vadd.f32 %v1750, %v1990
        %v2057 = vadd.f32 %v1751, %v1993
        %v2058 = vadd.f32 %v1752, %v1998
        %v2059 = vadd.f32 %v1753, %v2001
        %v2060 = vadd.f32 %v1754, %v2006
        %v2061 = vadd.f32 %v1755, %v2009
        %v2062 = vadd.f32 %v1756, %v2014
        %v2063 = vadd.f32 %v1757, %v2017
        %v2064 = vadd.f32 %v1758, %v2022
        %v2065 = vadd.f32 %v1759, %v2025
        %v2066 = vadd.f32 %v1760, %v2030
        %v2067 = vadd.f32 %v1761, %v2033
        %v2068 = vld [vmem:[%s252 + $0x20] sm:$0xff]
        %v2069 = vld [vmem:[%s252 + $0x28] sm:$0xff]
        %v2070 = vld [vmem:[%s252 + $0x30] sm:$0xff]
        %v2071 = vld [vmem:[%s252 + $0x38] sm:$0xff]
        %v2072 = vld [vmem:[%s252 + $0x40] sm:$0xff]
        %v2073 = vld [vmem:[%s252 + $0x48] sm:$0xff]
        %v2074 = vld [vmem:[%s252 + $0x50] sm:$0xff]
        %v2075 = vld [vmem:[%s252 + $0x58] sm:$0xff]
        %v2076 = vld [vmem:[%s252 + $0x60] sm:$0xff]
        %v2077 = vld [vmem:[%s252 + $0x68] sm:$0xff]
        %v2078 = vld [vmem:[%s252 + $0x70] sm:$0xff]
        %v2079 = vld [vmem:[%s252 + $0x78] sm:$0xff]
        %v2080 = vld [vmem:[%s252 + $0x80] sm:$0xff]
        %v2081 = vld [vmem:[%s252 + $0x88] sm:$0xff]
        %v2082 = vld [vmem:[%s252 + $0x90] sm:$0xff]
        %v2083 = vld [vmem:[%s252 + $0x98] sm:$0xff]
        %v2084 = vld [vmem:[%s252 + $0xa0] sm:$0xff]
        %v2085 = vld [vmem:[%s252 + $0xa8] sm:$0xff]
        %v2086 = vld [vmem:[%s252 + $0xb0] sm:$0xff]
        %v2087 = vld [vmem:[%s252 + $0xb8] sm:$0xff]
        %v2088 = vld [vmem:[%s252 + $0xc0] sm:$0xff]
        %v2089 = vld [vmem:[%s252 + $0xc8] sm:$0xff]
        %v2090 = vld [vmem:[%s252 + $0xd0] sm:$0xff]
        %v2091 = vld [vmem:[%s252 + $0xd8] sm:$0xff]
        %v2092 = vld [vmem:[%s252 + $0xe0] sm:$0xff]
        %v2093 = vld [vmem:[%s252 + $0xe8] sm:$0xff]
        %v2094 = vld [vmem:[%s252 + $0xf0] sm:$0xff]
        %v2095 = vld [vmem:[%s252 + $0xf8] sm:$0xff]
        %v2096 = vld [vmem:[%s252 + $0x100] sm:$0xff]
        %v2097 = vld [vmem:[%s252 + $0x108] sm:$0xff]
        %v2098 = vld [vmem:[%s252 + $0x110] sm:$0xff]
        %v2099 = vld [vmem:[%s252 + $0x118] sm:$0xff]
        %v2100 = vpack.c.bf16 %v2069, %v2068
        %v2101 = vpack.c.bf16 %v2071, %v2070
        %v2102 = vpack.c.bf16 %v2073, %v2072
        %v2103 = vpack.c.bf16 %v2075, %v2074
        %v2104 = vpack.c.bf16 %v2077, %v2076
        %v2105 = vpack.c.bf16 %v2079, %v2078
        %v2106 = vpack.c.bf16 %v2081, %v2080
        %v2107 = vpack.c.bf16 %v2083, %v2082
        %v2108 = vpack.c.bf16 %v2085, %v2084
        %v2109 = vpack.c.bf16 %v2087, %v2086
        %v2110 = vpack.c.bf16 %v2089, %v2088
        %v2111 = vpack.c.bf16 %v2091, %v2090
        %v2112 = vpack.c.bf16 %v2093, %v2092
        %v2113 = vpack.c.bf16 %v2095, %v2094
        %v2114 = vpack.c.bf16 %v2097, %v2096
        %v2115 = vpack.c.bf16 %v2099, %v2098
        %s2116 = scalar_lea.vmem [#allocation5], 384
        %v2117 = vld [vmem:[%s2116] sm:$0xf]
        %v2118 = vld [vmem:[%s2116 + $0x4] sm:$0xf]
        %v2119 = vld [vmem:[%s2116 + $0x8] sm:$0xf]
        %v2120 = vld [vmem:[%s2116 + $0xc] sm:$0xf]
        %v2121 = vld [vmem:[%s2116 + $0x10] sm:$0xf]
        %v2122 = vld [vmem:[%s2116 + $0x14] sm:$0xf]
        %v2123 = vld [vmem:[%s2116 + $0x18] sm:$0xf]
        %v2124 = vld [vmem:[%s2116 + $0x1c] sm:$0xf]
        %v2125 = vld [vmem:[%s2116 + $0x20] sm:$0xf]
        %v2126 = vld [vmem:[%s2116 + $0x24] sm:$0xf]
        %v2127 = vld [vmem:[%s2116 + $0x28] sm:$0xf]
        %v2128 = vld [vmem:[%s2116 + $0x2c] sm:$0xf]
        %v2129 = vld [vmem:[%s2116 + $0x30] sm:$0xf]
        %v2130 = vld [vmem:[%s2116 + $0x34] sm:$0xf]
        %v2131 = vld [vmem:[%s2116 + $0x38] sm:$0xf]
        %v2132 = vld [vmem:[%s2116 + $0x3c] sm:$0xf]
        %v2149 = vunpack.c.l.b16 %v2117
        %v2150 = vunpack.c.l.b16 %v2118
        %v2151 = vunpack.c.l.b16 %v2119
        %v2152 = vunpack.c.l.b16 %v2120
        %v2153 = vunpack.c.l.b16 %v2121
        %v2154 = vunpack.c.l.b16 %v2122
        %v2155 = vunpack.c.l.b16 %v2123
        %v2156 = vunpack.c.l.b16 %v2124
        %v2157 = vunpack.c.l.b16 %v2125
        %v2158 = vunpack.c.l.b16 %v2126
        %v2159 = vunpack.c.l.b16 %v2127
        %v2160 = vunpack.c.l.b16 %v2128
        %v2161 = vunpack.c.l.b16 %v2129
        %v2162 = vunpack.c.l.b16 %v2130
        %v2163 = vunpack.c.l.b16 %v2131
        %v2164 = vunpack.c.l.b16 %v2132
        %v2165 = vpack.c.b16 %v2150, %v2149
        %v2166 = vpack.c.b16 %v2152, %v2151
        %v2167 = vpack.c.b16 %v2154, %v2153
        %v2168 = vpack.c.b16 %v2156, %v2155
        %v2169 = vpack.c.b16 %v2158, %v2157
        %v2170 = vpack.c.b16 %v2160, %v2159
        %v2171 = vpack.c.b16 %v2162, %v2161
        %v2172 = vpack.c.b16 %v2164, %v2163
        %2181 = vmatprep.subr.bf16.mxu0 0
        %2182 = vmatpush1.bf16.msra.mxu0 %v2165
        %2183 = vmatprep.subr.bf16.mxu0 0
        %2184 = vmatpush1.bf16.msra.mxu0 %v2166
        %2185 = vmatprep.subr.bf16.mxu0 0
        %2186 = vmatpush1.bf16.msra.mxu0 %v2167
        %2187 = vmatprep.subr.bf16.mxu0 0
        %2188 = vmatpush1.bf16.msra.mxu0 %v2168
        %2189 = vmatprep.subr.bf16.mxu0 0
        %2190 = vmatpush1.bf16.msra.mxu0 %v2169
        %2191 = vmatprep.subr.bf16.mxu0 0
        %2192 = vmatpush1.bf16.msra.mxu0 %v2170
        %2193 = vmatprep.subr.bf16.mxu0 0
        %2194 = vmatpush1.bf16.msra.mxu0 %v2171
        %2195 = vmatprep.subr.bf16.mxu0 0
        %2196 = vmatpush1.bf16.msra.mxu0 %v2172
        %2197 = vmatprep.subr.bf16.mxu0 0
        %2198 = vmatpush1.bf16.msra.mxu0 0
        %2199 = vmatprep.subr.bf16.mxu0 0
        %2200 = vmatpush1.bf16.msra.mxu0 0
        %2201 = vmatprep.subr.bf16.mxu0 0
        %2202 = vmatpush1.bf16.msra.mxu0 0
        %2203 = vmatprep.subr.bf16.mxu0 0
        %2204 = vmatpush1.bf16.msra.mxu0 0
        %2205 = vmatprep.subr.bf16.mxu0 0
        %2206 = vmatpush1.bf16.msra.mxu0 0
        %2207 = vmatprep.subr.bf16.mxu0 0
        %2208 = vmatpush1.bf16.msra.mxu0 0
        %2209 = vmatprep.subr.bf16.mxu0 0
        %2210 = vmatpush1.bf16.msra.mxu0 0
        %2211 = vmatprep.subr.bf16.mxu0 0
        %2212 = vmatpush1.bf16.msra.mxu0 0
        %2213 = vmatprep.mubr.bf16.mxu0 0
        %2214 = vmatmul.mubr.bf16.gmra.mrb[0].mxu0 %v2100
        %v2215 = vpop.f32.mrb[0].mxu0
        %v2216 = vadd.f32 0.0, %v2215
        %v2217 = vpop.f32.mrb[0].mxu0
        %v2218 = vpop.f32.mrb[0].mxu0
        %v2219 = vadd.f32 0.0, %v2218
        %v2220 = vpop.f32.mrb[0].mxu0
        %2221 = vmatprep.mubr.bf16.mxu0 0
        %2222 = vmatmul.mubr.bf16.gmra.mrb[0].mxu0 %v2101
        %v2223 = vpop.f32.mrb[0].mxu0
        %v2224 = vadd.f32 0.0, %v2223
        %v2225 = vpop.f32.mrb[0].mxu0
        %v2226 = vpop.f32.mrb[0].mxu0
        %v2227 = vadd.f32 0.0, %v2226
        %v2228 = vpop.f32.mrb[0].mxu0
        %2229 = vmatprep.mubr.bf16.mxu0 0
        %2230 = vmatmul.mubr.bf16.gmra.mrb[0].mxu0 %v2102
        %v2231 = vpop.f32.mrb[0].mxu0
        %v2232 = vadd.f32 0.0, %v2231
        %v2233 = vpop.f32.mrb[0].mxu0
        %v2234 = vpop.f32.mrb[0].mxu0
        %v2235 = vadd.f32 0.0, %v2234
        %v2236 = vpop.f32.mrb[0].mxu0
        %2237 = vmatprep.mubr.bf16.mxu0 0
        %2238 = vmatmul.mubr.bf16.gmra.mrb[0].mxu0 %v2103
        %v2239 = vpop.f32.mrb[0].mxu0
        %v2240 = vadd.f32 0.0, %v2239
        %v2241 = vpop.f32.mrb[0].mxu0
        %v2242 = vpop.f32.mrb[0].mxu0
        %v2243 = vadd.f32 0.0, %v2242
        %v2244 = vpop.f32.mrb[0].mxu0
        %2245 = vmatprep.mubr.bf16.mxu0 0
        %2246 = vmatmul.mubr.bf16.gmra.mrb[0].mxu0 %v2104
        %v2247 = vpop.f32.mrb[0].mxu0
        %v2248 = vadd.f32 0.0, %v2247
        %v2249 = vpop.f32.mrb[0].mxu0
        %v2250 = vpop.f32.mrb[0].mxu0
        %v2251 = vadd.f32 0.0, %v2250
        %v2252 = vpop.f32.mrb[0].mxu0
        %2253 = vmatprep.mubr.bf16.mxu0 0
        %2254 = vmatmul.mubr.bf16.gmra.mrb[0].mxu0 %v2105
        %v2255 = vpop.f32.mrb[0].mxu0
        %v2256 = vadd.f32 0.0, %v2255
        %v2257 = vpop.f32.mrb[0].mxu0
        %v2258 = vpop.f32.mrb[0].mxu0
        %v2259 = vadd.f32 0.0, %v2258
        %v2260 = vpop.f32.mrb[0].mxu0
        %2261 = vmatprep.mubr.bf16.mxu0 0
        %2262 = vmatmul.mubr.bf16.gmra.mrb[0].mxu0 %v2106
        %v2263 = vpop.f32.mrb[0].mxu0
        %v2264 = vadd.f32 0.0, %v2263
        %v2265 = vpop.f32.mrb[0].mxu0
        %v2266 = vpop.f32.mrb[0].mxu0
        %v2267 = vadd.f32 0.0, %v2266
        %v2268 = vpop.f32.mrb[0].mxu0
        %2269 = vmatprep.mubr.bf16.mxu0 0
        %2270 = vmatmul.mubr.bf16.gmra.mrb[0].mxu0 %v2107
        %v2271 = vpop.f32.mrb[0].mxu0
        %v2272 = vadd.f32 0.0, %v2271
        %v2273 = vpop.f32.mrb[0].mxu0
        %v2274 = vpop.f32.mrb[0].mxu0
        %v2275 = vadd.f32 0.0, %v2274
        %v2276 = vpop.f32.mrb[0].mxu0
        %2277 = vmatprep.mubr.bf16.mxu0 0
        %2278 = vmatmul.mubr.bf16.gmra.mrb[0].mxu0 %v2108
        %v2279 = vpop.f32.mrb[0].mxu0
        %v2280 = vadd.f32 0.0, %v2279
        %v2281 = vpop.f32.mrb[0].mxu0
        %v2282 = vpop.f32.mrb[0].mxu0
        %v2283 = vadd.f32 0.0, %v2282
        %v2284 = vpop.f32.mrb[0].mxu0
        %2285 = vmatprep.mubr.bf16.mxu0 0
        %2286 = vmatmul.mubr.bf16.gmra.mrb[0].mxu0 %v2109
        %v2287 = vpop.f32.mrb[0].mxu0
        %v2288 = vadd.f32 0.0, %v2287
        %v2289 = vpop.f32.mrb[0].mxu0
        %v2290 = vpop.f32.mrb[0].mxu0
        %v2291 = vadd.f32 0.0, %v2290
        %v2292 = vpop.f32.mrb[0].mxu0
        %2293 = vmatprep.mubr.bf16.mxu0 0
        %2294 = vmatmul.mubr.bf16.gmra.mrb[0].mxu0 %v2110
        %v2295 = vpop.f32.mrb[0].mxu0
        %v2296 = vadd.f32 0.0, %v2295
        %v2297 = vpop.f32.mrb[0].mxu0
        %v2298 = vpop.f32.mrb[0].mxu0
        %v2299 = vadd.f32 0.0, %v2298
        %v2300 = vpop.f32.mrb[0].mxu0
        %2301 = vmatprep.mubr.bf16.mxu0 0
        %2302 = vmatmul.mubr.bf16.gmra.mrb[0].mxu0 %v2111
        %v2303 = vpop.f32.mrb[0].mxu0
        %v2304 = vadd.f32 0.0, %v2303
        %v2305 = vpop.f32.mrb[0].mxu0
        %v2306 = vpop.f32.mrb[0].mxu0
        %v2307 = vadd.f32 0.0, %v2306
        %v2308 = vpop.f32.mrb[0].mxu0
        %2309 = vmatprep.mubr.bf16.mxu0 0
        %2310 = vmatmul.mubr.bf16.gmra.mrb[0].mxu0 %v2112
        %v2311 = vpop.f32.mrb[0].mxu0
        %v2312 = vadd.f32 0.0, %v2311
        %v2313 = vpop.f32.mrb[0].mxu0
        %v2314 = vpop.f32.mrb[0].mxu0
        %v2315 = vadd.f32 0.0, %v2314
        %v2316 = vpop.f32.mrb[0].mxu0
        %2317 = vmatprep.mubr.bf16.mxu0 0
        %2318 = vmatmul.mubr.bf16.gmra.mrb[0].mxu0 %v2113
        %v2319 = vpop.f32.mrb[0].mxu0
        %v2320 = vadd.f32 0.0, %v2319
        %v2321 = vpop.f32.mrb[0].mxu0
        %v2322 = vpop.f32.mrb[0].mxu0
        %v2323 = vadd.f32 0.0, %v2322
        %v2324 = vpop.f32.mrb[0].mxu0
        %2325 = vmatprep.mubr.bf16.mxu0 0
        %2326 = vmatmul.mubr.bf16.gmra.mrb[0].mxu0 %v2114
        %v2327 = vpop.f32.mrb[0].mxu0
        %v2328 = vadd.f32 0.0, %v2327
        %v2329 = vpop.f32.mrb[0].mxu0
        %v2330 = vpop.f32.mrb[0].mxu0
        %v2331 = vadd.f32 0.0, %v2330
        %v2332 = vpop.f32.mrb[0].mxu0
        %2333 = vmatprep.mubr.bf16.mxu0 0
        %2334 = vmatmul.mubr.bf16.gmra.mrb[0].mxu0 %v2115
        %v2335 = vpop.f32.mrb[0].mxu0
        %v2336 = vadd.f32 0.0, %v2335
        %v2337 = vpop.f32.mrb[0].mxu0
        %v2338 = vpop.f32.mrb[0].mxu0
        %v2339 = vadd.f32 0.0, %v2338
        %v2340 = vpop.f32.mrb[0].mxu0
        %2341 = vdwg.mxu0
        %v2342 = vadd.f32 %v2036, %v2216
        %v2343 = vadd.f32 %v2037, %v2219
        %v2344 = vadd.f32 %v2038, %v2224
        %v2345 = vadd.f32 %v2039, %v2227
        %v2346 = vadd.f32 %v2040, %v2232
        %v2347 = vadd.f32 %v2041, %v2235
        %v2348 = vadd.f32 %v2042, %v2240
        %v2349 = vadd.f32 %v2043, %v2243
        %v2350 = vadd.f32 %v2044, %v2248
        %v2351 = vadd.f32 %v2045, %v2251
        %v2352 = vadd.f32 %v2046, %v2256
        %v2353 = vadd.f32 %v2047, %v2259
        %v2354 = vadd.f32 %v2048, %v2264
        %v2355 = vadd.f32 %v2049, %v2267
        %v2356 = vadd.f32 %v2050, %v2272
        %v2357 = vadd.f32 %v2051, %v2275
        %v2358 = vadd.f32 %v2052, %v2280
        %v2359 = vadd.f32 %v2053, %v2283
        %v2360 = vadd.f32 %v2054, %v2288
        %v2361 = vadd.f32 %v2055, %v2291
        %v2362 = vadd.f32 %v2056, %v2296
        %v2363 = vadd.f32 %v2057, %v2299
        %v2364 = vadd.f32 %v2058, %v2304
        %v2365 = vadd.f32 %v2059, %v2307
        %v2366 = vadd.f32 %v2060, %v2312
        %v2367 = vadd.f32 %v2061, %v2315
        %v2368 = vadd.f32 %v2062, %v2320
        %v2369 = vadd.f32 %v2063, %v2323
        %v2370 = vadd.f32 %v2064, %v2328
        %v2371 = vadd.f32 %v2065, %v2331
        %v2372 = vadd.f32 %v2066, %v2336
        %v2373 = vadd.f32 %v2067, %v2339
        %v2374 = vld [vmem:[%s252 + $0x21] sm:$0xff]
        %v2375 = vld [vmem:[%s252 + $0x29] sm:$0xff]
        %v2376 = vld [vmem:[%s252 + $0x31] sm:$0xff]
        %v2377 = vld [vmem:[%s252 + $0x39] sm:$0xff]
        %v2378 = vld [vmem:[%s252 + $0x41] sm:$0xff]
        %v2379 = vld [vmem:[%s252 + $0x49] sm:$0xff]
        %v2380 = vld [vmem:[%s252 + $0x51] sm:$0xff]
        %v2381 = vld [vmem:[%s252 + $0x59] sm:$0xff]
        %v2382 = vld [vmem:[%s252 + $0x61] sm:$0xff]
        %v2383 = vld [vmem:[%s252 + $0x69] sm:$0xff]
        %v2384 = vld [vmem:[%s252 + $0x71] sm:$0xff]
        %v2385 = vld [vmem:[%s252 + $0x79] sm:$0xff]
        %v2386 = vld [vmem:[%s252 + $0x81] sm:$0xff]
        %v2387 = vld [vmem:[%s252 + $0x89] sm:$0xff]
        %v2388 = vld [vmem:[%s252 + $0x91] sm:$0xff]
        %v2389 = vld [vmem:[%s252 + $0x99] sm:$0xff]
        %v2390 = vld [vmem:[%s252 + $0xa1] sm:$0xff]
        %v2391 = vld [vmem:[%s252 + $0xa9] sm:$0xff]
        %v2392 = vld [vmem:[%s252 + $0xb1] sm:$0xff]
        %v2393 = vld [vmem:[%s252 + $0xb9] sm:$0xff]
        %v2394 = vld [vmem:[%s252 + $0xc1] sm:$0xff]
        %v2395 = vld [vmem:[%s252 + $0xc9] sm:$0xff]
        %v2396 = vld [vmem:[%s252 + $0xd1] sm:$0xff]
        %v2397 = vld [vmem:[%s252 + $0xd9] sm:$0xff]
        %v2398 = vld [vmem:[%s252 + $0xe1] sm:$0xff]
        %v2399 = vld [vmem:[%s252 + $0xe9] sm:$0xff]
        %v2400 = vld [vmem:[%s252 + $0xf1] sm:$0xff]
        %v2401 = vld [vmem:[%s252 + $0xf9] sm:$0xff]
        %v2402 = vld [vmem:[%s252 + $0x101] sm:$0xff]
        %v2403 = vld [vmem:[%s252 + $0x109] sm:$0xff]
        %v2404 = vld [vmem:[%s252 + $0x111] sm:$0xff]
        %v2405 = vld [vmem:[%s252 + $0x119] sm:$0xff]
        %v2406 = vpack.c.bf16 %v2375, %v2374
        %v2407 = vpack.c.bf16 %v2377, %v2376
        %v2408 = vpack.c.bf16 %v2379, %v2378
        %v2409 = vpack.c.bf16 %v2381, %v2380
        %v2410 = vpack.c.bf16 %v2383, %v2382
        %v2411 = vpack.c.bf16 %v2385, %v2384
        %v2412 = vpack.c.bf16 %v2387, %v2386
        %v2413 = vpack.c.bf16 %v2389, %v2388
        %v2414 = vpack.c.bf16 %v2391, %v2390
        %v2415 = vpack.c.bf16 %v2393, %v2392
        %v2416 = vpack.c.bf16 %v2395, %v2394
        %v2417 = vpack.c.bf16 %v2397, %v2396
        %v2418 = vpack.c.bf16 %v2399, %v2398
        %v2419 = vpack.c.bf16 %v2401, %v2400
        %v2420 = vpack.c.bf16 %v2403, %v2402
        %v2421 = vpack.c.bf16 %v2405, %v2404
        %s2422 = scalar_lea.vmem [#allocation5], 448
        %v2423 = vld [vmem:[%s2422] sm:$0xf]
        %v2424 = vld [vmem:[%s2422 + $0x4] sm:$0xf]
        %v2425 = vld [vmem:[%s2422 + $0x8] sm:$0xf]
        %v2426 = vld [vmem:[%s2422 + $0xc] sm:$0xf]
        %v2427 = vld [vmem:[%s2422 + $0x10] sm:$0xf]
        %v2428 = vld [vmem:[%s2422 + $0x14] sm:$0xf]
        %v2429 = vld [vmem:[%s2422 + $0x18] sm:$0xf]
        %v2430 = vld [vmem:[%s2422 + $0x1c] sm:$0xf]
        %v2431 = vld [vmem:[%s2422 + $0x20] sm:$0xf]
        %v2432 = vld [vmem:[%s2422 + $0x24] sm:$0xf]
        %v2433 = vld [vmem:[%s2422 + $0x28] sm:$0xf]
        %v2434 = vld [vmem:[%s2422 + $0x2c] sm:$0xf]
        %v2435 = vld [vmem:[%s2422 + $0x30] sm:$0xf]
        %v2436 = vld [vmem:[%s2422 + $0x34] sm:$0xf]
        %v2437 = vld [vmem:[%s2422 + $0x38] sm:$0xf]
        %v2438 = vld [vmem:[%s2422 + $0x3c] sm:$0xf]
        %v2455 = vunpack.c.l.b16 %v2423
        %v2456 = vunpack.c.l.b16 %v2424
        %v2457 = vunpack.c.l.b16 %v2425
        %v2458 = vunpack.c.l.b16 %v2426
        %v2459 = vunpack.c.l.b16 %v2427
        %v2460 = vunpack.c.l.b16 %v2428
        %v2461 = vunpack.c.l.b16 %v2429
        %v2462 = vunpack.c.l.b16 %v2430
        %v2463 = vunpack.c.l.b16 %v2431
        %v2464 = vunpack.c.l.b16 %v2432
        %v2465 = vunpack.c.l.b16 %v2433
        %v2466 = vunpack.c.l.b16 %v2434
        %v2467 = vunpack.c.l.b16 %v2435
        %v2468 = vunpack.c.l.b16 %v2436
        %v2469 = vunpack.c.l.b16 %v2437
        %v2470 = vunpack.c.l.b16 %v2438
        %v2471 = vpack.c.b16 %v2456, %v2455
        %v2472 = vpack.c.b16 %v2458, %v2457
        %v2473 = vpack.c.b16 %v2460, %v2459
        %v2474 = vpack.c.b16 %v2462, %v2461
        %v2475 = vpack.c.b16 %v2464, %v2463
        %v2476 = vpack.c.b16 %v2466, %v2465
        %v2477 = vpack.c.b16 %v2468, %v2467
        %v2478 = vpack.c.b16 %v2470, %v2469
        %2487 = vmatprep.subr.bf16.mxu0 0
        %2488 = vmatpush1.bf16.msra.mxu0 %v2471
        %2489 = vmatprep.subr.bf16.mxu0 0
        %2490 = vmatpush1.bf16.msra.mxu0 %v2472
        %2491 = vmatprep.subr.bf16.mxu0 0
        %2492 = vmatpush1.bf16.msra.mxu0 %v2473
        %2493 = vmatprep.subr.bf16.mxu0 0
        %2494 = vmatpush1.bf16.msra.mxu0 %v2474
        %2495 = vmatprep.subr.bf16.mxu0 0
        %2496 = vmatpush1.bf16.msra.mxu0 %v2475
        %2497 = vmatprep.subr.bf16.mxu0 0
        %2498 = vmatpush1.bf16.msra.mxu0 %v2476
        %2499 = vmatprep.subr.bf16.mxu0 0
        %2500 = vmatpush1.bf16.msra.mxu0 %v2477
        %2501 = vmatprep.subr.bf16.mxu0 0
        %2502 = vmatpush1.bf16.msra.mxu0 %v2478
        %2503 = vmatprep.subr.bf16.mxu0 0
        %2504 = vmatpush1.bf16.msra.mxu0 0
        %2505 = vmatprep.subr.bf16.mxu0 0
        %2506 = vmatpush1.bf16.msra.mxu0 0
        %2507 = vmatprep.subr.bf16.mxu0 0
        %2508 = vmatpush1.bf16.msra.mxu0 0
        %2509 = vmatprep.subr.bf16.mxu0 0
        %2510 = vmatpush1.bf16.msra.mxu0 0
        %2511 = vmatprep.subr.bf16.mxu0 0
        %2512 = vmatpush1.bf16.msra.mxu0 0
        %2513 = vmatprep.subr.bf16.mxu0 0
        %2514 = vmatpush1.bf16.msra.mxu0 0
        %2515 = vmatprep.subr.bf16.mxu0 0
        %2516 = vmatpush1.bf16.msra.mxu0 0
        %2517 = vmatprep.subr.bf16.mxu0 0
        %2518 = vmatpush1.bf16.msra.mxu0 0
        %2519 = vmatprep.mubr.bf16.mxu0 0
        %2520 = vmatmul.mubr.bf16.gmra.mrb[0].mxu0 %v2406
        %v2521 = vpop.f32.mrb[0].mxu0
        %v2522 = vadd.f32 0.0, %v2521
        %v2523 = vpop.f32.mrb[0].mxu0
        %v2524 = vpop.f32.mrb[0].mxu0
        %v2525 = vadd.f32 0.0, %v2524
        %v2526 = vpop.f32.mrb[0].mxu0
        %2527 = vmatprep.mubr.bf16.mxu0 0
        %2528 = vmatmul.mubr.bf16.gmra.mrb[0].mxu0 %v2407
        %v2529 = vpop.f32.mrb[0].mxu0
        %v2530 = vadd.f32 0.0, %v2529
        %v2531 = vpop.f32.mrb[0].mxu0
        %v2532 = vpop.f32.mrb[0].mxu0
        %v2533 = vadd.f32 0.0, %v2532
        %v2534 = vpop.f32.mrb[0].mxu0
        %2535 = vmatprep.mubr.bf16.mxu0 0
        %2536 = vmatmul.mubr.bf16.gmra.mrb[0].mxu0 %v2408
        %v2537 = vpop.f32.mrb[0].mxu0
        %v2538 = vadd.f32 0.0, %v2537
        %v2539 = vpop.f32.mrb[0].mxu0
        %v2540 = vpop.f32.mrb[0].mxu0
        %v2541 = vadd.f32 0.0, %v2540
        %v2542 = vpop.f32.mrb[0].mxu0
        %2543 = vmatprep.mubr.bf16.mxu0 0
        %2544 = vmatmul.mubr.bf16.gmra.mrb[0].mxu0 %v2409
        %v2545 = vpop.f32.mrb[0].mxu0
        %v2546 = vadd.f32 0.0, %v2545
        %v2547 = vpop.f32.mrb[0].mxu0
        %v2548 = vpop.f32.mrb[0].mxu0
        %v2549 = vadd.f32 0.0, %v2548
        %v2550 = vpop.f32.mrb[0].mxu0
        %2551 = vmatprep.mubr.bf16.mxu0 0
        %2552 = vmatmul.mubr.bf16.gmra.mrb[0].mxu0 %v2410
        %v2553 = vpop.f32.mrb[0].mxu0
        %v2554 = vadd.f32 0.0, %v2553
        %v2555 = vpop.f32.mrb[0].mxu0
        %v2556 = vpop.f32.mrb[0].mxu0
        %v2557 = vadd.f32 0.0, %v2556
        %v2558 = vpop.f32.mrb[0].mxu0
        %2559 = vmatprep.mubr.bf16.mxu0 0
        %2560 = vmatmul.mubr.bf16.gmra.mrb[0].mxu0 %v2411
        %v2561 = vpop.f32.mrb[0].mxu0
        %v2562 = vadd.f32 0.0, %v2561
        %v2563 = vpop.f32.mrb[0].mxu0
        %v2564 = vpop.f32.mrb[0].mxu0
        %v2565 = vadd.f32 0.0, %v2564
        %v2566 = vpop.f32.mrb[0].mxu0
        %2567 = vmatprep.mubr.bf16.mxu0 0
        %2568 = vmatmul.mubr.bf16.gmra.mrb[0].mxu0 %v2412
        %v2569 = vpop.f32.mrb[0].mxu0
        %v2570 = vadd.f32 0.0, %v2569
        %v2571 = vpop.f32.mrb[0].mxu0
        %v2572 = vpop.f32.mrb[0].mxu0
        %v2573 = vadd.f32 0.0, %v2572
        %v2574 = vpop.f32.mrb[0].mxu0
        %2575 = vmatprep.mubr.bf16.mxu0 0
        %2576 = vmatmul.mubr.bf16.gmra.mrb[0].mxu0 %v2413
        %v2577 = vpop.f32.mrb[0].mxu0
        %v2578 = vadd.f32 0.0, %v2577
        %v2579 = vpop.f32.mrb[0].mxu0
        %v2580 = vpop.f32.mrb[0].mxu0
        %v2581 = vadd.f32 0.0, %v2580
        %v2582 = vpop.f32.mrb[0].mxu0
        %2583 = vmatprep.mubr.bf16.mxu0 0
        %2584 = vmatmul.mubr.bf16.gmra.mrb[0].mxu0 %v2414
        %v2585 = vpop.f32.mrb[0].mxu0
        %v2586 = vadd.f32 0.0, %v2585
        %v2587 = vpop.f32.mrb[0].mxu0
        %v2588 = vpop.f32.mrb[0].mxu0
        %v2589 = vadd.f32 0.0, %v2588
        %v2590 = vpop.f32.mrb[0].mxu0
        %2591 = vmatprep.mubr.bf16.mxu0 0
        %2592 = vmatmul.mubr.bf16.gmra.mrb[0].mxu0 %v2415
        %v2593 = vpop.f32.mrb[0].mxu0
        %v2594 = vadd.f32 0.0, %v2593
        %v2595 = vpop.f32.mrb[0].mxu0
        %v2596 = vpop.f32.mrb[0].mxu0
        %v2597 = vadd.f32 0.0, %v2596
        %v2598 = vpop.f32.mrb[0].mxu0
        %2599 = vmatprep.mubr.bf16.mxu0 0
        %2600 = vmatmul.mubr.bf16.gmra.mrb[0].mxu0 %v2416
        %v2601 = vpop.f32.mrb[0].mxu0
        %v2602 = vadd.f32 0.0, %v2601
        %v2603 = vpop.f32.mrb[0].mxu0
        %v2604 = vpop.f32.mrb[0].mxu0
        %v2605 = vadd.f32 0.0, %v2604
        %v2606 = vpop.f32.mrb[0].mxu0
        %2607 = vmatprep.mubr.bf16.mxu0 0
        %2608 = vmatmul.mubr.bf16.gmra.mrb[0].mxu0 %v2417
        %v2609 = vpop.f32.mrb[0].mxu0
        %v2610 = vadd.f32 0.0, %v2609
        %v2611 = vpop.f32.mrb[0].mxu0
        %v2612 = vpop.f32.mrb[0].mxu0
        %v2613 = vadd.f32 0.0, %v2612
        %v2614 = vpop.f32.mrb[0].mxu0
        %2615 = vmatprep.mubr.bf16.mxu0 0
        %2616 = vmatmul.mubr.bf16.gmra.mrb[0].mxu0 %v2418
        %v2617 = vpop.f32.mrb[0].mxu0
        %v2618 = vadd.f32 0.0, %v2617
        %v2619 = vpop.f32.mrb[0].mxu0
        %v2620 = vpop.f32.mrb[0].mxu0
        %v2621 = vadd.f32 0.0, %v2620
        %v2622 = vpop.f32.mrb[0].mxu0
        %2623 = vmatprep.mubr.bf16.mxu0 0
        %2624 = vmatmul.mubr.bf16.gmra.mrb[0].mxu0 %v2419
        %v2625 = vpop.f32.mrb[0].mxu0
        %v2626 = vadd.f32 0.0, %v2625
        %v2627 = vpop.f32.mrb[0].mxu0
        %v2628 = vpop.f32.mrb[0].mxu0
        %v2629 = vadd.f32 0.0, %v2628
        %v2630 = vpop.f32.mrb[0].mxu0
        %2631 = vmatprep.mubr.bf16.mxu0 0
        %2632 = vmatmul.mubr.bf16.gmra.mrb[0].mxu0 %v2420
        %v2633 = vpop.f32.mrb[0].mxu0
        %v2634 = vadd.f32 0.0, %v2633
        %v2635 = vpop.f32.mrb[0].mxu0
        %v2636 = vpop.f32.mrb[0].mxu0
        %v2637 = vadd.f32 0.0, %v2636
        %v2638 = vpop.f32.mrb[0].mxu0
        %2639 = vmatprep.mubr.bf16.mxu0 0
        %2640 = vmatmul.mubr.bf16.gmra.mrb[0].mxu0 %v2421
        %v2641 = vpop.f32.mrb[0].mxu0
        %v2642 = vadd.f32 0.0, %v2641
        %v2643 = vpop.f32.mrb[0].mxu0
        %v2644 = vpop.f32.mrb[0].mxu0
        %v2645 = vadd.f32 0.0, %v2644
        %v2646 = vpop.f32.mrb[0].mxu0
        %2647 = vdwg.mxu0
        %v2648 = vadd.f32 %v2342, %v2522
        %v2649 = vadd.f32 %v2343, %v2525
        %v2650 = vadd.f32 %v2344, %v2530
        %v2651 = vadd.f32 %v2345, %v2533
        %v2652 = vadd.f32 %v2346, %v2538
        %v2653 = vadd.f32 %v2347, %v2541
        %v2654 = vadd.f32 %v2348, %v2546
        %v2655 = vadd.f32 %v2349, %v2549
        %v2656 = vadd.f32 %v2350, %v2554
        %v2657 = vadd.f32 %v2351, %v2557
        %v2658 = vadd.f32 %v2352, %v2562
        %v2659 = vadd.f32 %v2353, %v2565
        %v2660 = vadd.f32 %v2354, %v2570
        %v2661 = vadd.f32 %v2355, %v2573
        %v2662 = vadd.f32 %v2356, %v2578
        %v2663 = vadd.f32 %v2357, %v2581
        %v2664 = vadd.f32 %v2358, %v2586
        %v2665 = vadd.f32 %v2359, %v2589
        %v2666 = vadd.f32 %v2360, %v2594
        %v2667 = vadd.f32 %v2361, %v2597
        %v2668 = vadd.f32 %v2362, %v2602
        %v2669 = vadd.f32 %v2363, %v2605
        %v2670 = vadd.f32 %v2364, %v2610
        %v2671 = vadd.f32 %v2365, %v2613
        %v2672 = vadd.f32 %v2366, %v2618
        %v2673 = vadd.f32 %v2367, %v2621
        %v2674 = vadd.f32 %v2368, %v2626
        %v2675 = vadd.f32 %v2369, %v2629
        %v2676 = vadd.f32 %v2370, %v2634
        %v2677 = vadd.f32 %v2371, %v2637
        %v2678 = vadd.f32 %v2372, %v2642
        %v2679 = vadd.f32 %v2373, %v2645
        %v2680 = vld [vmem:[%s252 + $0x22] sm:$0xff]
        %v2681 = vld [vmem:[%s252 + $0x2a] sm:$0xff]
        %v2682 = vld [vmem:[%s252 + $0x32] sm:$0xff]
        %v2683 = vld [vmem:[%s252 + $0x3a] sm:$0xff]
        %v2684 = vld [vmem:[%s252 + $0x42] sm:$0xff]
        %v2685 = vld [vmem:[%s252 + $0x4a] sm:$0xff]
        %v2686 = vld [vmem:[%s252 + $0x52] sm:$0xff]
        %v2687 = vld [vmem:[%s252 + $0x5a] sm:$0xff]
        %v2688 = vld [vmem:[%s252 + $0x62] sm:$0xff]
        %v2689 = vld [vmem:[%s252 + $0x6a] sm:$0xff]
        %v2690 = vld [vmem:[%s252 + $0x72] sm:$0xff]
        %v2691 = vld [vmem:[%s252 + $0x7a] sm:$0xff]
        %v2692 = vld [vmem:[%s252 + $0x82] sm:$0xff]
        %v2693 = vld [vmem:[%s252 + $0x8a] sm:$0xff]
        %v2694 = vld [vmem:[%s252 + $0x92] sm:$0xff]
        %v2695 = vld [vmem:[%s252 + $0x9a] sm:$0xff]
        %v2696 = vld [vmem:[%s252 + $0xa2] sm:$0xff]
        %v2697 = vld [vmem:[%s252 + $0xaa] sm:$0xff]
        %v2698 = vld [vmem:[%s252 + $0xb2] sm:$0xff]
        %v2699 = vld [vmem:[%s252 + $0xba] sm:$0xff]
        %v2700 = vld [vmem:[%s252 + $0xc2] sm:$0xff]
        %v2701 = vld [vmem:[%s252 + $0xca] sm:$0xff]
        %v2702 = vld [vmem:[%s252 + $0xd2] sm:$0xff]
        %v2703 = vld [vmem:[%s252 + $0xda] sm:$0xff]
        %v2704 = vld [vmem:[%s252 + $0xe2] sm:$0xff]
        %v2705 = vld [vmem:[%s252 + $0xea] sm:$0xff]
        %v2706 = vld [vmem:[%s252 + $0xf2] sm:$0xff]
        %v2707 = vld [vmem:[%s252 + $0xfa] sm:$0xff]
        %v2708 = vld [vmem:[%s252 + $0x102] sm:$0xff]
        %v2709 = vld [vmem:[%s252 + $0x10a] sm:$0xff]
        %v2710 = vld [vmem:[%s252 + $0x112] sm:$0xff]
        %v2711 = vld [vmem:[%s252 + $0x11a] sm:$0xff]
        %v2712 = vpack.c.bf16 %v2681, %v2680
        %v2713 = vpack.c.bf16 %v2683, %v2682
        %v2714 = vpack.c.bf16 %v2685, %v2684
        %v2715 = vpack.c.bf16 %v2687, %v2686
        %v2716 = vpack.c.bf16 %v2689, %v2688
        %v2717 = vpack.c.bf16 %v2691, %v2690
        %v2718 = vpack.c.bf16 %v2693, %v2692
        %v2719 = vpack.c.bf16 %v2695, %v2694
        %v2720 = vpack.c.bf16 %v2697, %v2696
        %v2721 = vpack.c.bf16 %v2699, %v2698
        %v2722 = vpack.c.bf16 %v2701, %v2700
        %v2723 = vpack.c.bf16 %v2703, %v2702
        %v2724 = vpack.c.bf16 %v2705, %v2704
        %v2725 = vpack.c.bf16 %v2707, %v2706
        %v2726 = vpack.c.bf16 %v2709, %v2708
        %v2727 = vpack.c.bf16 %v2711, %v2710
        %s2728 = scalar_lea.vmem [#allocation5], 512
        %v2729 = vld [vmem:[%s2728] sm:$0xf]
        %v2730 = vld [vmem:[%s2728 + $0x4] sm:$0xf]
        %v2731 = vld [vmem:[%s2728 + $0x8] sm:$0xf]
        %v2732 = vld [vmem:[%s2728 + $0xc] sm:$0xf]
        %v2733 = vld [vmem:[%s2728 + $0x10] sm:$0xf]
        %v2734 = vld [vmem:[%s2728 + $0x14] sm:$0xf]
        %v2735 = vld [vmem:[%s2728 + $0x18] sm:$0xf]
        %v2736 = vld [vmem:[%s2728 + $0x1c] sm:$0xf]
        %v2737 = vld [vmem:[%s2728 + $0x20] sm:$0xf]
        %v2738 = vld [vmem:[%s2728 + $0x24] sm:$0xf]
        %v2739 = vld [vmem:[%s2728 + $0x28] sm:$0xf]
        %v2740 = vld [vmem:[%s2728 + $0x2c] sm:$0xf]
        %v2741 = vld [vmem:[%s2728 + $0x30] sm:$0xf]
        %v2742 = vld [vmem:[%s2728 + $0x34] sm:$0xf]
        %v2743 = vld [vmem:[%s2728 + $0x38] sm:$0xf]
        %v2744 = vld [vmem:[%s2728 + $0x3c] sm:$0xf]
        %v2761 = vunpack.c.l.b16 %v2729
        %v2762 = vunpack.c.l.b16 %v2730
        %v2763 = vunpack.c.l.b16 %v2731
        %v2764 = vunpack.c.l.b16 %v2732
        %v2765 = vunpack.c.l.b16 %v2733
        %v2766 = vunpack.c.l.b16 %v2734
        %v2767 = vunpack.c.l.b16 %v2735
        %v2768 = vunpack.c.l.b16 %v2736
        %v2769 = vunpack.c.l.b16 %v2737
        %v2770 = vunpack.c.l.b16 %v2738
        %v2771 = vunpack.c.l.b16 %v2739
        %v2772 = vunpack.c.l.b16 %v2740
        %v2773 = vunpack.c.l.b16 %v2741
        %v2774 = vunpack.c.l.b16 %v2742
        %v2775 = vunpack.c.l.b16 %v2743
        %v2776 = vunpack.c.l.b16 %v2744
        %v2777 = vpack.c.b16 %v2762, %v2761
        %v2778 = vpack.c.b16 %v2764, %v2763
        %v2779 = vpack.c.b16 %v2766, %v2765
        %v2780 = vpack.c.b16 %v2768, %v2767
        %v2781 = vpack.c.b16 %v2770, %v2769
        %v2782 = vpack.c.b16 %v2772, %v2771
        %v2783 = vpack.c.b16 %v2774, %v2773
        %v2784 = vpack.c.b16 %v2776, %v2775
        %2793 = vmatprep.subr.bf16.mxu0 0
        %2794 = vmatpush1.bf16.msra.mxu0 %v2777
        %2795 = vmatprep.subr.bf16.mxu0 0
        %2796 = vmatpush1.bf16.msra.mxu0 %v2778
        %2797 = vmatprep.subr.bf16.mxu0 0
        %2798 = vmatpush1.bf16.msra.mxu0 %v2779
        %2799 = vmatprep.subr.bf16.mxu0 0
        %2800 = vmatpush1.bf16.msra.mxu0 %v2780
        %2801 = vmatprep.subr.bf16.mxu0 0
        %2802 = vmatpush1.bf16.msra.mxu0 %v2781
        %2803 = vmatprep.subr.bf16.mxu0 0
        %2804 = vmatpush1.bf16.msra.mxu0 %v2782
        %2805 = vmatprep.subr.bf16.mxu0 0
        %2806 = vmatpush1.bf16.msra.mxu0 %v2783
        %2807 = vmatprep.subr.bf16.mxu0 0
        %2808 = vmatpush1.bf16.msra.mxu0 %v2784
        %2809 = vmatprep.subr.bf16.mxu0 0
        %2810 = vmatpush1.bf16.msra.mxu0 0
        %2811 = vmatprep.subr.bf16.mxu0 0
        %2812 = vmatpush1.bf16.msra.mxu0 0
        %2813 = vmatprep.subr.bf16.mxu0 0
        %2814 = vmatpush1.bf16.msra.mxu0 0
        %2815 = vmatprep.subr.bf16.mxu0 0
        %2816 = vmatpush1.bf16.msra.mxu0 0
        %2817 = vmatprep.subr.bf16.mxu0 0
        %2818 = vmatpush1.bf16.msra.mxu0 0
        %2819 = vmatprep.subr.bf16.mxu0 0
        %2820 = vmatpush1.bf16.msra.mxu0 0
        %2821 = vmatprep.subr.bf16.mxu0 0
        %2822 = vmatpush1.bf16.msra.mxu0 0
        %2823 = vmatprep.subr.bf16.mxu0 0
        %2824 = vmatpush1.bf16.msra.mxu0 0
        %2825 = vmatprep.mubr.bf16.mxu0 0
        %2826 = vmatmul.mubr.bf16.gmra.mrb[0].mxu0 %v2712
        %v2827 = vpop.f32.mrb[0].mxu0
        %v2828 = vadd.f32 0.0, %v2827
        %v2829 = vpop.f32.mrb[0].mxu0
        %v2830 = vpop.f32.mrb[0].mxu0
        %v2831 = vadd.f32 0.0, %v2830
        %v2832 = vpop.f32.mrb[0].mxu0
        %2833 = vmatprep.mubr.bf16.mxu0 0
        %2834 = vmatmul.mubr.bf16.gmra.mrb[0].mxu0 %v2713
        %v2835 = vpop.f32.mrb[0].mxu0
        %v2836 = vadd.f32 0.0, %v2835
        %v2837 = vpop.f32.mrb[0].mxu0
        %v2838 = vpop.f32.mrb[0].mxu0
        %v2839 = vadd.f32 0.0, %v2838
        %v2840 = vpop.f32.mrb[0].mxu0
        %2841 = vmatprep.mubr.bf16.mxu0 0
        %2842 = vmatmul.mubr.bf16.gmra.mrb[0].mxu0 %v2714
        %v2843 = vpop.f32.mrb[0].mxu0
        %v2844 = vadd.f32 0.0, %v2843
        %v2845 = vpop.f32.mrb[0].mxu0
        %v2846 = vpop.f32.mrb[0].mxu0
        %v2847 = vadd.f32 0.0, %v2846
        %v2848 = vpop.f32.mrb[0].mxu0
        %2849 = vmatprep.mubr.bf16.mxu0 0
        %2850 = vmatmul.mubr.bf16.gmra.mrb[0].mxu0 %v2715
        %v2851 = vpop.f32.mrb[0].mxu0
        %v2852 = vadd.f32 0.0, %v2851
        %v2853 = vpop.f32.mrb[0].mxu0
        %v2854 = vpop.f32.mrb[0].mxu0
        %v2855 = vadd.f32 0.0, %v2854
        %v2856 = vpop.f32.mrb[0].mxu0
        %2857 = vmatprep.mubr.bf16.mxu0 0
        %2858 = vmatmul.mubr.bf16.gmra.mrb[0].mxu0 %v2716
        %v2859 = vpop.f32.mrb[0].mxu0
        %v2860 = vadd.f32 0.0, %v2859
        %v2861 = vpop.f32.mrb[0].mxu0
        %v2862 = vpop.f32.mrb[0].mxu0
        %v2863 = vadd.f32 0.0, %v2862
        %v2864 = vpop.f32.mrb[0].mxu0
        %2865 = vmatprep.mubr.bf16.mxu0 0
        %2866 = vmatmul.mubr.bf16.gmra.mrb[0].mxu0 %v2717
        %v2867 = vpop.f32.mrb[0].mxu0
        %v2868 = vadd.f32 0.0, %v2867
        %v2869 = vpop.f32.mrb[0].mxu0
        %v2870 = vpop.f32.mrb[0].mxu0
        %v2871 = vadd.f32 0.0, %v2870
        %v2872 = vpop.f32.mrb[0].mxu0
        %2873 = vmatprep.mubr.bf16.mxu0 0
        %2874 = vmatmul.mubr.bf16.gmra.mrb[0].mxu0 %v2718
        %v2875 = vpop.f32.mrb[0].mxu0
        %v2876 = vadd.f32 0.0, %v2875
        %v2877 = vpop.f32.mrb[0].mxu0
        %v2878 = vpop.f32.mrb[0].mxu0
        %v2879 = vadd.f32 0.0, %v2878
        %v2880 = vpop.f32.mrb[0].mxu0
        %2881 = vmatprep.mubr.bf16.mxu0 0
        %2882 = vmatmul.mubr.bf16.gmra.mrb[0].mxu0 %v2719
        %v2883 = vpop.f32.mrb[0].mxu0
        %v2884 = vadd.f32 0.0, %v2883
        %v2885 = vpop.f32.mrb[0].mxu0
        %v2886 = vpop.f32.mrb[0].mxu0
        %v2887 = vadd.f32 0.0, %v2886
        %v2888 = vpop.f32.mrb[0].mxu0
        %2889 = vmatprep.mubr.bf16.mxu0 0
        %2890 = vmatmul.mubr.bf16.gmra.mrb[0].mxu0 %v2720
        %v2891 = vpop.f32.mrb[0].mxu0
        %v2892 = vadd.f32 0.0, %v2891
        %v2893 = vpop.f32.mrb[0].mxu0
        %v2894 = vpop.f32.mrb[0].mxu0
        %v2895 = vadd.f32 0.0, %v2894
        %v2896 = vpop.f32.mrb[0].mxu0
        %2897 = vmatprep.mubr.bf16.mxu0 0
        %2898 = vmatmul.mubr.bf16.gmra.mrb[0].mxu0 %v2721
        %v2899 = vpop.f32.mrb[0].mxu0
        %v2900 = vadd.f32 0.0, %v2899
        %v2901 = vpop.f32.mrb[0].mxu0
        %v2902 = vpop.f32.mrb[0].mxu0
        %v2903 = vadd.f32 0.0, %v2902
        %v2904 = vpop.f32.mrb[0].mxu0
        %2905 = vmatprep.mubr.bf16.mxu0 0
        %2906 = vmatmul.mubr.bf16.gmra.mrb[0].mxu0 %v2722
        %v2907 = vpop.f32.mrb[0].mxu0
        %v2908 = vadd.f32 0.0, %v2907
        %v2909 = vpop.f32.mrb[0].mxu0
        %v2910 = vpop.f32.mrb[0].mxu0
        %v2911 = vadd.f32 0.0, %v2910
        %v2912 = vpop.f32.mrb[0].mxu0
        %2913 = vmatprep.mubr.bf16.mxu0 0
        %2914 = vmatmul.mubr.bf16.gmra.mrb[0].mxu0 %v2723
        %v2915 = vpop.f32.mrb[0].mxu0
        %v2916 = vadd.f32 0.0, %v2915
        %v2917 = vpop.f32.mrb[0].mxu0
        %v2918 = vpop.f32.mrb[0].mxu0
        %v2919 = vadd.f32 0.0, %v2918
        %v2920 = vpop.f32.mrb[0].mxu0
        %2921 = vmatprep.mubr.bf16.mxu0 0
        %2922 = vmatmul.mubr.bf16.gmra.mrb[0].mxu0 %v2724
        %v2923 = vpop.f32.mrb[0].mxu0
        %v2924 = vadd.f32 0.0, %v2923
        %v2925 = vpop.f32.mrb[0].mxu0
        %v2926 = vpop.f32.mrb[0].mxu0
        %v2927 = vadd.f32 0.0, %v2926
        %v2928 = vpop.f32.mrb[0].mxu0
        %2929 = vmatprep.mubr.bf16.mxu0 0
        %2930 = vmatmul.mubr.bf16.gmra.mrb[0].mxu0 %v2725
        %v2931 = vpop.f32.mrb[0].mxu0
        %v2932 = vadd.f32 0.0, %v2931
        %v2933 = vpop.f32.mrb[0].mxu0
        %v2934 = vpop.f32.mrb[0].mxu0
        %v2935 = vadd.f32 0.0, %v2934
        %v2936 = vpop.f32.mrb[0].mxu0
        %2937 = vmatprep.mubr.bf16.mxu0 0
        %2938 = vmatmul.mubr.bf16.gmra.mrb[0].mxu0 %v2726
        %v2939 = vpop.f32.mrb[0].mxu0
        %v2940 = vadd.f32 0.0, %v2939
        %v2941 = vpop.f32.mrb[0].mxu0
        %v2942 = vpop.f32.mrb[0].mxu0
        %v2943 = vadd.f32 0.0, %v2942
        %v2944 = vpop.f32.mrb[0].mxu0
        %2945 = vmatprep.mubr.bf16.mxu0 0
        %2946 = vmatmul.mubr.bf16.gmra.mrb[0].mxu0 %v2727
        %v2947 = vpop.f32.mrb[0].mxu0
        %v2948 = vadd.f32 0.0, %v2947
        %v2949 = vpop.f32.mrb[0].mxu0
        %v2950 = vpop.f32.mrb[0].mxu0
        %v2951 = vadd.f32 0.0, %v2950
        %v2952 = vpop.f32.mrb[0].mxu0
        %2953 = vdwg.mxu0
        %v2954 = vadd.f32 %v2648, %v2828
        %v2955 = vadd.f32 %v2649, %v2831
        %v2956 = vadd.f32 %v2650, %v2836
        %v2957 = vadd.f32 %v2651, %v2839
        %v2958 = vadd.f32 %v2652, %v2844
        %v2959 = vadd.f32 %v2653, %v2847
        %v2960 = vadd.f32 %v2654, %v2852
        %v2961 = vadd.f32 %v2655, %v2855
        %v2962 = vadd.f32 %v2656, %v2860
        %v2963 = vadd.f32 %v2657, %v2863
        %v2964 = vadd.f32 %v2658, %v2868
        %v2965 = vadd.f32 %v2659, %v2871
        %v2966 = vadd.f32 %v2660, %v2876
        %v2967 = vadd.f32 %v2661, %v2879
        %v2968 = vadd.f32 %v2662, %v2884
        %v2969 = vadd.f32 %v2663, %v2887
        %v2970 = vadd.f32 %v2664, %v2892
        %v2971 = vadd.f32 %v2665, %v2895
        %v2972 = vadd.f32 %v2666, %v2900
        %v2973 = vadd.f32 %v2667, %v2903
        %v2974 = vadd.f32 %v2668, %v2908
        %v2975 = vadd.f32 %v2669, %v2911
        %v2976 = vadd.f32 %v2670, %v2916
        %v2977 = vadd.f32 %v2671, %v2919
        %v2978 = vadd.f32 %v2672, %v2924
        %v2979 = vadd.f32 %v2673, %v2927
        %v2980 = vadd.f32 %v2674, %v2932
        %v2981 = vadd.f32 %v2675, %v2935
        %v2982 = vadd.f32 %v2676, %v2940
        %v2983 = vadd.f32 %v2677, %v2943
        %v2984 = vadd.f32 %v2678, %v2948
        %v2985 = vadd.f32 %v2679, %v2951
        %v2986 = vld [vmem:[#allocation7] sm:$0x1]
        %v2988 = vlaneseq
        %v2989 = vshrl.u32 %v2988, 7
        %v2990 = vsub.s32 0, %v2989
        %v2991 = vrot.slane %v2986, %v2990
        %v2993 = vadd.f32 %v2954, %v2991
        %v2994 = vadd.f32 %v2955, %v2991
        %v2995 = vadd.f32 %v2956, %v2991
        %v2996 = vadd.f32 %v2957, %v2991
        %v2997 = vadd.f32 %v2958, %v2991
        %v2998 = vadd.f32 %v2959, %v2991
        %v2999 = vadd.f32 %v2960, %v2991
        %v3000 = vadd.f32 %v2961, %v2991
        %v3001 = vadd.f32 %v2962, %v2991
        %v3002 = vadd.f32 %v2963, %v2991
        %v3003 = vadd.f32 %v2964, %v2991
        %v3004 = vadd.f32 %v2965, %v2991
        %v3005 = vadd.f32 %v2966, %v2991
        %v3006 = vadd.f32 %v2967, %v2991
        %v3007 = vadd.f32 %v2968, %v2991
        %v3008 = vadd.f32 %v2969, %v2991
        %v3009 = vadd.f32 %v2970, %v2991
        %v3010 = vadd.f32 %v2971, %v2991
        %v3011 = vadd.f32 %v2972, %v2991
        %v3012 = vadd.f32 %v2973, %v2991
        %v3013 = vadd.f32 %v2974, %v2991
        %v3014 = vadd.f32 %v2975, %v2991
        %v3015 = vadd.f32 %v2976, %v2991
        %v3016 = vadd.f32 %v2977, %v2991
        %v3017 = vadd.f32 %v2978, %v2991
        %v3018 = vadd.f32 %v2979, %v2991
        %v3019 = vadd.f32 %v2980, %v2991
        %v3020 = vadd.f32 %v2981, %v2991
        %v3021 = vadd.f32 %v2982, %v2991
        %v3022 = vadd.f32 %v2983, %v2991
        %v3023 = vadd.f32 %v2984, %v2991
        %v3024 = vadd.f32 %v2985, %v2991
        %v3025 = vld [vmem:[#allocation8] sm:$0xff]
        %v3026 = vld [vmem:[#allocation8 + $0x8] sm:$0xff]
        %v3027 = vld [vmem:[#allocation8 + $0x10] sm:$0xff]
        %v3028 = vld [vmem:[#allocation8 + $0x18] sm:$0xff]
        %v3029 = vld [vmem:[#allocation8 + $0x20] sm:$0xff]
        %v3030 = vld [vmem:[#allocation8 + $0x28] sm:$0xff]
        %v3031 = vld [vmem:[#allocation8 + $0x30] sm:$0xff]
        %v3032 = vld [vmem:[#allocation8 + $0x38] sm:$0xff]
        %v3033 = vld [vmem:[#allocation8 + $0x40] sm:$0xff]
        %v3034 = vld [vmem:[#allocation8 + $0x48] sm:$0xff]
        %v3035 = vld [vmem:[#allocation8 + $0x50] sm:$0xff]
        %v3036 = vld [vmem:[#allocation8 + $0x58] sm:$0xff]
        %v3037 = vld [vmem:[#allocation8 + $0x60] sm:$0xff]
        %v3038 = vld [vmem:[#allocation8 + $0x68] sm:$0xff]
        %v3039 = vld [vmem:[#allocation8 + $0x70] sm:$0xff]
        %v3040 = vld [vmem:[#allocation8 + $0x78] sm:$0xff]
        %v3041 = vld [vmem:[#allocation8 + $0x80] sm:$0xff]
        %v3042 = vld [vmem:[#allocation8 + $0x88] sm:$0xff]
        %v3043 = vld [vmem:[#allocation8 + $0x90] sm:$0xff]
        %v3044 = vld [vmem:[#allocation8 + $0x98] sm:$0xff]
        %v3045 = vld [vmem:[#allocation8 + $0xa0] sm:$0xff]
        %v3046 = vld [vmem:[#allocation8 + $0xa8] sm:$0xff]
        %v3047 = vld [vmem:[#allocation8 + $0xb0] sm:$0xff]
        %v3048 = vld [vmem:[#allocation8 + $0xb8] sm:$0xff]
        %v3049 = vld [vmem:[#allocation8 + $0xc0] sm:$0xff]
        %v3050 = vld [vmem:[#allocation8 + $0xc8] sm:$0xff]
        %v3051 = vld [vmem:[#allocation8 + $0xd0] sm:$0xff]
        %v3052 = vld [vmem:[#allocation8 + $0xd8] sm:$0xff]
        %v3053 = vld [vmem:[#allocation8 + $0xe0] sm:$0xff]
        %v3054 = vld [vmem:[#allocation8 + $0xe8] sm:$0xff]
        %v3055 = vld [vmem:[#allocation8 + $0xf0] sm:$0xff]
        %v3056 = vld [vmem:[#allocation8 + $0xf8] sm:$0xff]
        %3058 = vset.pattern.permute.xlu0 0
        %3059 = vperm.xlu0 %3058, %v3025
        %v3060 = vpop.permute.xlu0 %3059
        %3063 = vset.pattern.permute.xlu0 0
        %3064 = vperm.xlu0 %3063, %v3026
        %v3065 = vpop.permute.xlu0 %3064
        %3068 = vset.pattern.permute.xlu0 0
        %3069 = vperm.xlu0 %3068, %v3027
        %v3070 = vpop.permute.xlu0 %3069
        %3073 = vset.pattern.permute.xlu0 0
        %3074 = vperm.xlu0 %3073, %v3028
        %v3075 = vpop.permute.xlu0 %3074
        %3078 = vset.pattern.permute.xlu0 0
        %3079 = vperm.xlu0 %3078, %v3029
        %v3080 = vpop.permute.xlu0 %3079
        %3083 = vset.pattern.permute.xlu0 0
        %3084 = vperm.xlu0 %3083, %v3030
        %v3085 = vpop.permute.xlu0 %3084
        %3088 = vset.pattern.permute.xlu0 0
        %3089 = vperm.xlu0 %3088, %v3031
        %v3090 = vpop.permute.xlu0 %3089
        %3093 = vset.pattern.permute.xlu0 0
        %3094 = vperm.xlu0 %3093, %v3032
        %v3095 = vpop.permute.xlu0 %3094
        %3098 = vset.pattern.permute.xlu0 0
        %3099 = vperm.xlu0 %3098, %v3033
        %v3100 = vpop.permute.xlu0 %3099
        %3103 = vset.pattern.permute.xlu0 0
        %3104 = vperm.xlu0 %3103, %v3034
        %v3105 = vpop.permute.xlu0 %3104
        %3108 = vset.pattern.permute.xlu0 0
        %3109 = vperm.xlu0 %3108, %v3035
        %v3110 = vpop.permute.xlu0 %3109
        %3113 = vset.pattern.permute.xlu0 0
        %3114 = vperm.xlu0 %3113, %v3036
        %v3115 = vpop.permute.xlu0 %3114
        %3118 = vset.pattern.permute.xlu0 0
        %3119 = vperm.xlu0 %3118, %v3037
        %v3120 = vpop.permute.xlu0 %3119
        %3123 = vset.pattern.permute.xlu0 0
        %3124 = vperm.xlu0 %3123, %v3038
        %v3125 = vpop.permute.xlu0 %3124
        %3128 = vset.pattern.permute.xlu0 0
        %3129 = vperm.xlu0 %3128, %v3039
        %v3130 = vpop.permute.xlu0 %3129
        %3133 = vset.pattern.permute.xlu0 0
        %3134 = vperm.xlu0 %3133, %v3040
        %v3135 = vpop.permute.xlu0 %3134
        %3138 = vset.pattern.permute.xlu0 0
        %3139 = vperm.xlu0 %3138, %v3041
        %v3140 = vpop.permute.xlu0 %3139
        %3143 = vset.pattern.permute.xlu0 0
        %3144 = vperm.xlu0 %3143, %v3042
        %v3145 = vpop.permute.xlu0 %3144
        %3148 = vset.pattern.permute.xlu0 0
        %3149 = vperm.xlu0 %3148, %v3043
        %v3150 = vpop.permute.xlu0 %3149
        %3153 = vset.pattern.permute.xlu0 0
        %3154 = vperm.xlu0 %3153, %v3044
        %v3155 = vpop.permute.xlu0 %3154
        %3158 = vset.pattern.permute.xlu0 0
        %3159 = vperm.xlu0 %3158, %v3045
        %v3160 = vpop.permute.xlu0 %3159
        %3163 = vset.pattern.permute.xlu0 0
        %3164 = vperm.xlu0 %3163, %v3046
        %v3165 = vpop.permute.xlu0 %3164
        %3168 = vset.pattern.permute.xlu0 0
        %3169 = vperm.xlu0 %3168, %v3047
        %v3170 = vpop.permute.xlu0 %3169
        %3173 = vset.pattern.permute.xlu0 0
        %3174 = vperm.xlu0 %3173, %v3048
        %v3175 = vpop.permute.xlu0 %3174
        %3178 = vset.pattern.permute.xlu0 0
        %3179 = vperm.xlu0 %3178, %v3049
        %v3180 = vpop.permute.xlu0 %3179
        %3183 = vset.pattern.permute.xlu0 0
        %3184 = vperm.xlu0 %3183, %v3050
        %v3185 = vpop.permute.xlu0 %3184
        %3188 = vset.pattern.permute.xlu0 0
        %3189 = vperm.xlu0 %3188, %v3051
        %v3190 = vpop.permute.xlu0 %3189
        %3193 = vset.pattern.permute.xlu0 0
        %3194 = vperm.xlu0 %3193, %v3052
        %v3195 = vpop.permute.xlu0 %3194
        %3198 = vset.pattern.permute.xlu0 0
        %3199 = vperm.xlu0 %3198, %v3053
        %v3200 = vpop.permute.xlu0 %3199
        %3203 = vset.pattern.permute.xlu0 0
        %3204 = vperm.xlu0 %3203, %v3054
        %v3205 = vpop.permute.xlu0 %3204
        %3208 = vset.pattern.permute.xlu0 0
        %3209 = vperm.xlu0 %3208, %v3055
        %v3210 = vpop.permute.xlu0 %3209
        %3213 = vset.pattern.permute.xlu0 0
        %3214 = vperm.xlu0 %3213, %v3056
        %v3215 = vpop.permute.xlu0 %3214
        %v3217 = vmul.f32 %v2993, %v3060
        %v3218 = vmul.f32 %v2994, %v3065
        %v3219 = vmul.f32 %v2995, %v3070
        %v3220 = vmul.f32 %v2996, %v3075
        %v3221 = vmul.f32 %v2997, %v3080
        %v3222 = vmul.f32 %v2998, %v3085
        %v3223 = vmul.f32 %v2999, %v3090
        %v3224 = vmul.f32 %v3000, %v3095
        %v3225 = vmul.f32 %v3001, %v3100
        %v3226 = vmul.f32 %v3002, %v3105
        %v3227 = vmul.f32 %v3003, %v3110
        %v3228 = vmul.f32 %v3004, %v3115
        %v3229 = vmul.f32 %v3005, %v3120
        %v3230 = vmul.f32 %v3006, %v3125
        %v3231 = vmul.f32 %v3007, %v3130
        %v3232 = vmul.f32 %v3008, %v3135
        %v3233 = vmul.f32 %v3009, %v3140
        %v3234 = vmul.f32 %v3010, %v3145
        %v3235 = vmul.f32 %v3011, %v3150
        %v3236 = vmul.f32 %v3012, %v3155
        %v3237 = vmul.f32 %v3013, %v3160
        %v3238 = vmul.f32 %v3014, %v3165
        %v3239 = vmul.f32 %v3015, %v3170
        %v3240 = vmul.f32 %v3016, %v3175
        %v3241 = vmul.f32 %v3017, %v3180
        %v3242 = vmul.f32 %v3018, %v3185
        %v3243 = vmul.f32 %v3019, %v3190
        %v3244 = vmul.f32 %v3020, %v3195
        %v3245 = vmul.f32 %v3021, %v3200
        %v3246 = vmul.f32 %v3022, %v3205
        %v3247 = vmul.f32 %v3023, %v3210
        %v3248 = vmul.f32 %v3024, %v3215
        %3249 = vst [vmem:[%s288] sm:$0xff] %v3217
        %3250 = vst [vmem:[%s288 + $0x8] sm:$0xff] %v3218
        %3251 = vst [vmem:[%s288 + $0x10] sm:$0xff] %v3219
        %3252 = vst [vmem:[%s288 + $0x18] sm:$0xff] %v3220
        %3253 = vst [vmem:[%s288 + $0x20] sm:$0xff] %v3221
        %3254 = vst [vmem:[%s288 + $0x28] sm:$0xff] %v3222
        %3255 = vst [vmem:[%s288 + $0x30] sm:$0xff] %v3223
        %3256 = vst [vmem:[%s288 + $0x38] sm:$0xff] %v3224
        %3257 = vst [vmem:[%s288 + $0x40] sm:$0xff] %v3225
        %3258 = vst [vmem:[%s288 + $0x48] sm:$0xff] %v3226
        %3259 = vst [vmem:[%s288 + $0x50] sm:$0xff] %v3227
        %3260 = vst [vmem:[%s288 + $0x58] sm:$0xff] %v3228
        %3261 = vst [vmem:[%s288 + $0x60] sm:$0xff] %v3229
        %3262 = vst [vmem:[%s288 + $0x68] sm:$0xff] %v3230
        %3263 = vst [vmem:[%s288 + $0x70] sm:$0xff] %v3231
        %3264 = vst [vmem:[%s288 + $0x78] sm:$0xff] %v3232
        %3265 = vst [vmem:[%s288 + $0x80] sm:$0xff] %v3233
        %3266 = vst [vmem:[%s288 + $0x88] sm:$0xff] %v3234
        %3267 = vst [vmem:[%s288 + $0x90] sm:$0xff] %v3235
        %3268 = vst [vmem:[%s288 + $0x98] sm:$0xff] %v3236
        %3269 = vst [vmem:[%s288 + $0xa0] sm:$0xff] %v3237
        %3270 = vst [vmem:[%s288 + $0xa8] sm:$0xff] %v3238
        %3271 = vst [vmem:[%s288 + $0xb0] sm:$0xff] %v3239
        %3272 = vst [vmem:[%s288 + $0xb8] sm:$0xff] %v3240
        %3273 = vst [vmem:[%s288 + $0xc0] sm:$0xff] %v3241
        %3274 = vst [vmem:[%s288 + $0xc8] sm:$0xff] %v3242
        %3275 = vst [vmem:[%s288 + $0xd0] sm:$0xff] %v3243
        %3276 = vst [vmem:[%s288 + $0xd8] sm:$0xff] %v3244
        %3277 = vst [vmem:[%s288 + $0xe0] sm:$0xff] %v3245
        %3278 = vst [vmem:[%s288 + $0xe8] sm:$0xff] %v3246
        %3279 = vst [vmem:[%s288 + $0xf0] sm:$0xff] %v3247
        %3280 = vst [vmem:[%s288 + $0xf8] sm:$0xff] %v3248
        %v3281 = vadd.f32 %v3217, %v3218
        %v3282 = vadd.f32 %v3281, %v3219
        %v3283 = vadd.f32 %v3282, %v3220
        %v3284 = vadd.f32 %v3283, %v3221
        %v3285 = vadd.f32 %v3284, %v3222
        %v3286 = vadd.f32 %v3285, %v3223
        %v3287 = vadd.f32 %v3286, %v3224
        %v3288 = vadd.f32 %v3287, %v3225
        %v3289 = vadd.f32 %v3288, %v3226
        %v3290 = vadd.f32 %v3289, %v3227
        %v3291 = vadd.f32 %v3290, %v3228
        %v3292 = vadd.f32 %v3291, %v3229
        %v3293 = vadd.f32 %v3292, %v3230
        %v3294 = vadd.f32 %v3293, %v3231
        %v3295 = vadd.f32 %v3294, %v3232
        %v3296 = vadd.f32 %v3295, %v3233
        %v3297 = vadd.f32 %v3296, %v3234
        %v3298 = vadd.f32 %v3297, %v3235
        %v3299 = vadd.f32 %v3298, %v3236
        %v3300 = vadd.f32 %v3299, %v3237
        %v3301 = vadd.f32 %v3300, %v3238
        %v3302 = vadd.f32 %v3301, %v3239
        %v3303 = vadd.f32 %v3302, %v3240
        %v3304 = vadd.f32 %v3303, %v3241
        %v3305 = vadd.f32 %v3304, %v3242
        %v3306 = vadd.f32 %v3305, %v3243
        %v3307 = vadd.f32 %v3306, %v3244
        %v3308 = vadd.f32 %v3307, %v3245
        %v3309 = vadd.f32 %v3308, %v3246
        %v3310 = vadd.f32 %v3309, %v3247
        %v3311 = vadd.f32 %v3310, %v3248
        %v3312 = vrot.slane %v3311, 4
        %v3313 = vadd.f32 %v3311, %v3312
        %v3314 = vrot.slane %v3313, 2
        %v3315 = vadd.f32 %v3313, %v3314
        %v3316 = vrot.slane %v3315, 1
        %v3317 = vadd.f32 %v3315, %v3316
        %v3318 = vmul.f32 %v3217, %v3217
        %v3319 = vmul.f32 %v3218, %v3218
        %v3320 = vmul.f32 %v3219, %v3219
        %v3321 = vmul.f32 %v3220, %v3220
        %v3322 = vmul.f32 %v3221, %v3221
        %v3323 = vmul.f32 %v3222, %v3222
        %v3324 = vmul.f32 %v3223, %v3223
        %v3325 = vmul.f32 %v3224, %v3224
        %v3326 = vmul.f32 %v3225, %v3225
        %v3327 = vmul.f32 %v3226, %v3226
        %v3328 = vmul.f32 %v3227, %v3227
        %v3329 = vmul.f32 %v3228, %v3228
        %v3330 = vmul.f32 %v3229, %v3229
        %v3331 = vmul.f32 %v3230, %v3230
        %v3332 = vmul.f32 %v3231, %v3231
        %v3333 = vmul.f32 %v3232, %v3232
        %v3334 = vmul.f32 %v3233, %v3233
        %v3335 = vmul.f32 %v3234, %v3234
        %v3336 = vmul.f32 %v3235, %v3235
        %v3337 = vmul.f32 %v3236, %v3236
        %v3338 = vmul.f32 %v3237, %v3237
        %v3339 = vmul.f32 %v3238, %v3238
        %v3340 = vmul.f32 %v3239, %v3239
        %v3341 = vmul.f32 %v3240, %v3240
        %v3342 = vmul.f32 %v3241, %v3241
        %v3343 = vmul.f32 %v3242, %v3242
        %v3344 = vmul.f32 %v3243, %v3243
        %v3345 = vmul.f32 %v3244, %v3244
        %v3346 = vmul.f32 %v3245, %v3245
        %v3347 = vmul.f32 %v3246, %v3246
        %v3348 = vmul.f32 %v3247, %v3247
        %v3349 = vmul.f32 %v3248, %v3248
        %v3350 = vadd.f32 %v3318, %v3319
        %v3351 = vadd.f32 %v3350, %v3320
        %v3352 = vadd.f32 %v3351, %v3321
        %v3353 = vadd.f32 %v3352, %v3322
        %v3354 = vadd.f32 %v3353, %v3323
        %v3355 = vadd.f32 %v3354, %v3324
        %v3356 = vadd.f32 %v3355, %v3325
        %v3357 = vadd.f32 %v3356, %v3326
        %v3358 = vadd.f32 %v3357, %v3327
        %v3359 = vadd.f32 %v3358, %v3328
        %v3360 = vadd.f32 %v3359, %v3329
        %v3361 = vadd.f32 %v3360, %v3330
        %v3362 = vadd.f32 %v3361, %v3331
        %v3363 = vadd.f32 %v3362, %v3332
        %v3364 = vadd.f32 %v3363, %v3333
        %v3365 = vadd.f32 %v3364, %v3334
        %v3366 = vadd.f32 %v3365, %v3335
        %v3367 = vadd.f32 %v3366, %v3336
        %v3368 = vadd.f32 %v3367, %v3337
        %v3369 = vadd.f32 %v3368, %v3338
        %v3370 = vadd.f32 %v3369, %v3339
        %v3371 = vadd.f32 %v3370, %v3340
        %v3372 = vadd.f32 %v3371, %v3341
        %v3373 = vadd.f32 %v3372, %v3342
        %v3374 = vadd.f32 %v3373, %v3343
        %v3375 = vadd.f32 %v3374, %v3344
        %v3376 = vadd.f32 %v3375, %v3345
        %v3377 = vadd.f32 %v3376, %v3346
        %v3378 = vadd.f32 %v3377, %v3347
        %v3379 = vadd.f32 %v3378, %v3348
        %v3380 = vadd.f32 %v3379, %v3349
        %v3381 = vrot.slane %v3380, 4
        %v3382 = vadd.f32 %v3380, %v3381
        %v3383 = vrot.slane %v3382, 2
        %v3384 = vadd.f32 %v3382, %v3383
        %v3385 = vrot.slane %v3384, 1
        %v3386 = vadd.f32 %v3384, %v3385
        %vm3387 = vcmask 1040384
        %v3388 = vsel %vm3387, %v3317, %v3386
        %3389 = vst [vmem:[%s295] sm:$0x3] %v3388
        %s3390 = sand.u32 %s125, 1
        %s3391 = scalar_lea.sflag [#allocation4], %s3390
        %s3392 = sand.u32 %s125, 1
        %s3393 = smul.addr %s3392, 256
        %s3394 = scalar_lea.vmem [#allocation10], %s3393
        %s3395 = sand.u32 %s151, 1
        %s3396 = scalar_lea.sflag [#allocation12], %s3395
        %s3397 = sand.u32 %s151, 1
        %s3398 = smul.addr %s3397, 2
        %s3399 = scalar_lea.vmem [#allocation11], %s3398
        // Predicated region
        $region53: #{bottleneck_forward.4} parent=35 // pred_check
          %p3400 = pneg %p135
        $region54: #{bottleneck_forward.4} parent=35 // pred_check_branch
          %3402 = sbr.rel (%p3400) target = $region56
        $region55: #{bottleneck_forward.4} parent=35 // pred_region
          %s3404 = ssub.s32 4096, 4096
          %3405 = vsyncadd %s3391, %s3404
          %s3406 = smul.addr %s28, 32
          %s3407 = smul.addr %s3406, 128
          %s3408 = scalar_lea.hbm %s4, %s3407
          %s3409 = sshll.u32 %s3394, 4
          %s3410 = int_to_ptr.vmem [resolvable:$true] %s3409
          %3415 = dma.vmem_to_hbm [thread:$0]  %s3410, 4096, %s3408, %s3391, 128, 128, 8
        $region56: #{bottleneck_forward.4} parent=35 // pred_fallthru
          _
        // Predicated region
        $region57: #{bottleneck_forward.4} parent=35 // pred_check
          %p3416 = pneg %p161
        $region58: #{bottleneck_forward.4} parent=35 // pred_check_branch
          %3418 = sbr.rel (%p3416) target = $region60
        $region59: #{bottleneck_forward.4} parent=35 // pred_region
          %s3420 = ssub.s32 32, 32
          %3421 = vsyncadd %s3396, %s3420
          %s3422 = smul.addr %s28, 32
          %s3423 = scalar_lea.hbm %s5, %s3422
          %s3425 = sshll.u32 %s3399, 4
          %s3426 = int_to_ptr.vmem [resolvable:$true] %s3425
          %3428 = dma.vmem_to_hbm [thread:$0]  %s3426, 32, %s3423, %s3396
        $region60: #{bottleneck_forward.4} parent=35 // pred_fallthru
          _
      $region36: #{bottleneck_forward.4} parent=5 // pred_fallthru
        _
      %p3429 = scmp.le.s32.totalorder 2, %s23
      // Predicated region
      $region61: #{bottleneck_forward.4} parent=5 // pred_check
        %p3430 = pneg %p3429
      $region62: #{bottleneck_forward.4} parent=5 // pred_check_branch
        %3432 = sbr.rel (%p3430) target = $region64
      $region63: #{bottleneck_forward.4} parent=5 // pred_region
        %s3433 = ssub.s32 %s23, 2
        // Predicated region
        $region65: #{bottleneck_forward.4} parent=63 // pred_check
          %p3434 = pneg %p141
        $region66: #{bottleneck_forward.4} parent=63 // pred_check_branch
          %3436 = sbr.rel (%p3434) target = $region68
        $region67: #{bottleneck_forward.4} parent=63 // pred_region
          %s3437 = sand.u32 %s126, 1
          %s3438 = scalar_lea.sflag [#allocation4], %s3437
          %s3439 = sand.u32 %s126, 1
          %s3440 = smul.addr %s3439, 256
          %s3441 = scalar_lea.vmem [#allocation10], %s3440
          %3442 = dma.done %s3438, 4096
        $region68: #{bottleneck_forward.4} parent=63 // pred_fallthru
          _
        // Predicated region
        $region69: #{bottleneck_forward.4} parent=63 // pred_check
          %p3443 = pneg %p167
        $region70: #{bottleneck_forward.4} parent=63 // pred_check_branch
          %3445 = sbr.rel (%p3443) target = $region72
        $region71: #{bottleneck_forward.4} parent=63 // pred_region
          %s3446 = sand.u32 %s152, 1
          %s3447 = scalar_lea.sflag [#allocation12], %s3446
          %s3448 = sand.u32 %s152, 1
          %s3449 = smul.addr %s3448, 2
          %s3450 = scalar_lea.vmem [#allocation11], %s3449
          %3451 = dma.done %s3447, 32
        $region72: #{bottleneck_forward.4} parent=63 // pred_fallthru
          _
      $region64: #{bottleneck_forward.4} parent=5 // pred_fallthru
        _
    $region6: #{bottleneck_forward.4} parent=1 // loop_footer
      %s27 = sadd.s32 1, %s23
    $region7: #{bottleneck_forward.4} parent=1 // loop_footer_branch
      %22 = sbr.rel target = $region3
    $region8: #{bottleneck_forward.4} parent=1 // loop_exit
      _
    %3452 = vsyncpa [#allocation3], 1
    %s3453 = scalar_lea.sflag [#allocation3], 1
    %3454 = vsyncpa %s3453, 1
    %3455 = vsyncpa [#allocation6], 1
    %3456 = vsyncpa [#allocation9], 1
    %3457 = vsyncpa [#allocation4], 1
    %s3458 = scalar_lea.sflag [#allocation4], 1
    %3459 = vsyncpa %s3458, 1
    %3460 = vsyncpa [#allocation12], 1
    %s3461 = scalar_lea.sflag [#allocation12], 1
    %3462 = vsyncpa %s3461, 1

</llo_original>
